<compile_context>
chip_gen: v5e
topology: v5e:2x2
jax: 0.10.0
libtpu: 0.0.40
codegen_flags: <defaults>
</compile_context>

<pallas_src>
import jax
import jax.numpy as jnp
from jax.experimental import pallas as pl
from jax.experimental.pallas import tpu as pltpu


NEG_SLOPE = 0.01   # nn.LeakyReLU() default negative_slope
LANE = 128         # TPU lane width
SUBLANE = 8        # f32 sublane width


def _round_up(n, m):
    return ((n + m - 1) // m) * m


def _leaky_relu(x):
    return jnp.where(x > 0, x, NEG_SLOPE * x)


def rnn_model_kernel(x_ref,                     # (T*Bp, D_in)  bf16, time-major rows
                     wih0_ref, b0_ref,          # (D,4Hp) bf16, (1,4Hp) f32
                     wbig_ref, b1_ref,          # (2Hp,8Hp) bf16, (1,4Hp) f32
                     w1_ref, bf1_ref,           # (Hp,512) bf16, (1,512) f32
                     w2_ref, bf2_ref,           # (512,256) bf16, (1,256) f32
                     w3_ref, bf3_ref,           # (256,OUTp) bf16, (1,OUTp) f32
                     out_ref,                   # (Bp, OUTp) f32
                     gx_ref):                   # scratch: (T*Bp, 4Hp) f32
    TB = x_ref.shape[0]
    Bp = out_ref.shape[0]
    T = TB // Bp
    Hp = wbig_ref.shape[0] // 2
    G = 4 * Hp

    # ---- Layer-0 input projection hoisted out of the recurrence -------------
    # One big matmul (bias folded) replaces T tiny matmuls on the serial path.
    # K = D_in is tiny (wastes MXU depth) but this is off the critical path.
    gx_ref[...] = (jnp.dot(x_ref[...], wih0_ref[...],
                           preferred_element_type=jnp.float32)
                   + b0_ref[...])

    wbig = wbig_ref[...]
    # Hoisted bias broadcast (JAX does not CSE broadcast_in_dim in the loop).
    b1 = jnp.broadcast_to(b1_ref[...], (Bp, G))

    def gates_to_hc(gates, c):
        # Hp is a multiple of 128 -> every gate slice is a full, aligned
        # 128-lane slab; no masked lane selects inside the recurrence.
        # Padded lanes stay exactly 0: gates=0 -> c_new=0, h_new=0.
        i = jax.nn.sigmoid(gates[:, 0 * Hp:1 * Hp])
        f = jax.nn.sigmoid(gates[:, 1 * Hp:2 * Hp])
        g = jnp.tanh(gates[:, 2 * Hp:3 * Hp])
        o = jax.nn.sigmoid(gates[:, 3 * Hp:4 * Hp])
        c_new = f * c + i * g
        h_new = o * jnp.tanh(c_new)
        return h_new, c_new

    c0 = jnp.zeros((Bp, Hp), jnp.float32)
    c1 = jnp.zeros((Bp, Hp), jnp.float32)

    # Prologue: step 0 of layer 0.  h0_{-1} = 0 so no recurrent matmul needed.
    h0, c0 = gates_to_hc(gx_ref[pl.ds(0, Bp), :], c0)
    h0b = h0.astype(jnp.bfloat16)                    # h0_0
    h1b = jnp.zeros((Bp, Hp), jnp.bfloat16)          # h1_{-1} = 0

    # Fully unrolled skewed time loop (T is static): ONE MXU matmul per step;
    # the layer-1 cell of step t and the layer-0 cell of step t+1 have no
    # mutual dependency, so the scheduler can overlap them.
    for t in range(T):
        u = jnp.concatenate([h0b, h1b], axis=-1)     # (Bp, 2Hp) bf16
        big = jnp.dot(u, wbig, preferred_element_type=jnp.float32)  # (Bp, 8Hp)

        # Layer 1, step t: cols 4Hp:8Hp = h0_t @ Wih1 + h1_{t-1} @ Whh1.
        g1 = big[:, G:2 * G] + b1
        h1, c1 = gates_to_hc(g1, c1)
        h1b = h1.astype(jnp.bfloat16)

        # Layer 0, step t+1: cols 0:4Hp = h0_t @ Whh0.
        if t + 1 < T:
            g0 = gx_ref[pl.ds((t + 1) * Bp, Bp), :] + big[:, 0:G]
            h0, c0 = gates_to_hc(g0, c0)
            h0b = h0.astype(jnp.bfloat16)

    # ---- MLP head on the last-timestep hidden state of the top layer --------
    y = _leaky_relu(jnp.dot(h1b, w1_ref[...],
                            preferred_element_type=jnp.float32) + bf1_ref[...])
    y = _leaky_relu(jnp.dot(y.astype(jnp.bfloat16), w2_ref[...],
                            preferred_element_type=jnp.float32) + bf2_ref[...])
    y = jnp.dot(y.astype(jnp.bfloat16), w3_ref[...],
                preferred_element_type=jnp.float32) + bf3_ref[...]
    out_ref[...] = y.astype(out_ref.dtype)           # (Bp, OUTp) lane-dense store


# ----------------------------- weight preparation ----------------------------

def _pad_gate_cols(w, H, Hp):
    """(rows, 4H) -> (rows, 4Hp): each i/f/g/o block zero-padded to Hp cols
    (PyTorch gate order i, f, g, o is preserved)."""
    blocks = [w[:, k * H:(k + 1) * H] for k in range(4)]
    blocks = [jnp.pad(b, ((0, 0), (0, Hp - H))) for b in blocks]
    return jnp.concatenate(blocks, axis=1)


def prepare_params(p, hidden_dim, output_dim):
    """Convert PyTorch-layout parameters (weight_ih/hh: (4H, in), biases (4H,),
    Linear weights (out, in)) into the transposed / padded / bf16 layout the
    kernel consumes.  Folds b_ih + b_hh per LSTM layer and builds the
    layer-skewed fused recurrent weight Wbig."""
    H = hidden_dim
    Hp = _round_up(H, LANE)
    OUTp = _round_up(output_dim, LANE)

    def pad_rows(w, rows_to):
        return jnp.pad(w, ((0, rows_to - w.shape[0]), (0, 0)))

    # LSTM layer 0 input path
    wih0 = _pad_gate_cols(p["w_ih_l0"].T, H, Hp).astype(jnp.bfloat16)      # (D,4Hp)
    b0 = _pad_gate_cols((p["b_ih_l0"] + p["b_hh_l0"])[None, :], H, Hp).astype(jnp.float32)

    # Recurrent weights (padded rows to Hp, gate cols to Hp each)
    whh0 = pad_rows(_pad_gate_cols(p["w_hh_l0"].T, H, Hp), Hp)             # (Hp,4Hp)
    wih1 = pad_rows(_pad_gate_cols(p["w_ih_l1"].T, H, Hp), Hp)             # (Hp,4Hp)
    whh1 = pad_rows(_pad_gate_cols(p["w_hh_l1"].T, H, Hp), Hp)             # (Hp,4Hp)
    # Layer-skewed fused weight Wbig (2Hp, 8Hp):
    #   rows 0:Hp   (multiplied by h0_t):     [ Whh0 | Wih1 ]
    #   rows Hp:2Hp (multiplied by h1_{t-1}): [   0  | Whh1 ]
    top = jnp.concatenate([whh0, wih1], axis=1)
    bot = jnp.concatenate([jnp.zeros_like(whh1), whh1], axis=1)
    wbig = jnp.concatenate([top, bot], axis=0).astype(jnp.bfloat16)
    b1 = _pad_gate_cols((p["b_ih_l1"] + p["b_hh_l1"])[None, :], H, Hp).astype(jnp.float32)

    # MLP head
    w1 = pad_rows(p["fc1_w"].T, Hp).astype(jnp.bfloat16)
    bf1 = p["fc1_b"][None, :].astype(jnp.float32)
    w2 = p["fc2_w"].T.astype(jnp.bfloat16)
    bf2 = p["fc2_b"][None, :].astype(jnp.float32)
    w3 = jnp.pad(p["fc3_w"].T, ((0, 0), (0, OUTp - output_dim))).astype(jnp.bfloat16)
    bf3 = jnp.pad(p["fc3_b"][None, :], ((0, 0), (0, OUTp - output_dim))).astype(jnp.float32)

    return (wih0, b0, wbig, b1, w1, bf1, w2, bf2, w3, bf3)


# --------------------------------- wrapper -----------------------------------

def rnn_model_forward(x_btd, params, hidden_dim, output_dim):
    """x_btd: (B, T, D_in), batch-first like the PyTorch module."""
    B, T, D_in = x_btd.shape
    Bp = _round_up(B, SUBLANE)
    Hp = _round_up(hidden_dim, LANE)
    OUTp = _round_up(output_dim, LANE)

    # Time-major, batch padded to a sublane multiple, flattened to (T*Bp, D),
    # cast to bf16 here (halves x DMA bytes; accumulation stays f32 in-kernel).
    # Padded batch rows (B..Bp) compute bias-driven garbage through the
    # recurrence; this is safe only because rows never mix and the wrapper
    # slices [:B] — do not introduce any batch-axis reduction in the kernel.
    x_tm = jnp.transpose(x_btd, (1, 0, 2))
    x_tm = jnp.pad(x_tm, ((0, 0), (0, Bp - B), (0, 0)))
    x_2d = x_tm.reshape(T * Bp, D_in).astype(jnp.bfloat16)

    kernel_params = prepare_params(params, hidden_dim, output_dim)
    args = (x_2d,) + kernel_params

    vmem = pl.BlockSpec(memory_space=pltpu.MemorySpace.VMEM)
    out = pl.pallas_call(
        rnn_model_kernel,
        out_shape=jax.ShapeDtypeStruct((Bp, OUTp), jnp.float32),
        in_specs=[vmem] * len(args),
        out_specs=vmem,
        scratch_shapes=[pltpu.VMEM((T * Bp, 4 * Hp), jnp.float32)],
    )(*args)
    return out[:B, :output_dim]


# -------------------------- synthetic parameters -----------------------------

def init_params(key, input_dim, hidden_dim, output_dim):
    """Deterministic synthetic parameters in PyTorch layout/naming so the
    conversion path (transpose, gate order, b_ih + b_hh folding) is explicit."""
    ks = jax.random.split(key, 14)
    H4 = 4 * hidden_dim

    def u(k, shape, fan_in):
        s = 1.0 / float(fan_in) ** 0.5
        return jax.random.uniform(k, shape, jnp.float32, -s, s)

    return dict(
        # nn.LSTM parameters (PyTorch layout (4H, in); gate order i, f, g, o)
        w_ih_l0=u(ks[0], (H4, input_dim), hidden_dim),
        w_hh_l0=u(ks[1], (H4, hidden_dim), hidden_dim),
        b_ih_l0=u(ks[2], (H4,), hidden_dim),
        b_hh_l0=u(ks[3], (H4,), hidden_dim),
        w_ih_l1=u(ks[4], (H4, hidden_dim), hidden_dim),
        w_hh_l1=u(ks[5], (H4, hidden_dim), hidden_dim),
        b_ih_l1=u(ks[6], (H4,), hidden_dim),
        b_hh_l1=u(ks[7], (H4,), hidden_dim),
        # nn.Linear parameters (PyTorch layout (out, in))
        fc1_w=u(ks[8], (512, hidden_dim), hidden_dim),
        fc1_b=u(ks[9], (512,), hidden_dim),
        fc2_w=u(ks[10], (256, 512), 512),
        fc2_b=u(ks[11], (256,), 512),
        fc3_w=u(ks[12], (output_dim, 256), 256),
        fc3_b=u(ks[13], (output_dim,), 256),
    )


if __name__ == "__main__":
    # Small shapes consistent with the module's forward():
    # batch=2, seq=8, input_dim=4, hidden_dim=32, layer_dim=2, output_dim=8
    B, T, D_IN, HID, OUT = 2, 8, 4, 32, 8

    key = jax.random.PRNGKey(0)
    k_x, k_p = jax.random.split(key)
    x = jax.random.normal(k_x, (B, T, D_IN), jnp.float32)
    params = init_params(k_p, D_IN, HID, OUT)

    out = rnn_model_forward(x, params, HID, OUT)
    out = jax.block_until_ready(out)
    assert out.shape == (B, OUT) and out.dtype == jnp.float32
    assert bool(jnp.all(jnp.isfinite(out)))
    print("KERNEL_OK")
</pallas_src>

<mosaic_0001>
module attributes {stable_mosaic.version = 11 : i64} {
  func.func @rnn_model_kernel(%arg0: memref<64x4xbf16, #tpu.memory_space<vmem>>, %arg1: memref<4x512xbf16, #tpu.memory_space<vmem>>, %arg2: memref<1x512xf32, #tpu.memory_space<vmem>>, %arg3: memref<256x1024xbf16, #tpu.memory_space<vmem>>, %arg4: memref<1x512xf32, #tpu.memory_space<vmem>>, %arg5: memref<128x512xbf16, #tpu.memory_space<vmem>>, %arg6: memref<1x512xf32, #tpu.memory_space<vmem>>, %arg7: memref<512x256xbf16, #tpu.memory_space<vmem>>, %arg8: memref<1x256xf32, #tpu.memory_space<vmem>>, %arg9: memref<256x128xbf16, #tpu.memory_space<vmem>>, %arg10: memref<1x128xf32, #tpu.memory_space<vmem>>, %arg11: memref<8x128xf32, #tpu.memory_space<vmem>>, %arg12: memref<64x512xf32, #tpu.memory_space<vmem>>) attributes {dimension_semantics = [], scalar_prefetch = 0 : i64, scratch_operands = 1 : i64, tpu.core_type = #tpu.core_type<tc>} {
    %c0 = arith.constant 0 : index
    %c0_0 = arith.constant 0 : index
    %0 = vector.load %arg0[%c0, %c0_0] : memref<64x4xbf16, #tpu.memory_space<vmem>>, vector<64x4xbf16>
    %c0_1 = arith.constant 0 : index
    %c0_2 = arith.constant 0 : index
    %1 = vector.load %arg1[%c0_1, %c0_2] : memref<4x512xbf16, #tpu.memory_space<vmem>>, vector<4x512xbf16>
    %cst = arith.constant dense<0.000000e+00> : vector<64x512xf32>
    %2 = tpu.matmul %0, %1, %cst {dimension_numbers = #tpu.dot_dimension_numbers<[1], [0], [0], [1], [0, 0, 1, 1], [], []>} : vector<64x4xbf16>, vector<4x512xbf16>, vector<64x512xf32> -> vector<64x512xf32>
    %c0_3 = arith.constant 0 : index
    %c0_4 = arith.constant 0 : index
    %3 = vector.load %arg2[%c0_3, %c0_4] : memref<1x512xf32, #tpu.memory_space<vmem>>, vector<1x512xf32>
    %4 = vector.broadcast %3 : vector<1x512xf32> to vector<64x512xf32>
    %5 = arith.addf %2, %4 : vector<64x512xf32>
    %c0_5 = arith.constant 0 : index
    %c0_6 = arith.constant 0 : index
    %6 = vector.load %arg12[%c0_5, %c0_6] : memref<64x512xf32, #tpu.memory_space<vmem>>, vector<64x512xf32>
    tpu.vector_store %arg12[%c0_5, %c0_6], %5 {strides = array<i32>} : memref<64x512xf32, #tpu.memory_space<vmem>>, vector<64x512xf32>,
    %c0_7 = arith.constant 0 : index
    %c0_8 = arith.constant 0 : index
    %7 = vector.load %arg3[%c0_7, %c0_8] : memref<256x1024xbf16, #tpu.memory_space<vmem>>, vector<256x1024xbf16>
    %c0_9 = arith.constant 0 : index
    %c0_10 = arith.constant 0 : index
    %8 = vector.load %arg4[%c0_9, %c0_10] : memref<1x512xf32, #tpu.memory_space<vmem>>, vector<1x512xf32>
    %9 = vector.shape_cast %8 : vector<1x512xf32> to vector<1x512xf32>
    %10 = vector.broadcast %9 : vector<1x512xf32> to vector<8x512xf32>
    %cst_11 = arith.constant 0.000000e+00 : f32
    %11 = vector.broadcast %cst_11 : f32 to vector<8x128xf32>
    %cst_12 = arith.constant 0.000000e+00 : f32
    %12 = vector.broadcast %cst_12 : f32 to vector<8x128xf32>
    %c0_13 = arith.constant 0 : index
    %c0_14 = arith.constant 0 : index
    %13 = vector.load %arg12[%c0_13, %c0_14] : memref<64x512xf32, #tpu.memory_space<vmem>>, vector<8x512xf32>
    %14 = vector.extract_strided_slice %13 {offsets = [0, 0], sizes = [8, 128], strides = [1, 1]} : vector<8x512xf32> to vector<8x128xf32>
    %15 = arith.negf %14 : vector<8x128xf32>
    %16 = math.exp %15 : vector<8x128xf32>
    %cst_15 = arith.constant 1.000000e+00 : f32
    %17 = vector.broadcast %cst_15 : f32 to vector<8x128xf32>
    %18 = arith.addf %17, %16 : vector<8x128xf32>
    %19 = arith.divf %17, %18 : vector<8x128xf32>
    %20 = vector.extract_strided_slice %13 {offsets = [0, 128], sizes = [8, 128], strides = [1, 1]} : vector<8x512xf32> to vector<8x128xf32>
    %21 = arith.negf %20 : vector<8x128xf32>
    %22 = math.exp %21 : vector<8x128xf32>
    %cst_16 = arith.constant 1.000000e+00 : f32
    %23 = vector.broadcast %cst_16 : f32 to vector<8x128xf32>
    %24 = arith.addf %23, %22 : vector<8x128xf32>
    %25 = arith.divf %23, %24 : vector<8x128xf32>
    %26 = vector.extract_strided_slice %13 {offsets = [0, 256], sizes = [8, 128], strides = [1, 1]} : vector<8x512xf32> to vector<8x128xf32>
    %27 = math.tanh %26 : vector<8x128xf32>
    %28 = vector.extract_strided_slice %13 {offsets = [0, 384], sizes = [8, 128], strides = [1, 1]} : vector<8x512xf32> to vector<8x128xf32>
    %29 = arith.negf %28 : vector<8x128xf32>
    %30 = math.exp %29 : vector<8x128xf32>
    %cst_17 = arith.constant 1.000000e+00 : f32
    %31 = vector.broadcast %cst_17 : f32 to vector<8x128xf32>
    %32 = arith.addf %31, %30 : vector<8x128xf32>
    %33 = arith.divf %31, %32 : vector<8x128xf32>
    %34 = arith.mulf %25, %11 : vector<8x128xf32>
    %35 = arith.mulf %19, %27 : vector<8x128xf32>
    %36 = arith.addf %34, %35 : vector<8x128xf32>
    %37 = math.tanh %36 : vector<8x128xf32>
    %38 = arith.mulf %33, %37 : vector<8x128xf32>
    %39 = arith.truncf %38 : vector<8x128xf32> to vector<8x128xbf16>
    %cst_18 = arith.constant 0.000000e+00 : bf16
    %40 = vector.broadcast %cst_18 : bf16 to vector<8x128xbf16>
    %41 = tpu.concatenate %39, %40 in 1 : vector<8x128xbf16>, vector<8x128xbf16> -> vector<8x256xbf16>
    %cst_19 = arith.constant dense<0.000000e+00> : vector<8x1024xf32>
    %42 = tpu.matmul %41, %7, %cst_19 {dimension_numbers = #tpu.dot_dimension_numbers<[1], [0], [0], [1], [0, 0, 1, 1], [], []>} : vector<8x256xbf16>, vector<256x1024xbf16>, vector<8x1024xf32> -> vector<8x1024xf32>
    %43 = vector.extract_strided_slice %42 {offsets = [0, 512], sizes = [8, 512], strides = [1, 1]} : vector<8x1024xf32> to vector<8x512xf32>
    %44 = arith.addf %43, %10 : vector<8x512xf32>
    %45 = vector.extract_strided_slice %44 {offsets = [0, 0], sizes = [8, 128], strides = [1, 1]} : vector<8x512xf32> to vector<8x128xf32>
    %46 = arith.negf %45 : vector<8x128xf32>
    %47 = math.exp %46 : vector<8x128xf32>
    %cst_20 = arith.constant 1.000000e+00 : f32
    %48 = vector.broadcast %cst_20 : f32 to vector<8x128xf32>
    %49 = arith.addf %48, %47 : vector<8x128xf32>
    %50 = arith.divf %48, %49 : vector<8x128xf32>
    %51 = vector.extract_strided_slice %44 {offsets = [0, 128], sizes = [8, 128], strides = [1, 1]} : vector<8x512xf32> to vector<8x128xf32>
    %52 = arith.negf %51 : vector<8x128xf32>
    %53 = math.exp %52 : vector<8x128xf32>
    %cst_21 = arith.constant 1.000000e+00 : f32
    %54 = vector.broadcast %cst_21 : f32 to vector<8x128xf32>
    %55 = arith.addf %54, %53 : vector<8x128xf32>
    %56 = arith.divf %54, %55 : vector<8x128xf32>
    %57 = vector.extract_strided_slice %44 {offsets = [0, 256], sizes = [8, 128], strides = [1, 1]} : vector<8x512xf32> to vector<8x128xf32>
    %58 = math.tanh %57 : vector<8x128xf32>
    %59 = vector.extract_strided_slice %44 {offsets = [0, 384], sizes = [8, 128], strides = [1, 1]} : vector<8x512xf32> to vector<8x128xf32>
    %60 = arith.negf %59 : vector<8x128xf32>
    %61 = math.exp %60 : vector<8x128xf32>
    %cst_22 = arith.constant 1.000000e+00 : f32
    %62 = vector.broadcast %cst_22 : f32 to vector<8x128xf32>
    %63 = arith.addf %62, %61 : vector<8x128xf32>
    %64 = arith.divf %62, %63 : vector<8x128xf32>
    %65 = arith.mulf %56, %12 : vector<8x128xf32>
    %66 = arith.mulf %50, %58 : vector<8x128xf32>
    %67 = arith.addf %65, %66 : vector<8x128xf32>
    %68 = math.tanh %67 : vector<8x128xf32>
    %69 = arith.mulf %64, %68 : vector<8x128xf32>
    %70 = arith.truncf %69 : vector<8x128xf32> to vector<8x128xbf16>
    %c8 = arith.constant 8 : index
    %c0_23 = arith.constant 0 : index
    %71 = vector.load %arg12[%c8, %c0_23] : memref<64x512xf32, #tpu.memory_space<vmem>>, vector<8x512xf32>
    %72 = vector.extract_strided_slice %42 {offsets = [0, 0], sizes = [8, 512], strides = [1, 1]} : vector<8x1024xf32> to vector<8x512xf32>
    %73 = arith.addf %71, %72 : vector<8x512xf32>
    %74 = vector.extract_strided_slice %73 {offsets = [0, 0], sizes = [8, 128], strides = [1, 1]} : vector<8x512xf32> to vector<8x128xf32>
    %75 = arith.negf %74 : vector<8x128xf32>
    %76 = math.exp %75 : vector<8x128xf32>
    %cst_24 = arith.constant 1.000000e+00 : f32
    %77 = vector.broadcast %cst_24 : f32 to vector<8x128xf32>
    %78 = arith.addf %77, %76 : vector<8x128xf32>
    %79 = arith.divf %77, %78 : vector<8x128xf32>
    %80 = vector.extract_strided_slice %73 {offsets = [0, 128], sizes = [8, 128], strides = [1, 1]} : vector<8x512xf32> to vector<8x128xf32>
    %81 = arith.negf %80 : vector<8x128xf32>
    %82 = math.exp %81 : vector<8x128xf32>
    %cst_25 = arith.constant 1.000000e+00 : f32
    %83 = vector.broadcast %cst_25 : f32 to vector<8x128xf32>
    %84 = arith.addf %83, %82 : vector<8x128xf32>
    %85 = arith.divf %83, %84 : vector<8x128xf32>
    %86 = vector.extract_strided_slice %73 {offsets = [0, 256], sizes = [8, 128], strides = [1, 1]} : vector<8x512xf32> to vector<8x128xf32>
    %87 = math.tanh %86 : vector<8x128xf32>
    %88 = vector.extract_strided_slice %73 {offsets = [0, 384], sizes = [8, 128], strides = [1, 1]} : vector<8x512xf32> to vector<8x128xf32>
    %89 = arith.negf %88 : vector<8x128xf32>
    %90 = math.exp %89 : vector<8x128xf32>
    %cst_26 = arith.constant 1.000000e+00 : f32
    %91 = vector.broadcast %cst_26 : f32 to vector<8x128xf32>
    %92 = arith.addf %91, %90 : vector<8x128xf32>
    %93 = arith.divf %91, %92 : vector<8x128xf32>
    %94 = arith.mulf %85, %36 : vector<8x128xf32>
    %95 = arith.mulf %79, %87 : vector<8x128xf32>
    %96 = arith.addf %94, %95 : vector<8x128xf32>
    %97 = math.tanh %96 : vector<8x128xf32>
    %98 = arith.mulf %93, %97 : vector<8x128xf32>
    %99 = arith.truncf %98 : vector<8x128xf32> to vector<8x128xbf16>
    %100 = tpu.concatenate %99, %70 in 1 : vector<8x128xbf16>, vector<8x128xbf16> -> vector<8x256xbf16>
    %cst_27 = arith.constant dense<0.000000e+00> : vector<8x1024xf32>
    %101 = tpu.matmul %100, %7, %cst_27 {dimension_numbers = #tpu.dot_dimension_numbers<[1], [0], [0], [1], [0, 0, 1, 1], [], []>} : vector<8x256xbf16>, vector<256x1024xbf16>, vector<8x1024xf32> -> vector<8x1024xf32>
    %102 = vector.extract_strided_slice %101 {offsets = [0, 512], sizes = [8, 512], strides = [1, 1]} : vector<8x1024xf32> to vector<8x512xf32>
    %103 = arith.addf %102, %10 : vector<8x512xf32>
    %104 = vector.extract_strided_slice %103 {offsets = [0, 0], sizes = [8, 128], strides = [1, 1]} : vector<8x512xf32> to vector<8x128xf32>
    %105 = arith.negf %104 : vector<8x128xf32>
    %106 = math.exp %105 : vector<8x128xf32>
    %cst_28 = arith.constant 1.000000e+00 : f32
    %107 = vector.broadcast %cst_28 : f32 to vector<8x128xf32>
    %108 = arith.addf %107, %106 : vector<8x128xf32>
    %109 = arith.divf %107, %108 : vector<8x128xf32>
    %110 = vector.extract_strided_slice %103 {offsets = [0, 128], sizes = [8, 128], strides = [1, 1]} : vector<8x512xf32> to vector<8x128xf32>
    %111 = arith.negf %110 : vector<8x128xf32>
    %112 = math.exp %111 : vector<8x128xf32>
    %cst_29 = arith.constant 1.000000e+00 : f32
    %113 = vector.broadcast %cst_29 : f32 to vector<8x128xf32>
    %114 = arith.addf %113, %112 : vector<8x128xf32>
    %115 = arith.divf %113, %114 : vector<8x128xf32>
    %116 = vector.extract_strided_slice %103 {offsets = [0, 256], sizes = [8, 128], strides = [1, 1]} : vector<8x512xf32> to vector<8x128xf32>
    %117 = math.tanh %116 : vector<8x128xf32>
    %118 = vector.extract_strided_slice %103 {offsets = [0, 384], sizes = [8, 128], strides = [1, 1]} : vector<8x512xf32> to vector<8x128xf32>
    %119 = arith.negf %118 : vector<8x128xf32>
    %120 = math.exp %119 : vector<8x128xf32>
    %cst_30 = arith.constant 1.000000e+00 : f32
    %121 = vector.broadcast %cst_30 : f32 to vector<8x128xf32>
    %122 = arith.addf %121, %120 : vector<8x128xf32>
    %123 = arith.divf %121, %122 : vector<8x128xf32>
    %124 = arith.mulf %115, %67 : vector<8x128xf32>
    %125 = arith.mulf %109, %117 : vector<8x128xf32>
    %126 = arith.addf %124, %125 : vector<8x128xf32>
    %127 = math.tanh %126 : vector<8x128xf32>
    %128 = arith.mulf %123, %127 : vector<8x128xf32>
    %129 = arith.truncf %128 : vector<8x128xf32> to vector<8x128xbf16>
    %c16 = arith.constant 16 : index
    %c0_31 = arith.constant 0 : index
    %130 = vector.load %arg12[%c16, %c0_31] : memref<64x512xf32, #tpu.memory_space<vmem>>, vector<8x512xf32>
    %131 = vector.extract_strided_slice %101 {offsets = [0, 0], sizes = [8, 512], strides = [1, 1]} : vector<8x1024xf32> to vector<8x512xf32>
    %132 = arith.addf %130, %131 : vector<8x512xf32>
    %133 = vector.extract_strided_slice %132 {offsets = [0, 0], sizes = [8, 128], strides = [1, 1]} : vector<8x512xf32> to vector<8x128xf32>
    %134 = arith.negf %133 : vector<8x128xf32>
    %135 = math.exp %134 : vector<8x128xf32>
    %cst_32 = arith.constant 1.000000e+00 : f32
    %136 = vector.broadcast %cst_32 : f32 to vector<8x128xf32>
    %137 = arith.addf %136, %135 : vector<8x128xf32>
    %138 = arith.divf %136, %137 : vector<8x128xf32>
    %139 = vector.extract_strided_slice %132 {offsets = [0, 128], sizes = [8, 128], strides = [1, 1]} : vector<8x512xf32> to vector<8x128xf32>
    %140 = arith.negf %139 : vector<8x128xf32>
    %141 = math.exp %140 : vector<8x128xf32>
    %cst_33 = arith.constant 1.000000e+00 : f32
    %142 = vector.broadcast %cst_33 : f32 to vector<8x128xf32>
    %143 = arith.addf %142, %141 : vector<8x128xf32>
    %144 = arith.divf %142, %143 : vector<8x128xf32>
    %145 = vector.extract_strided_slice %132 {offsets = [0, 256], sizes = [8, 128], strides = [1, 1]} : vector<8x512xf32> to vector<8x128xf32>
    %146 = math.tanh %145 : vector<8x128xf32>
    %147 = vector.extract_strided_slice %132 {offsets = [0, 384], sizes = [8, 128], strides = [1, 1]} : vector<8x512xf32> to vector<8x128xf32>
    %148 = arith.negf %147 : vector<8x128xf32>
    %149 = math.exp %148 : vector<8x128xf32>
    %cst_34 = arith.constant 1.000000e+00 : f32
    %150 = vector.broadcast %cst_34 : f32 to vector<8x128xf32>
    %151 = arith.addf %150, %149 : vector<8x128xf32>
    %152 = arith.divf %150, %151 : vector<8x128xf32>
    %153 = arith.mulf %144, %96 : vector<8x128xf32>
    %154 = arith.mulf %138, %146 : vector<8x128xf32>
    %155 = arith.addf %153, %154 : vector<8x128xf32>
    %156 = math.tanh %155 : vector<8x128xf32>
    %157 = arith.mulf %152, %156 : vector<8x128xf32>
    %158 = arith.truncf %157 : vector<8x128xf32> to vector<8x128xbf16>
    %159 = tpu.concatenate %158, %129 in 1 : vector<8x128xbf16>, vector<8x128xbf16> -> vector<8x256xbf16>
    %cst_35 = arith.constant dense<0.000000e+00> : vector<8x1024xf32>
    %160 = tpu.matmul %159, %7, %cst_35 {dimension_numbers = #tpu.dot_dimension_numbers<[1], [0], [0], [1], [0, 0, 1, 1], [], []>} : vector<8x256xbf16>, vector<256x1024xbf16>, vector<8x1024xf32> -> vector<8x1024xf32>
    %161 = vector.extract_strided_slice %160 {offsets = [0, 512], sizes = [8, 512], strides = [1, 1]} : vector<8x1024xf32> to vector<8x512xf32>
    %162 = arith.addf %161, %10 : vector<8x512xf32>
    %163 = vector.extract_strided_slice %162 {offsets = [0, 0], sizes = [8, 128], strides = [1, 1]} : vector<8x512xf32> to vector<8x128xf32>
    %164 = arith.negf %163 : vector<8x128xf32>
    %165 = math.exp %164 : vector<8x128xf32>
    %cst_36 = arith.constant 1.000000e+00 : f32
    %166 = vector.broadcast %cst_36 : f32 to vector<8x128xf32>
    %167 = arith.addf %166, %165 : vector<8x128xf32>
    %168 = arith.divf %166, %167 : vector<8x128xf32>
    %169 = vector.extract_strided_slice %162 {offsets = [0, 128], sizes = [8, 128], strides = [1, 1]} : vector<8x512xf32> to vector<8x128xf32>
    %170 = arith.negf %169 : vector<8x128xf32>
    %171 = math.exp %170 : vector<8x128xf32>
    %cst_37 = arith.constant 1.000000e+00 : f32
    %172 = vector.broadcast %cst_37 : f32 to vector<8x128xf32>
    %173 = arith.addf %172, %171 : vector<8x128xf32>
    %174 = arith.divf %172, %173 : vector<8x128xf32>
    %175 = vector.extract_strided_slice %162 {offsets = [0, 256], sizes = [8, 128], strides = [1, 1]} : vector<8x512xf32> to vector<8x128xf32>
    %176 = math.tanh %175 : vector<8x128xf32>
    %177 = vector.extract_strided_slice %162 {offsets = [0, 384], sizes = [8, 128], strides = [1, 1]} : vector<8x512xf32> to vector<8x128xf32>
    %178 = arith.negf %177 : vector<8x128xf32>
    %179 = math.exp %178 : vector<8x128xf32>
    %cst_38 = arith.constant 1.000000e+00 : f32
    %180 = vector.broadcast %cst_38 : f32 to vector<8x128xf32>
    %181 = arith.addf %180, %179 : vector<8x128xf32>
    %182 = arith.divf %180, %181 : vector<8x128xf32>
    %183 = arith.mulf %174, %126 : vector<8x128xf32>
    %184 = arith.mulf %168, %176 : vector<8x128xf32>
    %185 = arith.addf %183, %184 : vector<8x128xf32>
    %186 = math.tanh %185 : vector<8x128xf32>
    %187 = arith.mulf %182, %186 : vector<8x128xf32>
    %188 = arith.truncf %187 : vector<8x128xf32> to vector<8x128xbf16>
    %c24 = arith.constant 24 : index
    %c0_39 = arith.constant 0 : index
    %189 = vector.load %arg12[%c24, %c0_39] : memref<64x512xf32, #tpu.memory_space<vmem>>, vector<8x512xf32>
    %190 = vector.extract_strided_slice %160 {offsets = [0, 0], sizes = [8, 512], strides = [1, 1]} : vector<8x1024xf32> to vector<8x512xf32>
    %191 = arith.addf %189, %190 : vector<8x512xf32>
    %192 = vector.extract_strided_slice %191 {offsets = [0, 0], sizes = [8, 128], strides = [1, 1]} : vector<8x512xf32> to vector<8x128xf32>
    %193 = arith.negf %192 : vector<8x128xf32>
    %194 = math.exp %193 : vector<8x128xf32>
    %cst_40 = arith.constant 1.000000e+00 : f32
    %195 = vector.broadcast %cst_40 : f32 to vector<8x128xf32>
    %196 = arith.addf %195, %194 : vector<8x128xf32>
    %197 = arith.divf %195, %196 : vector<8x128xf32>
    %198 = vector.extract_strided_slice %191 {offsets = [0, 128], sizes = [8, 128], strides = [1, 1]} : vector<8x512xf32> to vector<8x128xf32>
    %199 = arith.negf %198 : vector<8x128xf32>
    %200 = math.exp %199 : vector<8x128xf32>
    %cst_41 = arith.constant 1.000000e+00 : f32
    %201 = vector.broadcast %cst_41 : f32 to vector<8x128xf32>
    %202 = arith.addf %201, %200 : vector<8x128xf32>
    %203 = arith.divf %201, %202 : vector<8x128xf32>
    %204 = vector.extract_strided_slice %191 {offsets = [0, 256], sizes = [8, 128], strides = [1, 1]} : vector<8x512xf32> to vector<8x128xf32>
    %205 = math.tanh %204 : vector<8x128xf32>
    %206 = vector.extract_strided_slice %191 {offsets = [0, 384], sizes = [8, 128], strides = [1, 1]} : vector<8x512xf32> to vector<8x128xf32>
    %207 = arith.negf %206 : vector<8x128xf32>
    %208 = math.exp %207 : vector<8x128xf32>
    %cst_42 = arith.constant 1.000000e+00 : f32
    %209 = vector.broadcast %cst_42 : f32 to vector<8x128xf32>
    %210 = arith.addf %209, %208 : vector<8x128xf32>
    %211 = arith.divf %209, %210 : vector<8x128xf32>
    %212 = arith.mulf %203, %155 : vector<8x128xf32>
    %213 = arith.mulf %197, %205 : vector<8x128xf32>
    %214 = arith.addf %212, %213 : vector<8x128xf32>
    %215 = math.tanh %214 : vector<8x128xf32>
    %216 = arith.mulf %211, %215 : vector<8x128xf32>
    %217 = arith.truncf %216 : vector<8x128xf32> to vector<8x128xbf16>
    %218 = tpu.concatenate %217, %188 in 1 : vector<8x128xbf16>, vector<8x128xbf16> -> vector<8x256xbf16>
    %cst_43 = arith.constant dense<0.000000e+00> : vector<8x1024xf32>
    %219 = tpu.matmul %218, %7, %cst_43 {dimension_numbers = #tpu.dot_dimension_numbers<[1], [0], [0], [1], [0, 0, 1, 1], [], []>} : vector<8x256xbf16>, vector<256x1024xbf16>, vector<8x1024xf32> -> vector<8x1024xf32>
    %220 = vector.extract_strided_slice %219 {offsets = [0, 512], sizes = [8, 512], strides = [1, 1]} : vector<8x1024xf32> to vector<8x512xf32>
    %221 = arith.addf %220, %10 : vector<8x512xf32>
    %222 = vector.extract_strided_slice %221 {offsets = [0, 0], sizes = [8, 128], strides = [1, 1]} : vector<8x512xf32> to vector<8x128xf32>
    %223 = arith.negf %222 : vector<8x128xf32>
    %224 = math.exp %223 : vector<8x128xf32>
    %cst_44 = arith.constant 1.000000e+00 : f32
    %225 = vector.broadcast %cst_44 : f32 to vector<8x128xf32>
    %226 = arith.addf %225, %224 : vector<8x128xf32>
    %227 = arith.divf %225, %226 : vector<8x128xf32>
    %228 = vector.extract_strided_slice %221 {offsets = [0, 128], sizes = [8, 128], strides = [1, 1]} : vector<8x512xf32> to vector<8x128xf32>
    %229 = arith.negf %228 : vector<8x128xf32>
    %230 = math.exp %229 : vector<8x128xf32>
    %cst_45 = arith.constant 1.000000e+00 : f32
    %231 = vector.broadcast %cst_45 : f32 to vector<8x128xf32>
    %232 = arith.addf %231, %230 : vector<8x128xf32>
    %233 = arith.divf %231, %232 : vector<8x128xf32>
    %234 = vector.extract_strided_slice %221 {offsets = [0, 256], sizes = [8, 128], strides = [1, 1]} : vector<8x512xf32> to vector<8x128xf32>
    %235 = math.tanh %234 : vector<8x128xf32>
    %236 = vector.extract_strided_slice %221 {offsets = [0, 384], sizes = [8, 128], strides = [1, 1]} : vector<8x512xf32> to vector<8x128xf32>
    %237 = arith.negf %236 : vector<8x128xf32>
    %238 = math.exp %237 : vector<8x128xf32>
    %cst_46 = arith.constant 1.000000e+00 : f32
    %239 = vector.broadcast %cst_46 : f32 to vector<8x128xf32>
    %240 = arith.addf %239, %238 : vector<8x128xf32>
    %241 = arith.divf %239, %240 : vector<8x128xf32>
    %242 = arith.mulf %233, %185 : vector<8x128xf32>
    %243 = arith.mulf %227, %235 : vector<8x128xf32>
    %244 = arith.addf %242, %243 : vector<8x128xf32>
    %245 = math.tanh %244 : vector<8x128xf32>
    %246 = arith.mulf %241, %245 : vector<8x128xf32>
    %247 = arith.truncf %246 : vector<8x128xf32> to vector<8x128xbf16>
    %c32 = arith.constant 32 : index
    %c0_47 = arith.constant 0 : index
    %248 = vector.load %arg12[%c32, %c0_47] : memref<64x512xf32, #tpu.memory_space<vmem>>, vector<8x512xf32>
    %249 = vector.extract_strided_slice %219 {offsets = [0, 0], sizes = [8, 512], strides = [1, 1]} : vector<8x1024xf32> to vector<8x512xf32>
    %250 = arith.addf %248, %249 : vector<8x512xf32>
    %251 = vector.extract_strided_slice %250 {offsets = [0, 0], sizes = [8, 128], strides = [1, 1]} : vector<8x512xf32> to vector<8x128xf32>
    %252 = arith.negf %251 : vector<8x128xf32>
    %253 = math.exp %252 : vector<8x128xf32>
    %cst_48 = arith.constant 1.000000e+00 : f32
    %254 = vector.broadcast %cst_48 : f32 to vector<8x128xf32>
    %255 = arith.addf %254, %253 : vector<8x128xf32>
    %256 = arith.divf %254, %255 : vector<8x128xf32>
    %257 = vector.extract_strided_slice %250 {offsets = [0, 128], sizes = [8, 128], strides = [1, 1]} : vector<8x512xf32> to vector<8x128xf32>
    %258 = arith.negf %257 : vector<8x128xf32>
    %259 = math.exp %258 : vector<8x128xf32>
    %cst_49 = arith.constant 1.000000e+00 : f32
    %260 = vector.broadcast %cst_49 : f32 to vector<8x128xf32>
    %261 = arith.addf %260, %259 : vector<8x128xf32>
    %262 = arith.divf %260, %261 : vector<8x128xf32>
    %263 = vector.extract_strided_slice %250 {offsets = [0, 256], sizes = [8, 128], strides = [1, 1]} : vector<8x512xf32> to vector<8x128xf32>
    %264 = math.tanh %263 : vector<8x128xf32>
    %265 = vector.extract_strided_slice %250 {offsets = [0, 384], sizes = [8, 128], strides = [1, 1]} : vector<8x512xf32> to vector<8x128xf32>
    %266 = arith.negf %265 : vector<8x128xf32>
    %267 = math.exp %266 : vector<8x128xf32>
    %cst_50 = arith.constant 1.000000e+00 : f32
    %268 = vector.broadcast %cst_50 : f32 to vector<8x128xf32>
    %269 = arith.addf %268, %267 : vector<8x128xf32>
    %270 = arith.divf %268, %269 : vector<8x128xf32>
    %271 = arith.mulf %262, %214 : vector<8x128xf32>
    %272 = arith.mulf %256, %264 : vector<8x128xf32>
    %273 = arith.addf %271, %272 : vector<8x128xf32>
    %274 = math.tanh %273 : vector<8x128xf32>
    %275 = arith.mulf %270, %274 : vector<8x128xf32>
    %276 = arith.truncf %275 : vector<8x128xf32> to vector<8x128xbf16>
    %277 = tpu.concatenate %276, %247 in 1 : vector<8x128xbf16>, vector<8x128xbf16> -> vector<8x256xbf16>
    %cst_51 = arith.constant dense<0.000000e+00> : vector<8x1024xf32>
    %278 = tpu.matmul %277, %7, %cst_51 {dimension_numbers = #tpu.dot_dimension_numbers<[1], [0], [0], [1], [0, 0, 1, 1], [], []>} : vector<8x256xbf16>, vector<256x1024xbf16>, vector<8x1024xf32> -> vector<8x1024xf32>
    %279 = vector.extract_strided_slice %278 {offsets = [0, 512], sizes = [8, 512], strides = [1, 1]} : vector<8x1024xf32> to vector<8x512xf32>
    %280 = arith.addf %279, %10 : vector<8x512xf32>
    %281 = vector.extract_strided_slice %280 {offsets = [0, 0], sizes = [8, 128], strides = [1, 1]} : vector<8x512xf32> to vector<8x128xf32>
    %282 = arith.negf %281 : vector<8x128xf32>
    %283 = math.exp %282 : vector<8x128xf32>
    %cst_52 = arith.constant 1.000000e+00 : f32
    %284 = vector.broadcast %cst_52 : f32 to vector<8x128xf32>
    %285 = arith.addf %284, %283 : vector<8x128xf32>
    %286 = arith.divf %284, %285 : vector<8x128xf32>
    %287 = vector.extract_strided_slice %280 {offsets = [0, 128], sizes = [8, 128], strides = [1, 1]} : vector<8x512xf32> to vector<8x128xf32>
    %288 = arith.negf %287 : vector<8x128xf32>
    %289 = math.exp %288 : vector<8x128xf32>
    %cst_53 = arith.constant 1.000000e+00 : f32
    %290 = vector.broadcast %cst_53 : f32 to vector<8x128xf32>
    %291 = arith.addf %290, %289 : vector<8x128xf32>
    %292 = arith.divf %290, %291 : vector<8x128xf32>
    %293 = vector.extract_strided_slice %280 {offsets = [0, 256], sizes = [8, 128], strides = [1, 1]} : vector<8x512xf32> to vector<8x128xf32>
    %294 = math.tanh %293 : vector<8x128xf32>
    %295 = vector.extract_strided_slice %280 {offsets = [0, 384], sizes = [8, 128], strides = [1, 1]} : vector<8x512xf32> to vector<8x128xf32>
    %296 = arith.negf %295 : vector<8x128xf32>
    %297 = math.exp %296 : vector<8x128xf32>
    %cst_54 = arith.constant 1.000000e+00 : f32
    %298 = vector.broadcast %cst_54 : f32 to vector<8x128xf32>
    %299 = arith.addf %298, %297 : vector<8x128xf32>
    %300 = arith.divf %298, %299 : vector<8x128xf32>
    %301 = arith.mulf %292, %244 : vector<8x128xf32>
    %302 = arith.mulf %286, %294 : vector<8x128xf32>
    %303 = arith.addf %301, %302 : vector<8x128xf32>
    %304 = math.tanh %303 : vector<8x128xf32>
    %305 = arith.mulf %300, %304 : vector<8x128xf32>
    %306 = arith.truncf %305 : vector<8x128xf32> to vector<8x128xbf16>
    %c40 = arith.constant 40 : index
    %c0_55 = arith.constant 0 : index
    %307 = vector.load %arg12[%c40, %c0_55] : memref<64x512xf32, #tpu.memory_space<vmem>>, vector<8x512xf32>
    %308 = vector.extract_strided_slice %278 {offsets = [0, 0], sizes = [8, 512], strides = [1, 1]} : vector<8x1024xf32> to vector<8x512xf32>
    %309 = arith.addf %307, %308 : vector<8x512xf32>
    %310 = vector.extract_strided_slice %309 {offsets = [0, 0], sizes = [8, 128], strides = [1, 1]} : vector<8x512xf32> to vector<8x128xf32>
    %311 = arith.negf %310 : vector<8x128xf32>
    %312 = math.exp %311 : vector<8x128xf32>
    %cst_56 = arith.constant 1.000000e+00 : f32
    %313 = vector.broadcast %cst_56 : f32 to vector<8x128xf32>
    %314 = arith.addf %313, %312 : vector<8x128xf32>
    %315 = arith.divf %313, %314 : vector<8x128xf32>
    %316 = vector.extract_strided_slice %309 {offsets = [0, 128], sizes = [8, 128], strides = [1, 1]} : vector<8x512xf32> to vector<8x128xf32>
    %317 = arith.negf %316 : vector<8x128xf32>
    %318 = math.exp %317 : vector<8x128xf32>
    %cst_57 = arith.constant 1.000000e+00 : f32
    %319 = vector.broadcast %cst_57 : f32 to vector<8x128xf32>
    %320 = arith.addf %319, %318 : vector<8x128xf32>
    %321 = arith.divf %319, %320 : vector<8x128xf32>
    %322 = vector.extract_strided_slice %309 {offsets = [0, 256], sizes = [8, 128], strides = [1, 1]} : vector<8x512xf32> to vector<8x128xf32>
    %323 = math.tanh %322 : vector<8x128xf32>
    %324 = vector.extract_strided_slice %309 {offsets = [0, 384], sizes = [8, 128], strides = [1, 1]} : vector<8x512xf32> to vector<8x128xf32>
    %325 = arith.negf %324 : vector<8x128xf32>
    %326 = math.exp %325 : vector<8x128xf32>
    %cst_58 = arith.constant 1.000000e+00 : f32
    %327 = vector.broadcast %cst_58 : f32 to vector<8x128xf32>
    %328 = arith.addf %327, %326 : vector<8x128xf32>
    %329 = arith.divf %327, %328 : vector<8x128xf32>
    %330 = arith.mulf %321, %273 : vector<8x128xf32>
    %331 = arith.mulf %315, %323 : vector<8x128xf32>
    %332 = arith.addf %330, %331 : vector<8x128xf32>
    %333 = math.tanh %332 : vector<8x128xf32>
    %334 = arith.mulf %329, %333 : vector<8x128xf32>
    %335 = arith.truncf %334 : vector<8x128xf32> to vector<8x128xbf16>
    %336 = tpu.concatenate %335, %306 in 1 : vector<8x128xbf16>, vector<8x128xbf16> -> vector<8x256xbf16>
    %cst_59 = arith.constant dense<0.000000e+00> : vector<8x1024xf32>
    %337 = tpu.matmul %336, %7, %cst_59 {dimension_numbers = #tpu.dot_dimension_numbers<[1], [0], [0], [1], [0, 0, 1, 1], [], []>} : vector<8x256xbf16>, vector<256x1024xbf16>, vector<8x1024xf32> -> vector<8x1024xf32>
    %338 = vector.extract_strided_slice %337 {offsets = [0, 512], sizes = [8, 512], strides = [1, 1]} : vector<8x1024xf32> to vector<8x512xf32>
    %339 = arith.addf %338, %10 : vector<8x512xf32>
    %340 = vector.extract_strided_slice %339 {offsets = [0, 0], sizes = [8, 128], strides = [1, 1]} : vector<8x512xf32> to vector<8x128xf32>
    %341 = arith.negf %340 : vector<8x128xf32>
    %342 = math.exp %341 : vector<8x128xf32>
    %cst_60 = arith.constant 1.000000e+00 : f32
    %343 = vector.broadcast %cst_60 : f32 to vector<8x128xf32>
    %344 = arith.addf %343, %342 : vector<8x128xf32>
    %345 = arith.divf %343, %344 : vector<8x128xf32>
    %346 = vector.extract_strided_slice %339 {offsets = [0, 128], sizes = [8, 128], strides = [1, 1]} : vector<8x512xf32> to vector<8x128xf32>
    %347 = arith.negf %346 : vector<8x128xf32>
    %348 = math.exp %347 : vector<8x128xf32>
    %cst_61 = arith.constant 1.000000e+00 : f32
    %349 = vector.broadcast %cst_61 : f32 to vector<8x128xf32>
    %350 = arith.addf %349, %348 : vector<8x128xf32>
    %351 = arith.divf %349, %350 : vector<8x128xf32>
    %352 = vector.extract_strided_slice %339 {offsets = [0, 256], sizes = [8, 128], strides = [1, 1]} : vector<8x512xf32> to vector<8x128xf32>
    %353 = math.tanh %352 : vector<8x128xf32>
    %354 = vector.extract_strided_slice %339 {offsets = [0, 384], sizes = [8, 128], strides = [1, 1]} : vector<8x512xf32> to vector<8x128xf32>
    %355 = arith.negf %354 : vector<8x128xf32>
    %356 = math.exp %355 : vector<8x128xf32>
    %cst_62 = arith.constant 1.000000e+00 : f32
    %357 = vector.broadcast %cst_62 : f32 to vector<8x128xf32>
    %358 = arith.addf %357, %356 : vector<8x128xf32>
    %359 = arith.divf %357, %358 : vector<8x128xf32>
    %360 = arith.mulf %351, %303 : vector<8x128xf32>
    %361 = arith.mulf %345, %353 : vector<8x128xf32>
    %362 = arith.addf %360, %361 : vector<8x128xf32>
    %363 = math.tanh %362 : vector<8x128xf32>
    %364 = arith.mulf %359, %363 : vector<8x128xf32>
    %365 = arith.truncf %364 : vector<8x128xf32> to vector<8x128xbf16>
    %c48 = arith.constant 48 : index
    %c0_63 = arith.constant 0 : index
    %366 = vector.load %arg12[%c48, %c0_63] : memref<64x512xf32, #tpu.memory_space<vmem>>, vector<8x512xf32>
    %367 = vector.extract_strided_slice %337 {offsets = [0, 0], sizes = [8, 512], strides = [1, 1]} : vector<8x1024xf32> to vector<8x512xf32>
    %368 = arith.addf %366, %367 : vector<8x512xf32>
    %369 = vector.extract_strided_slice %368 {offsets = [0, 0], sizes = [8, 128], strides = [1, 1]} : vector<8x512xf32> to vector<8x128xf32>
    %370 = arith.negf %369 : vector<8x128xf32>
    %371 = math.exp %370 : vector<8x128xf32>
    %cst_64 = arith.constant 1.000000e+00 : f32
    %372 = vector.broadcast %cst_64 : f32 to vector<8x128xf32>
    %373 = arith.addf %372, %371 : vector<8x128xf32>
    %374 = arith.divf %372, %373 : vector<8x128xf32>
    %375 = vector.extract_strided_slice %368 {offsets = [0, 128], sizes = [8, 128], strides = [1, 1]} : vector<8x512xf32> to vector<8x128xf32>
    %376 = arith.negf %375 : vector<8x128xf32>
    %377 = math.exp %376 : vector<8x128xf32>
    %cst_65 = arith.constant 1.000000e+00 : f32
    %378 = vector.broadcast %cst_65 : f32 to vector<8x128xf32>
    %379 = arith.addf %378, %377 : vector<8x128xf32>
    %380 = arith.divf %378, %379 : vector<8x128xf32>
    %381 = vector.extract_strided_slice %368 {offsets = [0, 256], sizes = [8, 128], strides = [1, 1]} : vector<8x512xf32> to vector<8x128xf32>
    %382 = math.tanh %381 : vector<8x128xf32>
    %383 = vector.extract_strided_slice %368 {offsets = [0, 384], sizes = [8, 128], strides = [1, 1]} : vector<8x512xf32> to vector<8x128xf32>
    %384 = arith.negf %383 : vector<8x128xf32>
    %385 = math.exp %384 : vector<8x128xf32>
    %cst_66 = arith.constant 1.000000e+00 : f32
    %386 = vector.broadcast %cst_66 : f32 to vector<8x128xf32>
    %387 = arith.addf %386, %385 : vector<8x128xf32>
    %388 = arith.divf %386, %387 : vector<8x128xf32>
    %389 = arith.mulf %380, %332 : vector<8x128xf32>
    %390 = arith.mulf %374, %382 : vector<8x128xf32>
    %391 = arith.addf %389, %390 : vector<8x128xf32>
    %392 = math.tanh %391 : vector<8x128xf32>
    %393 = arith.mulf %388, %392 : vector<8x128xf32>
    %394 = arith.truncf %393 : vector<8x128xf32> to vector<8x128xbf16>
    %395 = tpu.concatenate %394, %365 in 1 : vector<8x128xbf16>, vector<8x128xbf16> -> vector<8x256xbf16>
    %cst_67 = arith.constant dense<0.000000e+00> : vector<8x1024xf32>
    %396 = tpu.matmul %395, %7, %cst_67 {dimension_numbers = #tpu.dot_dimension_numbers<[1], [0], [0], [1], [0, 0, 1, 1], [], []>} : vector<8x256xbf16>, vector<256x1024xbf16>, vector<8x1024xf32> -> vector<8x1024xf32>
    %397 = vector.extract_strided_slice %396 {offsets = [0, 512], sizes = [8, 512], strides = [1, 1]} : vector<8x1024xf32> to vector<8x512xf32>
    %398 = arith.addf %397, %10 : vector<8x512xf32>
    %399 = vector.extract_strided_slice %398 {offsets = [0, 0], sizes = [8, 128], strides = [1, 1]} : vector<8x512xf32> to vector<8x128xf32>
    %400 = arith.negf %399 : vector<8x128xf32>
    %401 = math.exp %400 : vector<8x128xf32>
    %cst_68 = arith.constant 1.000000e+00 : f32
    %402 = vector.broadcast %cst_68 : f32 to vector<8x128xf32>
    %403 = arith.addf %402, %401 : vector<8x128xf32>
    %404 = arith.divf %402, %403 : vector<8x128xf32>
    %405 = vector.extract_strided_slice %398 {offsets = [0, 128], sizes = [8, 128], strides = [1, 1]} : vector<8x512xf32> to vector<8x128xf32>
    %406 = arith.negf %405 : vector<8x128xf32>
    %407 = math.exp %406 : vector<8x128xf32>
    %cst_69 = arith.constant 1.000000e+00 : f32
    %408 = vector.broadcast %cst_69 : f32 to vector<8x128xf32>
    %409 = arith.addf %408, %407 : vector<8x128xf32>
    %410 = arith.divf %408, %409 : vector<8x128xf32>
    %411 = vector.extract_strided_slice %398 {offsets = [0, 256], sizes = [8, 128], strides = [1, 1]} : vector<8x512xf32> to vector<8x128xf32>
    %412 = math.tanh %411 : vector<8x128xf32>
    %413 = vector.extract_strided_slice %398 {offsets = [0, 384], sizes = [8, 128], strides = [1, 1]} : vector<8x512xf32> to vector<8x128xf32>
    %414 = arith.negf %413 : vector<8x128xf32>
    %415 = math.exp %414 : vector<8x128xf32>
    %cst_70 = arith.constant 1.000000e+00 : f32
    %416 = vector.broadcast %cst_70 : f32 to vector<8x128xf32>
    %417 = arith.addf %416, %415 : vector<8x128xf32>
    %418 = arith.divf %416, %417 : vector<8x128xf32>
    %419 = arith.mulf %410, %362 : vector<8x128xf32>
    %420 = arith.mulf %404, %412 : vector<8x128xf32>
    %421 = arith.addf %419, %420 : vector<8x128xf32>
    %422 = math.tanh %421 : vector<8x128xf32>
    %423 = arith.mulf %418, %422 : vector<8x128xf32>
    %424 = arith.truncf %423 : vector<8x128xf32> to vector<8x128xbf16>
    %c56 = arith.constant 56 : index
    %c0_71 = arith.constant 0 : index
    %425 = vector.load %arg12[%c56, %c0_71] : memref<64x512xf32, #tpu.memory_space<vmem>>, vector<8x512xf32>
    %426 = vector.extract_strided_slice %396 {offsets = [0, 0], sizes = [8, 512], strides = [1, 1]} : vector<8x1024xf32> to vector<8x512xf32>
    %427 = arith.addf %425, %426 : vector<8x512xf32>
    %428 = vector.extract_strided_slice %427 {offsets = [0, 0], sizes = [8, 128], strides = [1, 1]} : vector<8x512xf32> to vector<8x128xf32>
    %429 = arith.negf %428 : vector<8x128xf32>
    %430 = math.exp %429 : vector<8x128xf32>
    %cst_72 = arith.constant 1.000000e+00 : f32
    %431 = vector.broadcast %cst_72 : f32 to vector<8x128xf32>
    %432 = arith.addf %431, %430 : vector<8x128xf32>
    %433 = arith.divf %431, %432 : vector<8x128xf32>
    %434 = vector.extract_strided_slice %427 {offsets = [0, 128], sizes = [8, 128], strides = [1, 1]} : vector<8x512xf32> to vector<8x128xf32>
    %435 = arith.negf %434 : vector<8x128xf32>
    %436 = math.exp %435 : vector<8x128xf32>
    %cst_73 = arith.constant 1.000000e+00 : f32
    %437 = vector.broadcast %cst_73 : f32 to vector<8x128xf32>
    %438 = arith.addf %437, %436 : vector<8x128xf32>
    %439 = arith.divf %437, %438 : vector<8x128xf32>
    %440 = vector.extract_strided_slice %427 {offsets = [0, 256], sizes = [8, 128], strides = [1, 1]} : vector<8x512xf32> to vector<8x128xf32>
    %441 = math.tanh %440 : vector<8x128xf32>
    %442 = vector.extract_strided_slice %427 {offsets = [0, 384], sizes = [8, 128], strides = [1, 1]} : vector<8x512xf32> to vector<8x128xf32>
    %443 = arith.negf %442 : vector<8x128xf32>
    %444 = math.exp %443 : vector<8x128xf32>
    %cst_74 = arith.constant 1.000000e+00 : f32
    %445 = vector.broadcast %cst_74 : f32 to vector<8x128xf32>
    %446 = arith.addf %445, %444 : vector<8x128xf32>
    %447 = arith.divf %445, %446 : vector<8x128xf32>
    %448 = arith.mulf %439, %391 : vector<8x128xf32>
    %449 = arith.mulf %433, %441 : vector<8x128xf32>
    %450 = arith.addf %448, %449 : vector<8x128xf32>
    %451 = math.tanh %450 : vector<8x128xf32>
    %452 = arith.mulf %447, %451 : vector<8x128xf32>
    %453 = arith.truncf %452 : vector<8x128xf32> to vector<8x128xbf16>
    %454 = tpu.concatenate %453, %424 in 1 : vector<8x128xbf16>, vector<8x128xbf16> -> vector<8x256xbf16>
    %cst_75 = arith.constant dense<0.000000e+00> : vector<8x1024xf32>
    %455 = tpu.matmul %454, %7, %cst_75 {dimension_numbers = #tpu.dot_dimension_numbers<[1], [0], [0], [1], [0, 0, 1, 1], [], []>} : vector<8x256xbf16>, vector<256x1024xbf16>, vector<8x1024xf32> -> vector<8x1024xf32>
    %456 = vector.extract_strided_slice %455 {offsets = [0, 512], sizes = [8, 512], strides = [1, 1]} : vector<8x1024xf32> to vector<8x512xf32>
    %457 = arith.addf %456, %10 : vector<8x512xf32>
    %458 = vector.extract_strided_slice %457 {offsets = [0, 0], sizes = [8, 128], strides = [1, 1]} : vector<8x512xf32> to vector<8x128xf32>
    %459 = arith.negf %458 : vector<8x128xf32>
    %460 = math.exp %459 : vector<8x128xf32>
    %cst_76 = arith.constant 1.000000e+00 : f32
    %461 = vector.broadcast %cst_76 : f32 to vector<8x128xf32>
    %462 = arith.addf %461, %460 : vector<8x128xf32>
    %463 = arith.divf %461, %462 : vector<8x128xf32>
    %464 = vector.extract_strided_slice %457 {offsets = [0, 128], sizes = [8, 128], strides = [1, 1]} : vector<8x512xf32> to vector<8x128xf32>
    %465 = arith.negf %464 : vector<8x128xf32>
    %466 = math.exp %465 : vector<8x128xf32>
    %cst_77 = arith.constant 1.000000e+00 : f32
    %467 = vector.broadcast %cst_77 : f32 to vector<8x128xf32>
    %468 = arith.addf %467, %466 : vector<8x128xf32>
    %469 = arith.divf %467, %468 : vector<8x128xf32>
    %470 = vector.extract_strided_slice %457 {offsets = [0, 256], sizes = [8, 128], strides = [1, 1]} : vector<8x512xf32> to vector<8x128xf32>
    %471 = math.tanh %470 : vector<8x128xf32>
    %472 = vector.extract_strided_slice %457 {offsets = [0, 384], sizes = [8, 128], strides = [1, 1]} : vector<8x512xf32> to vector<8x128xf32>
    %473 = arith.negf %472 : vector<8x128xf32>
    %474 = math.exp %473 : vector<8x128xf32>
    %cst_78 = arith.constant 1.000000e+00 : f32
    %475 = vector.broadcast %cst_78 : f32 to vector<8x128xf32>
    %476 = arith.addf %475, %474 : vector<8x128xf32>
    %477 = arith.divf %475, %476 : vector<8x128xf32>
    %478 = arith.mulf %469, %421 : vector<8x128xf32>
    %479 = arith.mulf %463, %471 : vector<8x128xf32>
    %480 = arith.addf %478, %479 : vector<8x128xf32>
    %481 = math.tanh %480 : vector<8x128xf32>
    %482 = arith.mulf %477, %481 : vector<8x128xf32>
    %483 = arith.truncf %482 : vector<8x128xf32> to vector<8x128xbf16>
    %c0_79 = arith.constant 0 : index
    %c0_80 = arith.constant 0 : index
    %484 = vector.load %arg5[%c0_79, %c0_80] : memref<128x512xbf16, #tpu.memory_space<vmem>>, vector<128x512xbf16>
    %cst_81 = arith.constant dense<0.000000e+00> : vector<8x512xf32>
    %485 = tpu.matmul %483, %484, %cst_81 {dimension_numbers = #tpu.dot_dimension_numbers<[1], [0], [0], [1], [0, 0, 1, 1], [], []>} : vector<8x128xbf16>, vector<128x512xbf16>, vector<8x512xf32> -> vector<8x512xf32>
    %c0_82 = arith.constant 0 : index
    %c0_83 = arith.constant 0 : index
    %486 = vector.load %arg6[%c0_82, %c0_83] : memref<1x512xf32, #tpu.memory_space<vmem>>, vector<1x512xf32>
    %487 = vector.broadcast %486 : vector<1x512xf32> to vector<8x512xf32>
    %488 = arith.addf %485, %487 : vector<8x512xf32>
    %cst_84 = arith.constant 0.000000e+00 : f32
    %489 = vector.broadcast %cst_84 : f32 to vector<8x512xf32>
    %490 = arith.cmpf ogt, %488, %489 : vector<8x512xf32>
    %cst_85 = arith.constant 0.00999999977 : f32
    %491 = vector.broadcast %cst_85 : f32 to vector<8x512xf32>
    %492 = arith.mulf %491, %488 : vector<8x512xf32>
    %493 = arith.select %490, %488, %492 : vector<8x512xi1>, vector<8x512xf32>
    %494 = arith.truncf %493 : vector<8x512xf32> to vector<8x512xbf16>
    %c0_86 = arith.constant 0 : index
    %c0_87 = arith.constant 0 : index
    %495 = vector.load %arg7[%c0_86, %c0_87] : memref<512x256xbf16, #tpu.memory_space<vmem>>, vector<512x256xbf16>
    %cst_88 = arith.constant dense<0.000000e+00> : vector<8x256xf32>
    %496 = tpu.matmul %494, %495, %cst_88 {dimension_numbers = #tpu.dot_dimension_numbers<[1], [0], [0], [1], [0, 0, 1, 1], [], []>} : vector<8x512xbf16>, vector<512x256xbf16>, vector<8x256xf32> -> vector<8x256xf32>
    %c0_89 = arith.constant 0 : index
    %c0_90 = arith.constant 0 : index
    %497 = vector.load %arg8[%c0_89, %c0_90] : memref<1x256xf32, #tpu.memory_space<vmem>>, vector<1x256xf32>
    %498 = vector.broadcast %497 : vector<1x256xf32> to vector<8x256xf32>
    %499 = arith.addf %496, %498 : vector<8x256xf32>
    %cst_91 = arith.constant 0.000000e+00 : f32
    %500 = vector.broadcast %cst_91 : f32 to vector<8x256xf32>
    %501 = arith.cmpf ogt, %499, %500 : vector<8x256xf32>
    %cst_92 = arith.constant 0.00999999977 : f32
    %502 = vector.broadcast %cst_92 : f32 to vector<8x256xf32>
    %503 = arith.mulf %502, %499 : vector<8x256xf32>
    %504 = arith.select %501, %499, %503 : vector<8x256xi1>, vector<8x256xf32>
    %505 = arith.truncf %504 : vector<8x256xf32> to vector<8x256xbf16>
    %c0_93 = arith.constant 0 : index
    %c0_94 = arith.constant 0 : index
    %506 = vector.load %arg9[%c0_93, %c0_94] : memref<256x128xbf16, #tpu.memory_space<vmem>>, vector<256x128xbf16>
    %cst_95 = arith.constant dense<0.000000e+00> : vector<8x128xf32>
    %507 = tpu.matmul %505, %506, %cst_95 {dimension_numbers = #tpu.dot_dimension_numbers<[1], [0], [0], [1], [0, 0, 1, 1], [], []>} : vector<8x256xbf16>, vector<256x128xbf16>, vector<8x128xf32> -> vector<8x128xf32>
    %c0_96 = arith.constant 0 : index
    %c0_97 = arith.constant 0 : index
    %508 = vector.load %arg10[%c0_96, %c0_97] : memref<1x128xf32, #tpu.memory_space<vmem>>, vector<1x128xf32>
    %509 = vector.broadcast %508 : vector<1x128xf32> to vector<8x128xf32>
    %510 = arith.addf %507, %509 : vector<8x128xf32>
    %c0_98 = arith.constant 0 : index
    %c0_99 = arith.constant 0 : index
    %511 = vector.load %arg11[%c0_98, %c0_99] : memref<8x128xf32, #tpu.memory_space<vmem>>, vector<8x128xf32>
    tpu.vector_store %arg11[%c0_98, %c0_99], %510 {strides = array<i32>} : memref<8x128xf32, #tpu.memory_space<vmem>>, vector<8x128xf32>,
    return
  }
}

</mosaic_0001>

<llo_original>
// kernel: tpu_custom_call.1
$region0: #{tpu_custom_call.1}
  #allocation0 [shape = 'u32[]', space=smem, size = 0x4, offset = 0x4, fixed_abs, tag = 'smem constant byte address 0x4 - core index']
  #allocation1 [shape = 'u32[72,128]{1,0:T(1,128)}', space=vmem, size = 0x9000, scoped, tag = 'internal scratch']
  #allocation2 [shape = 'f32[64,512]{1,0:T(8,128)}', space=vmem, size = 0x20000, scoped, tag = 'scratch operand']
  %s0 = inlined_call_operand.vmem [shape: bf16[64,4], index: 0, kind: input, shape index: {}]
  %s1 = inlined_call_operand.vmem [shape: bf16[4,512], index: 1, kind: input, shape index: {}]
  %s2 = inlined_call_operand.vmem [shape: f32[1,512], index: 2, kind: input, shape index: {}]
  %s3 = inlined_call_operand.hbm [shape: bf16[256,1024], index: 3, kind: input, shape index: {}]
  %s4 = inlined_call_operand.vmem [shape: f32[1,512], index: 4, kind: input, shape index: {}]
  %s5 = inlined_call_operand.hbm [shape: bf16[128,512], index: 5, kind: input, shape index: {}]
  %s6 = inlined_call_operand.vmem [shape: f32[1,512], index: 6, kind: input, shape index: {}]
  %s7 = inlined_call_operand.hbm [shape: bf16[512,256], index: 7, kind: input, shape index: {}]
  %s8 = inlined_call_operand.vmem [shape: f32[1,256], index: 8, kind: input, shape index: {}]
  %s9 = inlined_call_operand.hbm [shape: bf16[256,128], index: 9, kind: input, shape index: {}]
  %s10 = inlined_call_operand.vmem [shape: f32[1,128], index: 10, kind: input, shape index: {}]
  %s11 = inlined_call_operand.hbm [shape: f32[8,128], index: 11, kind: output, shape index: {}]
  %s12 = sld [smem:[#allocation0]]
  $region70: #{tpu_custom_call.1} parent=0
    _
  %s14 = ssub.s32 1, %s12
  %s15 = scalar_select 0, %s14, %s12
  $region1: #{tpu_custom_call.1} parent=0
    #allocation3 [shape = 'u8[524288]{0}', space=vmem, size = 0x80000, scoped, tag = 'input window, operand 3, single buffered']
    #allocation4 [shape = 's32[1]{0}', space=sflag, size = 0x4, scoped, tag = 'scoped memory for tpu_custom_call.1']
    #allocation5 [shape = 's32[1]{0}', space=sflag, size = 0x4, scoped, tag = 'scoped memory for tpu_custom_call.1']
    #allocation6 [shape = 'u8[131072]{0}', space=vmem, size = 0x20000, scoped, tag = 'input window, operand 5, single buffered']
    #allocation7 [shape = 's32[1]{0}', space=sflag, size = 0x4, scoped, tag = 'scoped memory for tpu_custom_call.1']
    #allocation8 [shape = 'u8[262144]{0}', space=vmem, size = 0x40000, scoped, tag = 'input window, operand 7, single buffered']
    #allocation9 [shape = 'u8[65536]{0}', space=vmem, size = 0x10000, scoped, tag = 'input window, operand 9, single buffered']
    #allocation10 [shape = 's32[1]{0}', space=sflag, size = 0x4, scoped, tag = 'scoped memory for tpu_custom_call.1']
    #allocation11 [shape = 'u8[4096]{0}', space=vmem, size = 0x1000, scoped, tag = 'output window, operand 0, single buffered']
    %16 = vsyncpa [#allocation4], 0
    %17 = vsyncpa [#allocation7], 0
    %18 = vsyncpa [#allocation10], 0
    %19 = vsyncpa [#allocation5], 0
    // Predicated region
    $region2: #{tpu_custom_call.1} parent=1 // pred_check
      _
    $region3: #{tpu_custom_call.1} parent=1 // pred_check_branch
      %21 = sbr.rel (0) target = $region5
    $region4: #{tpu_custom_call.1} parent=1 // pred_region
      _
    $region5: #{tpu_custom_call.1} parent=1 // pred_fallthru
      _
    // Predicated region
    $region6: #{tpu_custom_call.1} parent=1 // pred_check
      _
    $region7: #{tpu_custom_call.1} parent=1 // pred_check_branch
      %23 = sbr.rel (0) target = $region9
    $region8: #{tpu_custom_call.1} parent=1 // pred_region
      _
    $region9: #{tpu_custom_call.1} parent=1 // pred_fallthru
      _
    // Predicated region
    $region10: #{tpu_custom_call.1} parent=1 // pred_check
      _
    $region11: #{tpu_custom_call.1} parent=1 // pred_check_branch
      %25 = sbr.rel (0) target = $region13
    $region12: #{tpu_custom_call.1} parent=1 // pred_region
      _
    $region13: #{tpu_custom_call.1} parent=1 // pred_fallthru
      _
    // Predicated region
    $region14: #{tpu_custom_call.1} parent=1 // pred_check
      _
    $region15: #{tpu_custom_call.1} parent=1 // pred_check_branch
      %27 = sbr.rel (0) target = $region17
    $region16: #{tpu_custom_call.1} parent=1 // pred_region
      %29 = vsyncadd [#allocation4], 0
      %s30 = sshll.u32 %s3, 4
      %s31 = int_to_ptr.hbm [resolvable:$true] %s30
      %s32 = sshll.u32 [#allocation3], 4
      %s33 = int_to_ptr.vmem [resolvable:$true] %s32
      %38 = dma.hbm_to_vmem [thread:$0]  %s31, 16384, %s33, [#allocation4], 512, 512, 32
    $region17: #{tpu_custom_call.1} parent=1 // pred_fallthru
      _
    // Predicated region
    $region18: #{tpu_custom_call.1} parent=1 // pred_check
      _
    $region19: #{tpu_custom_call.1} parent=1 // pred_check_branch
      %40 = sbr.rel (0) target = $region21
    $region20: #{tpu_custom_call.1} parent=1 // pred_region
      _
    $region21: #{tpu_custom_call.1} parent=1 // pred_fallthru
      _
    // Predicated region
    $region22: #{tpu_custom_call.1} parent=1 // pred_check
      _
    $region23: #{tpu_custom_call.1} parent=1 // pred_check_branch
      %42 = sbr.rel (0) target = $region25
    $region24: #{tpu_custom_call.1} parent=1 // pred_region
      %44 = vsyncadd [#allocation7], 0
      %s45 = sshll.u32 %s5, 4
      %s46 = int_to_ptr.hbm [resolvable:$true] %s45
      %s47 = sshll.u32 [#allocation6], 4
      %s48 = int_to_ptr.vmem [resolvable:$true] %s47
      %53 = dma.hbm_to_vmem [thread:$0]  %s46, 4096, %s48, [#allocation7], 256, 256, 16
    $region25: #{tpu_custom_call.1} parent=1 // pred_fallthru
      _
    // Predicated region
    $region26: #{tpu_custom_call.1} parent=1 // pred_check
      _
    $region27: #{tpu_custom_call.1} parent=1 // pred_check_branch
      %55 = sbr.rel (0) target = $region29
    $region28: #{tpu_custom_call.1} parent=1 // pred_region
      _
    $region29: #{tpu_custom_call.1} parent=1 // pred_fallthru
      _
    // Predicated region
    $region30: #{tpu_custom_call.1} parent=1 // pred_check
      _
    $region31: #{tpu_custom_call.1} parent=1 // pred_check_branch
      %57 = sbr.rel (0) target = $region33
    $region32: #{tpu_custom_call.1} parent=1 // pred_region
      %59 = vsyncadd [#allocation7], 0
      %s60 = sshll.u32 %s7, 4
      %s61 = int_to_ptr.hbm [resolvable:$true] %s60
      %s62 = sshll.u32 [#allocation8], 4
      %s63 = int_to_ptr.vmem [resolvable:$true] %s62
      %68 = dma.hbm_to_vmem [thread:$0]  %s61, 8192, %s63, [#allocation7], 128, 128, 8
    $region33: #{tpu_custom_call.1} parent=1 // pred_fallthru
      _
    // Predicated region
    $region34: #{tpu_custom_call.1} parent=1 // pred_check
      _
    $region35: #{tpu_custom_call.1} parent=1 // pred_check_branch
      %70 = sbr.rel (0) target = $region37
    $region36: #{tpu_custom_call.1} parent=1 // pred_region
      _
    $region37: #{tpu_custom_call.1} parent=1 // pred_fallthru
      _
    // Predicated region
    $region38: #{tpu_custom_call.1} parent=1 // pred_check
      _
    $region39: #{tpu_custom_call.1} parent=1 // pred_check_branch
      %72 = sbr.rel (0) target = $region41
    $region40: #{tpu_custom_call.1} parent=1 // pred_region
      %74 = vsyncadd [#allocation10], 0
      %s75 = sshll.u32 %s9, 4
      %s76 = int_to_ptr.hbm [resolvable:$true] %s75
      %s77 = sshll.u32 [#allocation9], 4
      %s78 = int_to_ptr.vmem [resolvable:$true] %s77
      %83 = dma.hbm_to_vmem [thread:$0]  %s76, 2048, %s78, [#allocation10], 64, 64, 4
    $region41: #{tpu_custom_call.1} parent=1 // pred_fallthru
      _
    // Predicated region
    $region42: #{tpu_custom_call.1} parent=1 // pred_check
      _
    $region43: #{tpu_custom_call.1} parent=1 // pred_check_branch
      %85 = sbr.rel (0) target = $region45
    $region44: #{tpu_custom_call.1} parent=1 // pred_region
      _
    $region45: #{tpu_custom_call.1} parent=1 // pred_fallthru
      _
    // Predicated region
    $region46: #{tpu_custom_call.1} parent=1 // pred_check
      _
    $region47: #{tpu_custom_call.1} parent=1 // pred_check_branch
      %87 = sbr.rel (0) target = $region49
    $region48: #{tpu_custom_call.1} parent=1 // pred_region
      %89 = dma.done [#allocation4], 16384
    $region49: #{tpu_custom_call.1} parent=1 // pred_fallthru
      _
    // Predicated region
    $region50: #{tpu_custom_call.1} parent=1 // pred_check
      _
    $region51: #{tpu_custom_call.1} parent=1 // pred_check_branch
      %91 = sbr.rel (0) target = $region53
    $region52: #{tpu_custom_call.1} parent=1 // pred_region
      %93 = dma.done [#allocation7], 4096
    $region53: #{tpu_custom_call.1} parent=1 // pred_fallthru
      _
    // Predicated region
    $region54: #{tpu_custom_call.1} parent=1 // pred_check
      _
    $region55: #{tpu_custom_call.1} parent=1 // pred_check_branch
      %95 = sbr.rel (0) target = $region57
    $region56: #{tpu_custom_call.1} parent=1 // pred_region
      %97 = dma.done [#allocation7], 8192
    $region57: #{tpu_custom_call.1} parent=1 // pred_fallthru
      _
    // Predicated region
    $region58: #{tpu_custom_call.1} parent=1 // pred_check
      _
    $region59: #{tpu_custom_call.1} parent=1 // pred_check_branch
      %99 = sbr.rel (0) target = $region61
    $region60: #{tpu_custom_call.1} parent=1 // pred_region
      %101 = dma.done [#allocation10], 2048
    $region61: #{tpu_custom_call.1} parent=1 // pred_fallthru
      _
    %v103 = vld [vmem:[%s0] sm:$0xf]
    %v104 = vld [vmem:[%s0 + $0x4] sm:$0xf]
    %v105 = vld [vmem:[%s0 + $0x8] sm:$0xf]
    %v106 = vld [vmem:[%s0 + $0xc] sm:$0xf]
    %v107 = vld [vmem:[%s0 + $0x10] sm:$0xf]
    %v108 = vld [vmem:[%s0 + $0x14] sm:$0xf]
    %v109 = vld [vmem:[%s0 + $0x18] sm:$0xf]
    %v110 = vld [vmem:[%s0 + $0x1c] sm:$0xf]
    %v111 = vld [vmem:[%s1] sm:$0xff]
    %v112 = vld [vmem:[%s2] sm:$0xf]
    %v114 = vperm.slane %v112, 0
    %v115 = vperm.slane %v112, 1
    %v116 = vperm.slane %v112, 2
    %v117 = vperm.slane %v112, 3
    %v130 = vunpack.c.l.b16 %v103
    %v131 = vunpack.c.l.b16 %v104
    %v132 = vunpack.c.l.b16 %v105
    %v133 = vunpack.c.l.b16 %v106
    %v134 = vunpack.c.l.b16 %v107
    %v135 = vunpack.c.l.b16 %v108
    %v136 = vunpack.c.l.b16 %v109
    %v137 = vunpack.c.l.b16 %v110
    %v138 = vpack.c.b16 %v131, %v130
    %v139 = vpack.c.b16 %v133, %v132
    %v140 = vpack.c.b16 %v135, %v134
    %v141 = vpack.c.b16 %v137, %v136
    %143 = vst [vmem:[#allocation1] ss:$4 sm:$0xff] %v111
    %v144 = vld.sshfl [vmem:[#allocation1] sm:$0xff pattern:$0x73625140]
    %v145 = vld.sshfl [vmem:[#allocation1 + $0x8] sm:$0xff pattern:$0x73625140]
    %v146 = vld.sshfl [vmem:[#allocation1 + $0x10] sm:$0xff pattern:$0x73625140]
    %v147 = vld.sshfl [vmem:[#allocation1 + $0x18] sm:$0xff pattern:$0x73625140]
    %vm148 = vcmask 31744
    %v150 = vsel %vm148, %v138, 0
    %v153 = vsel %vm148, %v139, 0
    %v156 = vsel %vm148, %v140, 0
    %v159 = vsel %vm148, %v141, 0
    %vm161 = vcmask 1041408
    %v162 = vsel %vm161, %v144, 0
    %v164 = vsel %vm161, %v145, 0
    %v166 = vsel %vm161, %v146, 0
    %v168 = vsel %vm161, %v147, 0
    %170 = vmatpush.bf16.msra.mxu0 0
    %171 = vmatpush.bf16.msra.mxu0 0
    %172 = vmatpush.bf16.msra.mxu0 0
    %173 = vmatpush.bf16.msra.mxu0 0
    %174 = vmatpush.bf16.msra.mxu0 0
    %175 = vmatpush.bf16.msra.mxu0 0
    %176 = vmatpush.bf16.msra.mxu0 0
    %177 = vmatpush.bf16.msra.mxu0 %v162
    %178 = vmatmul.bf16.gmra.mxu0 %v150
    %v179 = vpop.f32.mrf.mxu0
    %v180 = vadd.f32 %v114, %v179
    %v181 = vpop.f32.mrf.mxu0
    %v182 = vadd.f32 %v114, %v181
    %183 = vmatmul.bf16.gmra.mxu0 %v153
    %v184 = vpop.f32.mrf.mxu0
    %v185 = vadd.f32 %v114, %v184
    %v186 = vpop.f32.mrf.mxu0
    %v187 = vadd.f32 %v114, %v186
    %188 = vmatmul.bf16.gmra.mxu0 %v156
    %v189 = vpop.f32.mrf.mxu0
    %v190 = vadd.f32 %v114, %v189
    %v191 = vpop.f32.mrf.mxu0
    %v192 = vadd.f32 %v114, %v191
    %193 = vmatmul.bf16.gmra.mxu0 %v159
    %v194 = vpop.f32.mrf.mxu0
    %v195 = vadd.f32 %v114, %v194
    %v196 = vpop.f32.mrf.mxu0
    %v197 = vadd.f32 %v114, %v196
    %198 = vdwg.mxu0
    %199 = vmatpush.bf16.msra.mxu0 0
    %200 = vmatpush.bf16.msra.mxu0 0
    %201 = vmatpush.bf16.msra.mxu0 0
    %202 = vmatpush.bf16.msra.mxu0 0
    %203 = vmatpush.bf16.msra.mxu0 0
    %204 = vmatpush.bf16.msra.mxu0 0
    %205 = vmatpush.bf16.msra.mxu0 0
    %206 = vmatpush.bf16.msra.mxu0 %v164
    %207 = vmatmul.bf16.gmra.mxu0 %v150
    %v208 = vpop.f32.mrf.mxu0
    %v209 = vadd.f32 %v115, %v208
    %v210 = vpop.f32.mrf.mxu0
    %v211 = vadd.f32 %v115, %v210
    %212 = vmatmul.bf16.gmra.mxu0 %v153
    %v213 = vpop.f32.mrf.mxu0
    %v214 = vadd.f32 %v115, %v213
    %v215 = vpop.f32.mrf.mxu0
    %v216 = vadd.f32 %v115, %v215
    %217 = vmatmul.bf16.gmra.mxu0 %v156
    %v218 = vpop.f32.mrf.mxu0
    %v219 = vadd.f32 %v115, %v218
    %v220 = vpop.f32.mrf.mxu0
    %v221 = vadd.f32 %v115, %v220
    %222 = vmatmul.bf16.gmra.mxu0 %v159
    %v223 = vpop.f32.mrf.mxu0
    %v224 = vadd.f32 %v115, %v223
    %v225 = vpop.f32.mrf.mxu0
    %v226 = vadd.f32 %v115, %v225
    %227 = vdwg.mxu0
    %228 = vmatpush.bf16.msra.mxu0 0
    %229 = vmatpush.bf16.msra.mxu0 0
    %230 = vmatpush.bf16.msra.mxu0 0
    %231 = vmatpush.bf16.msra.mxu0 0
    %232 = vmatpush.bf16.msra.mxu0 0
    %233 = vmatpush.bf16.msra.mxu0 0
    %234 = vmatpush.bf16.msra.mxu0 0
    %235 = vmatpush.bf16.msra.mxu0 %v166
    %236 = vmatmul.bf16.gmra.mxu0 %v150
    %v237 = vpop.f32.mrf.mxu0
    %v238 = vadd.f32 %v116, %v237
    %v239 = vpop.f32.mrf.mxu0
    %v240 = vadd.f32 %v116, %v239
    %241 = vmatmul.bf16.gmra.mxu0 %v153
    %v242 = vpop.f32.mrf.mxu0
    %v243 = vadd.f32 %v116, %v242
    %v244 = vpop.f32.mrf.mxu0
    %v245 = vadd.f32 %v116, %v244
    %246 = vmatmul.bf16.gmra.mxu0 %v156
    %v247 = vpop.f32.mrf.mxu0
    %v248 = vadd.f32 %v116, %v247
    %v249 = vpop.f32.mrf.mxu0
    %v250 = vadd.f32 %v116, %v249
    %251 = vmatmul.bf16.gmra.mxu0 %v159
    %v252 = vpop.f32.mrf.mxu0
    %v253 = vadd.f32 %v116, %v252
    %v254 = vpop.f32.mrf.mxu0
    %v255 = vadd.f32 %v116, %v254
    %256 = vdwg.mxu0
    %257 = vmatpush.bf16.msra.mxu0 0
    %258 = vmatpush.bf16.msra.mxu0 0
    %259 = vmatpush.bf16.msra.mxu0 0
    %260 = vmatpush.bf16.msra.mxu0 0
    %261 = vmatpush.bf16.msra.mxu0 0
    %262 = vmatpush.bf16.msra.mxu0 0
    %263 = vmatpush.bf16.msra.mxu0 0
    %264 = vmatpush.bf16.msra.mxu0 %v168
    %265 = vmatmul.bf16.gmra.mxu0 %v150
    %v266 = vpop.f32.mrf.mxu0
    %v267 = vadd.f32 %v117, %v266
    %v268 = vpop.f32.mrf.mxu0
    %v269 = vadd.f32 %v117, %v268
    %270 = vmatmul.bf16.gmra.mxu0 %v153
    %v271 = vpop.f32.mrf.mxu0
    %v272 = vadd.f32 %v117, %v271
    %v273 = vpop.f32.mrf.mxu0
    %v274 = vadd.f32 %v117, %v273
    %275 = vmatmul.bf16.gmra.mxu0 %v156
    %v276 = vpop.f32.mrf.mxu0
    %v277 = vadd.f32 %v117, %v276
    %v278 = vpop.f32.mrf.mxu0
    %v279 = vadd.f32 %v117, %v278
    %280 = vmatmul.bf16.gmra.mxu0 %v159
    %v281 = vpop.f32.mrf.mxu0
    %v282 = vadd.f32 %v117, %v281
    %v283 = vpop.f32.mrf.mxu0
    %v284 = vadd.f32 %v117, %v283
    %285 = vdwg.mxu0
    %286 = vst [vmem:[#allocation2] sm:$0xff] %v180
    %287 = vst [vmem:[#allocation2 + $0x8] sm:$0xff] %v209
    %288 = vst [vmem:[#allocation2 + $0x10] sm:$0xff] %v238
    %289 = vst [vmem:[#allocation2 + $0x18] sm:$0xff] %v267
    %290 = vst [vmem:[#allocation2 + $0x20] sm:$0xff] %v182
    %291 = vst [vmem:[#allocation2 + $0x28] sm:$0xff] %v211
    %292 = vst [vmem:[#allocation2 + $0x30] sm:$0xff] %v240
    %293 = vst [vmem:[#allocation2 + $0x38] sm:$0xff] %v269
    %294 = vst [vmem:[#allocation2 + $0x40] sm:$0xff] %v185
    %295 = vst [vmem:[#allocation2 + $0x48] sm:$0xff] %v214
    %296 = vst [vmem:[#allocation2 + $0x50] sm:$0xff] %v243
    %297 = vst [vmem:[#allocation2 + $0x58] sm:$0xff] %v272
    %298 = vst [vmem:[#allocation2 + $0x60] sm:$0xff] %v187
    %299 = vst [vmem:[#allocation2 + $0x68] sm:$0xff] %v216
    %300 = vst [vmem:[#allocation2 + $0x70] sm:$0xff] %v245
    %301 = vst [vmem:[#allocation2 + $0x78] sm:$0xff] %v274
    %302 = vst [vmem:[#allocation2 + $0x80] sm:$0xff] %v190
    %303 = vst [vmem:[#allocation2 + $0x88] sm:$0xff] %v219
    %304 = vst [vmem:[#allocation2 + $0x90] sm:$0xff] %v248
    %305 = vst [vmem:[#allocation2 + $0x98] sm:$0xff] %v277
    %306 = vst [vmem:[#allocation2 + $0xa0] sm:$0xff] %v192
    %307 = vst [vmem:[#allocation2 + $0xa8] sm:$0xff] %v221
    %308 = vst [vmem:[#allocation2 + $0xb0] sm:$0xff] %v250
    %309 = vst [vmem:[#allocation2 + $0xb8] sm:$0xff] %v279
    %310 = vst [vmem:[#allocation2 + $0xc0] sm:$0xff] %v195
    %311 = vst [vmem:[#allocation2 + $0xc8] sm:$0xff] %v224
    %312 = vst [vmem:[#allocation2 + $0xd0] sm:$0xff] %v253
    %313 = vst [vmem:[#allocation2 + $0xd8] sm:$0xff] %v282
    %314 = vst [vmem:[#allocation2 + $0xe0] sm:$0xff] %v197
    %315 = vst [vmem:[#allocation2 + $0xe8] sm:$0xff] %v226
    %316 = vst [vmem:[#allocation2 + $0xf0] sm:$0xff] %v255
    %317 = vst [vmem:[#allocation2 + $0xf8] sm:$0xff] %v284
    %v318 = vld [vmem:[#allocation3] sm:$0xff]
    %v319 = vld [vmem:[#allocation3 + $0x8] sm:$0xff]
    %v320 = vld [vmem:[#allocation3 + $0x10] sm:$0xff]
    %v321 = vld [vmem:[#allocation3 + $0x18] sm:$0xff]
    %v322 = vld [vmem:[#allocation3 + $0x20] sm:$0xff]
    %v323 = vld [vmem:[#allocation3 + $0x28] sm:$0xff]
    %v324 = vld [vmem:[#allocation3 + $0x30] sm:$0xff]
    %v325 = vld [vmem:[#allocation3 + $0x38] sm:$0xff]
    %v326 = vld [vmem:[#allocation3 + $0x40] sm:$0xff]
    %v327 = vld [vmem:[#allocation3 + $0x48] sm:$0xff]
    %v328 = vld [vmem:[#allocation3 + $0x50] sm:$0xff]
    %v329 = vld [vmem:[#allocation3 + $0x58] sm:$0xff]
    %v330 = vld [vmem:[#allocation3 + $0x60] sm:$0xff]
    %v331 = vld [vmem:[#allocation3 + $0x68] sm:$0xff]
    %v332 = vld [vmem:[#allocation3 + $0x70] sm:$0xff]
    %v333 = vld [vmem:[#allocation3 + $0x78] sm:$0xff]
    %v334 = vld [vmem:[#allocation3 + $0x80] sm:$0xff]
    %v335 = vld [vmem:[#allocation3 + $0x88] sm:$0xff]
    %v336 = vld [vmem:[#allocation3 + $0x90] sm:$0xff]
    %v337 = vld [vmem:[#allocation3 + $0x98] sm:$0xff]
    %v338 = vld [vmem:[#allocation3 + $0xa0] sm:$0xff]
    %v339 = vld [vmem:[#allocation3 + $0xa8] sm:$0xff]
    %v340 = vld [vmem:[#allocation3 + $0xb0] sm:$0xff]
    %v341 = vld [vmem:[#allocation3 + $0xb8] sm:$0xff]
    %v342 = vld [vmem:[#allocation3 + $0xc0] sm:$0xff]
    %v343 = vld [vmem:[#allocation3 + $0xc8] sm:$0xff]
    %v344 = vld [vmem:[#allocation3 + $0xd0] sm:$0xff]
    %v345 = vld [vmem:[#allocation3 + $0xd8] sm:$0xff]
    %v346 = vld [vmem:[#allocation3 + $0xe0] sm:$0xff]
    %v347 = vld [vmem:[#allocation3 + $0xe8] sm:$0xff]
    %v348 = vld [vmem:[#allocation3 + $0xf0] sm:$0xff]
    %v349 = vld [vmem:[#allocation3 + $0xf8] sm:$0xff]
    %v350 = vld [vmem:[#allocation3 + $0x100] sm:$0xff]
    %v351 = vld [vmem:[#allocation3 + $0x108] sm:$0xff]
    %v352 = vld [vmem:[#allocation3 + $0x110] sm:$0xff]
    %v353 = vld [vmem:[#allocation3 + $0x118] sm:$0xff]
    %v354 = vld [vmem:[#allocation3 + $0x120] sm:$0xff]
    %v355 = vld [vmem:[#allocation3 + $0x128] sm:$0xff]
    %v356 = vld [vmem:[#allocation3 + $0x130] sm:$0xff]
    %v357 = vld [vmem:[#allocation3 + $0x138] sm:$0xff]
    %v358 = vld [vmem:[#allocation3 + $0x140] sm:$0xff]
    %v359 = vld [vmem:[#allocation3 + $0x148] sm:$0xff]
    %v360 = vld [vmem:[#allocation3 + $0x150] sm:$0xff]
    %v361 = vld [vmem:[#allocation3 + $0x158] sm:$0xff]
    %v362 = vld [vmem:[#allocation3 + $0x160] sm:$0xff]
    %v363 = vld [vmem:[#allocation3 + $0x168] sm:$0xff]
    %v364 = vld [vmem:[#allocation3 + $0x170] sm:$0xff]
    %v365 = vld [vmem:[#allocation3 + $0x178] sm:$0xff]
    %v366 = vld [vmem:[#allocation3 + $0x180] sm:$0xff]
    %v367 = vld [vmem:[#allocation3 + $0x188] sm:$0xff]
    %v368 = vld [vmem:[#allocation3 + $0x190] sm:$0xff]
    %v369 = vld [vmem:[#allocation3 + $0x198] sm:$0xff]
    %v370 = vld [vmem:[#allocation3 + $0x1a0] sm:$0xff]
    %v371 = vld [vmem:[#allocation3 + $0x1a8] sm:$0xff]
    %v372 = vld [vmem:[#allocation3 + $0x1b0] sm:$0xff]
    %v373 = vld [vmem:[#allocation3 + $0x1b8] sm:$0xff]
    %v374 = vld [vmem:[#allocation3 + $0x1c0] sm:$0xff]
    %v375 = vld [vmem:[#allocation3 + $0x1c8] sm:$0xff]
    %v376 = vld [vmem:[#allocation3 + $0x1d0] sm:$0xff]
    %v377 = vld [vmem:[#allocation3 + $0x1d8] sm:$0xff]
    %v378 = vld [vmem:[#allocation3 + $0x1e0] sm:$0xff]
    %v379 = vld [vmem:[#allocation3 + $0x1e8] sm:$0xff]
    %v380 = vld [vmem:[#allocation3 + $0x1f0] sm:$0xff]
    %v381 = vld [vmem:[#allocation3 + $0x1f8] sm:$0xff]
    %v382 = vld [vmem:[#allocation3 + $0x200] sm:$0xff]
    %v383 = vld [vmem:[#allocation3 + $0x208] sm:$0xff]
    %v384 = vld [vmem:[#allocation3 + $0x210] sm:$0xff]
    %v385 = vld [vmem:[#allocation3 + $0x218] sm:$0xff]
    %v386 = vld [vmem:[#allocation3 + $0x220] sm:$0xff]
    %v387 = vld [vmem:[#allocation3 + $0x228] sm:$0xff]
    %v388 = vld [vmem:[#allocation3 + $0x230] sm:$0xff]
    %v389 = vld [vmem:[#allocation3 + $0x238] sm:$0xff]
    %v390 = vld [vmem:[#allocation3 + $0x240] sm:$0xff]
    %v391 = vld [vmem:[#allocation3 + $0x248] sm:$0xff]
    %v392 = vld [vmem:[#allocation3 + $0x250] sm:$0xff]
    %v393 = vld [vmem:[#allocation3 + $0x258] sm:$0xff]
    %v394 = vld [vmem:[#allocation3 + $0x260] sm:$0xff]
    %v395 = vld [vmem:[#allocation3 + $0x268] sm:$0xff]
    %v396 = vld [vmem:[#allocation3 + $0x270] sm:$0xff]
    %v397 = vld [vmem:[#allocation3 + $0x278] sm:$0xff]
    %v398 = vld [vmem:[#allocation3 + $0x280] sm:$0xff]
    %v399 = vld [vmem:[#allocation3 + $0x288] sm:$0xff]
    %v400 = vld [vmem:[#allocation3 + $0x290] sm:$0xff]
    %v401 = vld [vmem:[#allocation3 + $0x298] sm:$0xff]
    %v402 = vld [vmem:[#allocation3 + $0x2a0] sm:$0xff]
    %v403 = vld [vmem:[#allocation3 + $0x2a8] sm:$0xff]
    %v404 = vld [vmem:[#allocation3 + $0x2b0] sm:$0xff]
    %v405 = vld [vmem:[#allocation3 + $0x2b8] sm:$0xff]
    %v406 = vld [vmem:[#allocation3 + $0x2c0] sm:$0xff]
    %v407 = vld [vmem:[#allocation3 + $0x2c8] sm:$0xff]
    %v408 = vld [vmem:[#allocation3 + $0x2d0] sm:$0xff]
    %v409 = vld [vmem:[#allocation3 + $0x2d8] sm:$0xff]
    %v410 = vld [vmem:[#allocation3 + $0x2e0] sm:$0xff]
    %v411 = vld [vmem:[#allocation3 + $0x2e8] sm:$0xff]
    %v412 = vld [vmem:[#allocation3 + $0x2f0] sm:$0xff]
    %v413 = vld [vmem:[#allocation3 + $0x2f8] sm:$0xff]
    %v414 = vld [vmem:[#allocation3 + $0x300] sm:$0xff]
    %v415 = vld [vmem:[#allocation3 + $0x308] sm:$0xff]
    %v416 = vld [vmem:[#allocation3 + $0x310] sm:$0xff]
    %v417 = vld [vmem:[#allocation3 + $0x318] sm:$0xff]
    %v418 = vld [vmem:[#allocation3 + $0x320] sm:$0xff]
    %v419 = vld [vmem:[#allocation3 + $0x328] sm:$0xff]
    %v420 = vld [vmem:[#allocation3 + $0x330] sm:$0xff]
    %v421 = vld [vmem:[#allocation3 + $0x338] sm:$0xff]
    %v422 = vld [vmem:[#allocation3 + $0x340] sm:$0xff]
    %v423 = vld [vmem:[#allocation3 + $0x348] sm:$0xff]
    %v424 = vld [vmem:[#allocation3 + $0x350] sm:$0xff]
    %v425 = vld [vmem:[#allocation3 + $0x358] sm:$0xff]
    %v426 = vld [vmem:[#allocation3 + $0x360] sm:$0xff]
    %v427 = vld [vmem:[#allocation3 + $0x368] sm:$0xff]
    %v428 = vld [vmem:[#allocation3 + $0x370] sm:$0xff]
    %v429 = vld [vmem:[#allocation3 + $0x378] sm:$0xff]
    %v430 = vld [vmem:[#allocation3 + $0x380] sm:$0xff]
    %v431 = vld [vmem:[#allocation3 + $0x388] sm:$0xff]
    %v432 = vld [vmem:[#allocation3 + $0x390] sm:$0xff]
    %v433 = vld [vmem:[#allocation3 + $0x398] sm:$0xff]
    %v434 = vld [vmem:[#allocation3 + $0x3a0] sm:$0xff]
    %v435 = vld [vmem:[#allocation3 + $0x3a8] sm:$0xff]
    %v436 = vld [vmem:[#allocation3 + $0x3b0] sm:$0xff]
    %v437 = vld [vmem:[#allocation3 + $0x3b8] sm:$0xff]
    %v438 = vld [vmem:[#allocation3 + $0x3c0] sm:$0xff]
    %v439 = vld [vmem:[#allocation3 + $0x3c8] sm:$0xff]
    %v440 = vld [vmem:[#allocation3 + $0x3d0] sm:$0xff]
    %v441 = vld [vmem:[#allocation3 + $0x3d8] sm:$0xff]
    %v442 = vld [vmem:[#allocation3 + $0x3e0] sm:$0xff]
    %v443 = vld [vmem:[#allocation3 + $0x3e8] sm:$0xff]
    %v444 = vld [vmem:[#allocation3 + $0x3f0] sm:$0xff]
    %v445 = vld [vmem:[#allocation3 + $0x3f8] sm:$0xff]
    %v446 = vld [vmem:[%s4] sm:$0xf]
    %v448 = vperm.slane %v446, 0
    %v449 = vperm.slane %v446, 1
    %v450 = vperm.slane %v446, 2
    %v451 = vperm.slane %v446, 3
    %v456 = vld [vmem:[#allocation2] sm:$0xff]
    %v457 = vld [vmem:[#allocation2 + $0x8] sm:$0xff]
    %v458 = vld [vmem:[#allocation2 + $0x10] sm:$0xff]
    %v459 = vld [vmem:[#allocation2 + $0x18] sm:$0xff]
    %v460 = vxor.u32 %v456, 2147483648
    %v461 = vmul.f32 %v460, 1.442695
    %v462 = vpow.pop %v461
    %v463 = vadd.f32 %v462, 1.0
    %v464 = vrcp.pop %v463
    %v465 = vmul.f32 %v463, %v464
    %v466 = vsub.f32 1.0, %v465
    %v467 = vmul.f32 %v464, %v466
    %v468 = vadd.f32 %v464, %v467
    %vm469 = vweird.f32 %v463
    %vm470 = vweird.f32 %v464
    %vm471 = vmor %vm469, %vm470
    %v472 = vsel %vm471, %v464, %v468
    %v473 = vand.u32 2147483647, %v463
    %vm474 = vcmp.eq.f32.partialorder %v473, 8.507059e+37
    %v475 = vand.u32 %v463, 2147483648
    %v476 = vor.u32 1.1754944e-38, %v475
    %v477 = vsel %vm474, %v476, %v472
    %v478 = vmul.f32 1.0, %v477
    %v479 = vxor.u32 %v457, 2147483648
    %v480 = vmul.f32 %v479, 1.442695
    %v481 = vpow.pop %v480
    %v482 = vadd.f32 %v481, 1.0
    %v483 = vrcp.pop %v482
    %v484 = vmul.f32 %v482, %v483
    %v485 = vsub.f32 1.0, %v484
    %v486 = vmul.f32 %v483, %v485
    %v487 = vadd.f32 %v483, %v486
    %vm488 = vweird.f32 %v482
    %vm489 = vweird.f32 %v483
    %vm490 = vmor %vm488, %vm489
    %v491 = vsel %vm490, %v483, %v487
    %v492 = vand.u32 2147483647, %v482
    %vm493 = vcmp.eq.f32.partialorder %v492, 8.507059e+37
    %v494 = vand.u32 %v482, 2147483648
    %v495 = vor.u32 1.1754944e-38, %v494
    %v496 = vsel %vm493, %v495, %v491
    %v497 = vmul.f32 1.0, %v496
    %v498 = vtanh.pop %v458
    %v499 = vxor.u32 %v459, 2147483648
    %v500 = vmul.f32 %v499, 1.442695
    %v501 = vpow.pop %v500
    %v502 = vadd.f32 %v501, 1.0
    %v503 = vrcp.pop %v502
    %v504 = vmul.f32 %v502, %v503
    %v505 = vsub.f32 1.0, %v504
    %v506 = vmul.f32 %v503, %v505
    %v507 = vadd.f32 %v503, %v506
    %vm508 = vweird.f32 %v502
    %vm509 = vweird.f32 %v503
    %vm510 = vmor %vm508, %vm509
    %v511 = vsel %vm510, %v503, %v507
    %v512 = vand.u32 2147483647, %v502
    %vm513 = vcmp.eq.f32.partialorder %v512, 8.507059e+37
    %v514 = vand.u32 %v502, 2147483648
    %v515 = vor.u32 1.1754944e-38, %v514
    %v516 = vsel %vm513, %v515, %v511
    %v517 = vmul.f32 1.0, %v516
    %v518 = vmul.f32 %v497, 0.0
    %v519 = vmul.f32 %v478, %v498
    %v520 = vadd.f32 %v518, %v519
    %v521 = vtanh.pop %v520
    %v522 = vmul.f32 %v517, %v521
    %v523 = vpack.c.bf16 %v522, %v522
    %v652 = vunpack.c.l.b16 %v318
    %v653 = vunpack.c.h.b16 %v318
    %v654 = vunpack.c.l.b16 %v319
    %v655 = vunpack.c.h.b16 %v319
    %v656 = vunpack.c.l.b16 %v320
    %v657 = vunpack.c.h.b16 %v320
    %v658 = vunpack.c.l.b16 %v321
    %v659 = vunpack.c.h.b16 %v321
    %v660 = vunpack.c.l.b16 %v322
    %v661 = vunpack.c.h.b16 %v322
    %v662 = vunpack.c.l.b16 %v323
    %v663 = vunpack.c.h.b16 %v323
    %v664 = vunpack.c.l.b16 %v324
    %v665 = vunpack.c.h.b16 %v324
    %v666 = vunpack.c.l.b16 %v325
    %v667 = vunpack.c.h.b16 %v325
    %v668 = vunpack.c.l.b16 %v326
    %v669 = vunpack.c.h.b16 %v326
    %v670 = vunpack.c.l.b16 %v327
    %v671 = vunpack.c.h.b16 %v327
    %v672 = vunpack.c.l.b16 %v328
    %v673 = vunpack.c.h.b16 %v328
    %v674 = vunpack.c.l.b16 %v329
    %v675 = vunpack.c.h.b16 %v329
    %v676 = vunpack.c.l.b16 %v330
    %v677 = vunpack.c.h.b16 %v330
    %v678 = vunpack.c.l.b16 %v331
    %v679 = vunpack.c.h.b16 %v331
    %v680 = vunpack.c.l.b16 %v332
    %v681 = vunpack.c.h.b16 %v332
    %v682 = vunpack.c.l.b16 %v333
    %v683 = vunpack.c.h.b16 %v333
    %v684 = vunpack.c.l.b16 %v334
    %v685 = vunpack.c.h.b16 %v334
    %v686 = vunpack.c.l.b16 %v335
    %v687 = vunpack.c.h.b16 %v335
    %v688 = vunpack.c.l.b16 %v336
    %v689 = vunpack.c.h.b16 %v336
    %v690 = vunpack.c.l.b16 %v337
    %v691 = vunpack.c.h.b16 %v337
    %v692 = vunpack.c.l.b16 %v338
    %v693 = vunpack.c.h.b16 %v338
    %v694 = vunpack.c.l.b16 %v339
    %v695 = vunpack.c.h.b16 %v339
    %v696 = vunpack.c.l.b16 %v340
    %v697 = vunpack.c.h.b16 %v340
    %v698 = vunpack.c.l.b16 %v341
    %v699 = vunpack.c.h.b16 %v341
    %v700 = vunpack.c.l.b16 %v342
    %v701 = vunpack.c.h.b16 %v342
    %v702 = vunpack.c.l.b16 %v343
    %v703 = vunpack.c.h.b16 %v343
    %v704 = vunpack.c.l.b16 %v344
    %v705 = vunpack.c.h.b16 %v344
    %v706 = vunpack.c.l.b16 %v345
    %v707 = vunpack.c.h.b16 %v345
    %v708 = vunpack.c.l.b16 %v346
    %v709 = vunpack.c.h.b16 %v346
    %v710 = vunpack.c.l.b16 %v347
    %v711 = vunpack.c.h.b16 %v347
    %v712 = vunpack.c.l.b16 %v348
    %v713 = vunpack.c.h.b16 %v348
    %v714 = vunpack.c.l.b16 %v349
    %v715 = vunpack.c.h.b16 %v349
    %v716 = vunpack.c.l.b16 %v350
    %v717 = vunpack.c.h.b16 %v350
    %v718 = vunpack.c.l.b16 %v351
    %v719 = vunpack.c.h.b16 %v351
    %v720 = vunpack.c.l.b16 %v352
    %v721 = vunpack.c.h.b16 %v352
    %v722 = vunpack.c.l.b16 %v353
    %v723 = vunpack.c.h.b16 %v353
    %v724 = vunpack.c.l.b16 %v354
    %v725 = vunpack.c.h.b16 %v354
    %v726 = vunpack.c.l.b16 %v355
    %v727 = vunpack.c.h.b16 %v355
    %v728 = vunpack.c.l.b16 %v356
    %v729 = vunpack.c.h.b16 %v356
    %v730 = vunpack.c.l.b16 %v357
    %v731 = vunpack.c.h.b16 %v357
    %v732 = vunpack.c.l.b16 %v358
    %v733 = vunpack.c.h.b16 %v358
    %v734 = vunpack.c.l.b16 %v359
    %v735 = vunpack.c.h.b16 %v359
    %v736 = vunpack.c.l.b16 %v360
    %v737 = vunpack.c.h.b16 %v360
    %v738 = vunpack.c.l.b16 %v361
    %v739 = vunpack.c.h.b16 %v361
    %v740 = vunpack.c.l.b16 %v362
    %v741 = vunpack.c.h.b16 %v362
    %v742 = vunpack.c.l.b16 %v363
    %v743 = vunpack.c.h.b16 %v363
    %v744 = vunpack.c.l.b16 %v364
    %v745 = vunpack.c.h.b16 %v364
    %v746 = vunpack.c.l.b16 %v365
    %v747 = vunpack.c.h.b16 %v365
    %v748 = vunpack.c.l.b16 %v366
    %v749 = vunpack.c.h.b16 %v366
    %v750 = vunpack.c.l.b16 %v367
    %v751 = vunpack.c.h.b16 %v367
    %v752 = vunpack.c.l.b16 %v368
    %v753 = vunpack.c.h.b16 %v368
    %v754 = vunpack.c.l.b16 %v369
    %v755 = vunpack.c.h.b16 %v369
    %v756 = vunpack.c.l.b16 %v370
    %v757 = vunpack.c.h.b16 %v370
    %v758 = vunpack.c.l.b16 %v371
    %v759 = vunpack.c.h.b16 %v371
    %v760 = vunpack.c.l.b16 %v372
    %v761 = vunpack.c.h.b16 %v372
    %v762 = vunpack.c.l.b16 %v373
    %v763 = vunpack.c.h.b16 %v373
    %v764 = vunpack.c.l.b16 %v374
    %v765 = vunpack.c.h.b16 %v374
    %v766 = vunpack.c.l.b16 %v375
    %v767 = vunpack.c.h.b16 %v375
    %v768 = vunpack.c.l.b16 %v376
    %v769 = vunpack.c.h.b16 %v376
    %v770 = vunpack.c.l.b16 %v377
    %v771 = vunpack.c.h.b16 %v377
    %v772 = vunpack.c.l.b16 %v378
    %v773 = vunpack.c.h.b16 %v378
    %v774 = vunpack.c.l.b16 %v379
    %v775 = vunpack.c.h.b16 %v379
    %v776 = vunpack.c.l.b16 %v380
    %v777 = vunpack.c.h.b16 %v380
    %v778 = vunpack.c.l.b16 %v381
    %v779 = vunpack.c.h.b16 %v381
    %v780 = vunpack.c.l.b16 %v382
    %v781 = vunpack.c.h.b16 %v382
    %v782 = vunpack.c.l.b16 %v383
    %v783 = vunpack.c.h.b16 %v383
    %v784 = vunpack.c.l.b16 %v384
    %v785 = vunpack.c.h.b16 %v384
    %v786 = vunpack.c.l.b16 %v385
    %v787 = vunpack.c.h.b16 %v385
    %v788 = vunpack.c.l.b16 %v386
    %v789 = vunpack.c.h.b16 %v386
    %v790 = vunpack.c.l.b16 %v387
    %v791 = vunpack.c.h.b16 %v387
    %v792 = vunpack.c.l.b16 %v388
    %v793 = vunpack.c.h.b16 %v388
    %v794 = vunpack.c.l.b16 %v389
    %v795 = vunpack.c.h.b16 %v389
    %v796 = vunpack.c.l.b16 %v390
    %v797 = vunpack.c.h.b16 %v390
    %v798 = vunpack.c.l.b16 %v391
    %v799 = vunpack.c.h.b16 %v391
    %v800 = vunpack.c.l.b16 %v392
    %v801 = vunpack.c.h.b16 %v392
    %v802 = vunpack.c.l.b16 %v393
    %v803 = vunpack.c.h.b16 %v393
    %v804 = vunpack.c.l.b16 %v394
    %v805 = vunpack.c.h.b16 %v394
    %v806 = vunpack.c.l.b16 %v395
    %v807 = vunpack.c.h.b16 %v395
    %v808 = vunpack.c.l.b16 %v396
    %v809 = vunpack.c.h.b16 %v396
    %v810 = vunpack.c.l.b16 %v397
    %v811 = vunpack.c.h.b16 %v397
    %v812 = vunpack.c.l.b16 %v398
    %v813 = vunpack.c.h.b16 %v398
    %v814 = vunpack.c.l.b16 %v399
    %v815 = vunpack.c.h.b16 %v399
    %v816 = vunpack.c.l.b16 %v400
    %v817 = vunpack.c.h.b16 %v400
    %v818 = vunpack.c.l.b16 %v401
    %v819 = vunpack.c.h.b16 %v401
    %v820 = vunpack.c.l.b16 %v402
    %v821 = vunpack.c.h.b16 %v402
    %v822 = vunpack.c.l.b16 %v403
    %v823 = vunpack.c.h.b16 %v403
    %v824 = vunpack.c.l.b16 %v404
    %v825 = vunpack.c.h.b16 %v404
    %v826 = vunpack.c.l.b16 %v405
    %v827 = vunpack.c.h.b16 %v405
    %v828 = vunpack.c.l.b16 %v406
    %v829 = vunpack.c.h.b16 %v406
    %v830 = vunpack.c.l.b16 %v407
    %v831 = vunpack.c.h.b16 %v407
    %v832 = vunpack.c.l.b16 %v408
    %v833 = vunpack.c.h.b16 %v408
    %v834 = vunpack.c.l.b16 %v409
    %v835 = vunpack.c.h.b16 %v409
    %v836 = vunpack.c.l.b16 %v410
    %v837 = vunpack.c.h.b16 %v410
    %v838 = vunpack.c.l.b16 %v411
    %v839 = vunpack.c.h.b16 %v411
    %v840 = vunpack.c.l.b16 %v412
    %v841 = vunpack.c.h.b16 %v412
    %v842 = vunpack.c.l.b16 %v413
    %v843 = vunpack.c.h.b16 %v413
    %v844 = vunpack.c.l.b16 %v414
    %v845 = vunpack.c.h.b16 %v414
    %v846 = vunpack.c.l.b16 %v415
    %v847 = vunpack.c.h.b16 %v415
    %v848 = vunpack.c.l.b16 %v416
    %v849 = vunpack.c.h.b16 %v416
    %v850 = vunpack.c.l.b16 %v417
    %v851 = vunpack.c.h.b16 %v417
    %v852 = vunpack.c.l.b16 %v418
    %v853 = vunpack.c.h.b16 %v418
    %v854 = vunpack.c.l.b16 %v419
    %v855 = vunpack.c.h.b16 %v419
    %v856 = vunpack.c.l.b16 %v420
    %v857 = vunpack.c.h.b16 %v420
    %v858 = vunpack.c.l.b16 %v421
    %v859 = vunpack.c.h.b16 %v421
    %v860 = vunpack.c.l.b16 %v422
    %v861 = vunpack.c.h.b16 %v422
    %v862 = vunpack.c.l.b16 %v423
    %v863 = vunpack.c.h.b16 %v423
    %v864 = vunpack.c.l.b16 %v424
    %v865 = vunpack.c.h.b16 %v424
    %v866 = vunpack.c.l.b16 %v425
    %v867 = vunpack.c.h.b16 %v425
    %v868 = vunpack.c.l.b16 %v426
    %v869 = vunpack.c.h.b16 %v426
    %v870 = vunpack.c.l.b16 %v427
    %v871 = vunpack.c.h.b16 %v427
    %v872 = vunpack.c.l.b16 %v428
    %v873 = vunpack.c.h.b16 %v428
    %v874 = vunpack.c.l.b16 %v429
    %v875 = vunpack.c.h.b16 %v429
    %v876 = vunpack.c.l.b16 %v430
    %v877 = vunpack.c.h.b16 %v430
    %v878 = vunpack.c.l.b16 %v431
    %v879 = vunpack.c.h.b16 %v431
    %v880 = vunpack.c.l.b16 %v432
    %v881 = vunpack.c.h.b16 %v432
    %v882 = vunpack.c.l.b16 %v433
    %v883 = vunpack.c.h.b16 %v433
    %v884 = vunpack.c.l.b16 %v434
    %v885 = vunpack.c.h.b16 %v434
    %v886 = vunpack.c.l.b16 %v435
    %v887 = vunpack.c.h.b16 %v435
    %v888 = vunpack.c.l.b16 %v436
    %v889 = vunpack.c.h.b16 %v436
    %v890 = vunpack.c.l.b16 %v437
    %v891 = vunpack.c.h.b16 %v437
    %v892 = vunpack.c.l.b16 %v438
    %v893 = vunpack.c.h.b16 %v438
    %v894 = vunpack.c.l.b16 %v439
    %v895 = vunpack.c.h.b16 %v439
    %v896 = vunpack.c.l.b16 %v440
    %v897 = vunpack.c.h.b16 %v440
    %v898 = vunpack.c.l.b16 %v441
    %v899 = vunpack.c.h.b16 %v441
    %v900 = vunpack.c.l.b16 %v442
    %v901 = vunpack.c.h.b16 %v442
    %v902 = vunpack.c.l.b16 %v443
    %v903 = vunpack.c.h.b16 %v443
    %v904 = vunpack.c.l.b16 %v444
    %v905 = vunpack.c.h.b16 %v444
    %v906 = vunpack.c.l.b16 %v445
    %v907 = vunpack.c.h.b16 %v445
    %v908 = vpack.c.b16 %v660, %v652
    %v909 = vpack.c.b16 %v661, %v653
    %v910 = vpack.c.b16 %v662, %v654
    %v911 = vpack.c.b16 %v663, %v655
    %v912 = vpack.c.b16 %v664, %v656
    %v913 = vpack.c.b16 %v665, %v657
    %v914 = vpack.c.b16 %v666, %v658
    %v915 = vpack.c.b16 %v667, %v659
    %v916 = vpack.c.b16 %v676, %v668
    %v917 = vpack.c.b16 %v677, %v669
    %v918 = vpack.c.b16 %v678, %v670
    %v919 = vpack.c.b16 %v679, %v671
    %v920 = vpack.c.b16 %v680, %v672
    %v921 = vpack.c.b16 %v681, %v673
    %v922 = vpack.c.b16 %v682, %v674
    %v923 = vpack.c.b16 %v683, %v675
    %v924 = vpack.c.b16 %v692, %v684
    %v925 = vpack.c.b16 %v693, %v685
    %v926 = vpack.c.b16 %v694, %v686
    %v927 = vpack.c.b16 %v695, %v687
    %v928 = vpack.c.b16 %v696, %v688
    %v929 = vpack.c.b16 %v697, %v689
    %v930 = vpack.c.b16 %v698, %v690
    %v931 = vpack.c.b16 %v699, %v691
    %v932 = vpack.c.b16 %v708, %v700
    %v933 = vpack.c.b16 %v709, %v701
    %v934 = vpack.c.b16 %v710, %v702
    %v935 = vpack.c.b16 %v711, %v703
    %v936 = vpack.c.b16 %v712, %v704
    %v937 = vpack.c.b16 %v713, %v705
    %v938 = vpack.c.b16 %v714, %v706
    %v939 = vpack.c.b16 %v715, %v707
    %v940 = vpack.c.b16 %v724, %v716
    %v941 = vpack.c.b16 %v725, %v717
    %v942 = vpack.c.b16 %v726, %v718
    %v943 = vpack.c.b16 %v727, %v719
    %v944 = vpack.c.b16 %v728, %v720
    %v945 = vpack.c.b16 %v729, %v721
    %v946 = vpack.c.b16 %v730, %v722
    %v947 = vpack.c.b16 %v731, %v723
    %v948 = vpack.c.b16 %v740, %v732
    %v949 = vpack.c.b16 %v741, %v733
    %v950 = vpack.c.b16 %v742, %v734
    %v951 = vpack.c.b16 %v743, %v735
    %v952 = vpack.c.b16 %v744, %v736
    %v953 = vpack.c.b16 %v745, %v737
    %v954 = vpack.c.b16 %v746, %v738
    %v955 = vpack.c.b16 %v747, %v739
    %v956 = vpack.c.b16 %v756, %v748
    %v957 = vpack.c.b16 %v757, %v749
    %v958 = vpack.c.b16 %v758, %v750
    %v959 = vpack.c.b16 %v759, %v751
    %v960 = vpack.c.b16 %v760, %v752
    %v961 = vpack.c.b16 %v761, %v753
    %v962 = vpack.c.b16 %v762, %v754
    %v963 = vpack.c.b16 %v763, %v755
    %v964 = vpack.c.b16 %v772, %v764
    %v965 = vpack.c.b16 %v773, %v765
    %v966 = vpack.c.b16 %v774, %v766
    %v967 = vpack.c.b16 %v775, %v767
    %v968 = vpack.c.b16 %v776, %v768
    %v969 = vpack.c.b16 %v777, %v769
    %v970 = vpack.c.b16 %v778, %v770
    %v971 = vpack.c.b16 %v779, %v771
    %v972 = vpack.c.b16 %v788, %v780
    %v973 = vpack.c.b16 %v789, %v781
    %v974 = vpack.c.b16 %v790, %v782
    %v975 = vpack.c.b16 %v791, %v783
    %v976 = vpack.c.b16 %v792, %v784
    %v977 = vpack.c.b16 %v793, %v785
    %v978 = vpack.c.b16 %v794, %v786
    %v979 = vpack.c.b16 %v795, %v787
    %v980 = vpack.c.b16 %v804, %v796
    %v981 = vpack.c.b16 %v805, %v797
    %v982 = vpack.c.b16 %v806, %v798
    %v983 = vpack.c.b16 %v807, %v799
    %v984 = vpack.c.b16 %v808, %v800
    %v985 = vpack.c.b16 %v809, %v801
    %v986 = vpack.c.b16 %v810, %v802
    %v987 = vpack.c.b16 %v811, %v803
    %v988 = vpack.c.b16 %v820, %v812
    %v989 = vpack.c.b16 %v821, %v813
    %v990 = vpack.c.b16 %v822, %v814
    %v991 = vpack.c.b16 %v823, %v815
    %v992 = vpack.c.b16 %v824, %v816
    %v993 = vpack.c.b16 %v825, %v817
    %v994 = vpack.c.b16 %v826, %v818
    %v995 = vpack.c.b16 %v827, %v819
    %v996 = vpack.c.b16 %v836, %v828
    %v997 = vpack.c.b16 %v837, %v829
    %v998 = vpack.c.b16 %v838, %v830
    %v999 = vpack.c.b16 %v839, %v831
    %v1000 = vpack.c.b16 %v840, %v832
    %v1001 = vpack.c.b16 %v841, %v833
    %v1002 = vpack.c.b16 %v842, %v834
    %v1003 = vpack.c.b16 %v843, %v835
    %v1004 = vpack.c.b16 %v852, %v844
    %v1005 = vpack.c.b16 %v853, %v845
    %v1006 = vpack.c.b16 %v854, %v846
    %v1007 = vpack.c.b16 %v855, %v847
    %v1008 = vpack.c.b16 %v856, %v848
    %v1009 = vpack.c.b16 %v857, %v849
    %v1010 = vpack.c.b16 %v858, %v850
    %v1011 = vpack.c.b16 %v859, %v851
    %v1012 = vpack.c.b16 %v868, %v860
    %v1013 = vpack.c.b16 %v869, %v861
    %v1014 = vpack.c.b16 %v870, %v862
    %v1015 = vpack.c.b16 %v871, %v863
    %v1016 = vpack.c.b16 %v872, %v864
    %v1017 = vpack.c.b16 %v873, %v865
    %v1018 = vpack.c.b16 %v874, %v866
    %v1019 = vpack.c.b16 %v875, %v867
    %v1020 = vpack.c.b16 %v884, %v876
    %v1021 = vpack.c.b16 %v885, %v877
    %v1022 = vpack.c.b16 %v886, %v878
    %v1023 = vpack.c.b16 %v887, %v879
    %v1024 = vpack.c.b16 %v888, %v880
    %v1025 = vpack.c.b16 %v889, %v881
    %v1026 = vpack.c.b16 %v890, %v882
    %v1027 = vpack.c.b16 %v891, %v883
    %v1028 = vpack.c.b16 %v900, %v892
    %v1029 = vpack.c.b16 %v901, %v893
    %v1030 = vpack.c.b16 %v902, %v894
    %v1031 = vpack.c.b16 %v903, %v895
    %v1032 = vpack.c.b16 %v904, %v896
    %v1033 = vpack.c.b16 %v905, %v897
    %v1034 = vpack.c.b16 %v906, %v898
    %v1035 = vpack.c.b16 %v907, %v899
    %1164 = vmatpush.bf16.msra.mxu0 %v964
    %1165 = vmatpush.bf16.msra.mxu0 %v956
    %1166 = vmatpush.bf16.msra.mxu0 %v948
    %1167 = vmatpush.bf16.msra.mxu0 %v940
    %1168 = vmatpush.bf16.msra.mxu0 %v932
    %1169 = vmatpush.bf16.msra.mxu0 %v924
    %1170 = vmatpush.bf16.msra.mxu0 %v916
    %1171 = vmatpush.bf16.msra.mxu0 %v908
    %1172 = vmatmul.bf16.gmra.mxu0 %v523
    %v1173 = vpop.f32.mrf.mxu0
    %v1174 = vadd.f32 0.0, %v1173
    %v1175 = vpop.f32.mrf.mxu0
    %1176 = vdwg.mxu0
    %1177 = vmatpush.bf16.msra.mxu0 %v1028
    %1178 = vmatpush.bf16.msra.mxu0 %v1020
    %1179 = vmatpush.bf16.msra.mxu0 %v1012
    %1180 = vmatpush.bf16.msra.mxu0 %v1004
    %1181 = vmatpush.bf16.msra.mxu0 %v996
    %1182 = vmatpush.bf16.msra.mxu0 %v988
    %1183 = vmatpush.bf16.msra.mxu0 %v980
    %1184 = vmatpush.bf16.msra.mxu0 %v972
    %1185 = vmatmul.bf16.gmra.mxu0 0
    %v1186 = vpop.f32.mrf.mxu0
    %v1187 = vadd.f32 %v1174, %v1186
    %v1188 = vpop.f32.mrf.mxu0
    %1189 = vdwg.mxu0
    %1190 = vmatpush.bf16.msra.mxu0 %v965
    %1191 = vmatpush.bf16.msra.mxu0 %v957
    %1192 = vmatpush.bf16.msra.mxu0 %v949
    %1193 = vmatpush.bf16.msra.mxu0 %v941
    %1194 = vmatpush.bf16.msra.mxu0 %v933
    %1195 = vmatpush.bf16.msra.mxu0 %v925
    %1196 = vmatpush.bf16.msra.mxu0 %v917
    %1197 = vmatpush.bf16.msra.mxu0 %v909
    %1198 = vmatmul.bf16.gmra.mxu0 %v523
    %v1199 = vpop.f32.mrf.mxu0
    %v1200 = vadd.f32 0.0, %v1199
    %v1201 = vpop.f32.mrf.mxu0
    %1202 = vdwg.mxu0
    %1203 = vmatpush.bf16.msra.mxu0 %v1029
    %1204 = vmatpush.bf16.msra.mxu0 %v1021
    %1205 = vmatpush.bf16.msra.mxu0 %v1013
    %1206 = vmatpush.bf16.msra.mxu0 %v1005
    %1207 = vmatpush.bf16.msra.mxu0 %v997
    %1208 = vmatpush.bf16.msra.mxu0 %v989
    %1209 = vmatpush.bf16.msra.mxu0 %v981
    %1210 = vmatpush.bf16.msra.mxu0 %v973
    %1211 = vmatmul.bf16.gmra.mxu0 0
    %v1212 = vpop.f32.mrf.mxu0
    %v1213 = vadd.f32 %v1200, %v1212
    %v1214 = vpop.f32.mrf.mxu0
    %1215 = vdwg.mxu0
    %1216 = vmatpush.bf16.msra.mxu0 %v966
    %1217 = vmatpush.bf16.msra.mxu0 %v958
    %1218 = vmatpush.bf16.msra.mxu0 %v950
    %1219 = vmatpush.bf16.msra.mxu0 %v942
    %1220 = vmatpush.bf16.msra.mxu0 %v934
    %1221 = vmatpush.bf16.msra.mxu0 %v926
    %1222 = vmatpush.bf16.msra.mxu0 %v918
    %1223 = vmatpush.bf16.msra.mxu0 %v910
    %1224 = vmatmul.bf16.gmra.mxu0 %v523
    %v1225 = vpop.f32.mrf.mxu0
    %v1226 = vadd.f32 0.0, %v1225
    %v1227 = vpop.f32.mrf.mxu0
    %1228 = vdwg.mxu0
    %1229 = vmatpush.bf16.msra.mxu0 %v1030
    %1230 = vmatpush.bf16.msra.mxu0 %v1022
    %1231 = vmatpush.bf16.msra.mxu0 %v1014
    %1232 = vmatpush.bf16.msra.mxu0 %v1006
    %1233 = vmatpush.bf16.msra.mxu0 %v998
    %1234 = vmatpush.bf16.msra.mxu0 %v990
    %1235 = vmatpush.bf16.msra.mxu0 %v982
    %1236 = vmatpush.bf16.msra.mxu0 %v974
    %1237 = vmatmul.bf16.gmra.mxu0 0
    %v1238 = vpop.f32.mrf.mxu0
    %v1239 = vadd.f32 %v1226, %v1238
    %v1240 = vpop.f32.mrf.mxu0
    %1241 = vdwg.mxu0
    %1242 = vmatpush.bf16.msra.mxu0 %v967
    %1243 = vmatpush.bf16.msra.mxu0 %v959
    %1244 = vmatpush.bf16.msra.mxu0 %v951
    %1245 = vmatpush.bf16.msra.mxu0 %v943
    %1246 = vmatpush.bf16.msra.mxu0 %v935
    %1247 = vmatpush.bf16.msra.mxu0 %v927
    %1248 = vmatpush.bf16.msra.mxu0 %v919
    %1249 = vmatpush.bf16.msra.mxu0 %v911
    %1250 = vmatmul.bf16.gmra.mxu0 %v523
    %v1251 = vpop.f32.mrf.mxu0
    %v1252 = vadd.f32 0.0, %v1251
    %v1253 = vpop.f32.mrf.mxu0
    %1254 = vdwg.mxu0
    %1255 = vmatpush.bf16.msra.mxu0 %v1031
    %1256 = vmatpush.bf16.msra.mxu0 %v1023
    %1257 = vmatpush.bf16.msra.mxu0 %v1015
    %1258 = vmatpush.bf16.msra.mxu0 %v1007
    %1259 = vmatpush.bf16.msra.mxu0 %v999
    %1260 = vmatpush.bf16.msra.mxu0 %v991
    %1261 = vmatpush.bf16.msra.mxu0 %v983
    %1262 = vmatpush.bf16.msra.mxu0 %v975
    %1263 = vmatmul.bf16.gmra.mxu0 0
    %v1264 = vpop.f32.mrf.mxu0
    %v1265 = vadd.f32 %v1252, %v1264
    %v1266 = vpop.f32.mrf.mxu0
    %1267 = vdwg.mxu0
    %1268 = vmatpush.bf16.msra.mxu0 %v968
    %1269 = vmatpush.bf16.msra.mxu0 %v960
    %1270 = vmatpush.bf16.msra.mxu0 %v952
    %1271 = vmatpush.bf16.msra.mxu0 %v944
    %1272 = vmatpush.bf16.msra.mxu0 %v936
    %1273 = vmatpush.bf16.msra.mxu0 %v928
    %1274 = vmatpush.bf16.msra.mxu0 %v920
    %1275 = vmatpush.bf16.msra.mxu0 %v912
    %1276 = vmatmul.bf16.gmra.mxu0 %v523
    %v1277 = vpop.f32.mrf.mxu0
    %v1278 = vadd.f32 0.0, %v1277
    %v1279 = vpop.f32.mrf.mxu0
    %1280 = vdwg.mxu0
    %1281 = vmatpush.bf16.msra.mxu0 %v1032
    %1282 = vmatpush.bf16.msra.mxu0 %v1024
    %1283 = vmatpush.bf16.msra.mxu0 %v1016
    %1284 = vmatpush.bf16.msra.mxu0 %v1008
    %1285 = vmatpush.bf16.msra.mxu0 %v1000
    %1286 = vmatpush.bf16.msra.mxu0 %v992
    %1287 = vmatpush.bf16.msra.mxu0 %v984
    %1288 = vmatpush.bf16.msra.mxu0 %v976
    %1289 = vmatmul.bf16.gmra.mxu0 0
    %v1290 = vpop.f32.mrf.mxu0
    %v1291 = vadd.f32 %v1278, %v1290
    %v1292 = vpop.f32.mrf.mxu0
    %1293 = vdwg.mxu0
    %1294 = vmatpush.bf16.msra.mxu0 %v969
    %1295 = vmatpush.bf16.msra.mxu0 %v961
    %1296 = vmatpush.bf16.msra.mxu0 %v953
    %1297 = vmatpush.bf16.msra.mxu0 %v945
    %1298 = vmatpush.bf16.msra.mxu0 %v937
    %1299 = vmatpush.bf16.msra.mxu0 %v929
    %1300 = vmatpush.bf16.msra.mxu0 %v921
    %1301 = vmatpush.bf16.msra.mxu0 %v913
    %1302 = vmatmul.bf16.gmra.mxu0 %v523
    %v1303 = vpop.f32.mrf.mxu0
    %v1304 = vadd.f32 0.0, %v1303
    %v1305 = vpop.f32.mrf.mxu0
    %1306 = vdwg.mxu0
    %1307 = vmatpush.bf16.msra.mxu0 %v1033
    %1308 = vmatpush.bf16.msra.mxu0 %v1025
    %1309 = vmatpush.bf16.msra.mxu0 %v1017
    %1310 = vmatpush.bf16.msra.mxu0 %v1009
    %1311 = vmatpush.bf16.msra.mxu0 %v1001
    %1312 = vmatpush.bf16.msra.mxu0 %v993
    %1313 = vmatpush.bf16.msra.mxu0 %v985
    %1314 = vmatpush.bf16.msra.mxu0 %v977
    %1315 = vmatmul.bf16.gmra.mxu0 0
    %v1316 = vpop.f32.mrf.mxu0
    %v1317 = vadd.f32 %v1304, %v1316
    %v1318 = vpop.f32.mrf.mxu0
    %1319 = vdwg.mxu0
    %1320 = vmatpush.bf16.msra.mxu0 %v970
    %1321 = vmatpush.bf16.msra.mxu0 %v962
    %1322 = vmatpush.bf16.msra.mxu0 %v954
    %1323 = vmatpush.bf16.msra.mxu0 %v946
    %1324 = vmatpush.bf16.msra.mxu0 %v938
    %1325 = vmatpush.bf16.msra.mxu0 %v930
    %1326 = vmatpush.bf16.msra.mxu0 %v922
    %1327 = vmatpush.bf16.msra.mxu0 %v914
    %1328 = vmatmul.bf16.gmra.mxu0 %v523
    %v1329 = vpop.f32.mrf.mxu0
    %v1330 = vadd.f32 0.0, %v1329
    %v1331 = vpop.f32.mrf.mxu0
    %1332 = vdwg.mxu0
    %1333 = vmatpush.bf16.msra.mxu0 %v1034
    %1334 = vmatpush.bf16.msra.mxu0 %v1026
    %1335 = vmatpush.bf16.msra.mxu0 %v1018
    %1336 = vmatpush.bf16.msra.mxu0 %v1010
    %1337 = vmatpush.bf16.msra.mxu0 %v1002
    %1338 = vmatpush.bf16.msra.mxu0 %v994
    %1339 = vmatpush.bf16.msra.mxu0 %v986
    %1340 = vmatpush.bf16.msra.mxu0 %v978
    %1341 = vmatmul.bf16.gmra.mxu0 0
    %v1342 = vpop.f32.mrf.mxu0
    %v1343 = vadd.f32 %v1330, %v1342
    %v1344 = vpop.f32.mrf.mxu0
    %1345 = vdwg.mxu0
    %1346 = vmatpush.bf16.msra.mxu0 %v971
    %1347 = vmatpush.bf16.msra.mxu0 %v963
    %1348 = vmatpush.bf16.msra.mxu0 %v955
    %1349 = vmatpush.bf16.msra.mxu0 %v947
    %1350 = vmatpush.bf16.msra.mxu0 %v939
    %1351 = vmatpush.bf16.msra.mxu0 %v931
    %1352 = vmatpush.bf16.msra.mxu0 %v923
    %1353 = vmatpush.bf16.msra.mxu0 %v915
    %1354 = vmatmul.bf16.gmra.mxu0 %v523
    %v1355 = vpop.f32.mrf.mxu0
    %v1356 = vadd.f32 0.0, %v1355
    %v1357 = vpop.f32.mrf.mxu0
    %1358 = vdwg.mxu0
    %1359 = vmatpush.bf16.msra.mxu0 %v1035
    %1360 = vmatpush.bf16.msra.mxu0 %v1027
    %1361 = vmatpush.bf16.msra.mxu0 %v1019
    %1362 = vmatpush.bf16.msra.mxu0 %v1011
    %1363 = vmatpush.bf16.msra.mxu0 %v1003
    %1364 = vmatpush.bf16.msra.mxu0 %v995
    %1365 = vmatpush.bf16.msra.mxu0 %v987
    %1366 = vmatpush.bf16.msra.mxu0 %v979
    %1367 = vmatmul.bf16.gmra.mxu0 0
    %v1368 = vpop.f32.mrf.mxu0
    %v1369 = vadd.f32 %v1356, %v1368
    %v1370 = vpop.f32.mrf.mxu0
    %1371 = vdwg.mxu0
    %v1372 = vadd.f32 %v1291, %v448
    %v1373 = vadd.f32 %v1317, %v449
    %v1374 = vadd.f32 %v1343, %v450
    %v1375 = vadd.f32 %v1369, %v451
    %v1376 = vxor.u32 %v1372, 2147483648
    %v1377 = vmul.f32 %v1376, 1.442695
    %v1378 = vpow.pop %v1377
    %v1379 = vadd.f32 %v1378, 1.0
    %v1380 = vrcp.pop %v1379
    %v1381 = vmul.f32 %v1379, %v1380
    %v1382 = vsub.f32 1.0, %v1381
    %v1383 = vmul.f32 %v1380, %v1382
    %v1384 = vadd.f32 %v1380, %v1383
    %vm1385 = vweird.f32 %v1379
    %vm1386 = vweird.f32 %v1380
    %vm1387 = vmor %vm1385, %vm1386
    %v1388 = vsel %vm1387, %v1380, %v1384
    %v1389 = vand.u32 2147483647, %v1379
    %vm1390 = vcmp.eq.f32.partialorder %v1389, 8.507059e+37
    %v1391 = vand.u32 %v1379, 2147483648
    %v1392 = vor.u32 1.1754944e-38, %v1391
    %v1393 = vsel %vm1390, %v1392, %v1388
    %v1394 = vmul.f32 1.0, %v1393
    %v1395 = vxor.u32 %v1373, 2147483648
    %v1396 = vmul.f32 %v1395, 1.442695
    %v1397 = vpow.pop %v1396
    %v1398 = vadd.f32 %v1397, 1.0
    %v1399 = vrcp.pop %v1398
    %v1400 = vmul.f32 %v1398, %v1399
    %v1401 = vsub.f32 1.0, %v1400
    %v1402 = vmul.f32 %v1399, %v1401
    %v1403 = vadd.f32 %v1399, %v1402
    %vm1404 = vweird.f32 %v1398
    %vm1405 = vweird.f32 %v1399
    %vm1406 = vmor %vm1404, %vm1405
    %v1407 = vsel %vm1406, %v1399, %v1403
    %v1408 = vand.u32 2147483647, %v1398
    %vm1409 = vcmp.eq.f32.partialorder %v1408, 8.507059e+37
    %v1410 = vand.u32 %v1398, 2147483648
    %v1411 = vor.u32 1.1754944e-38, %v1410
    %v1412 = vsel %vm1409, %v1411, %v1407
    %v1413 = vmul.f32 1.0, %v1412
    %v1414 = vtanh.pop %v1374
    %v1415 = vxor.u32 %v1375, 2147483648
    %v1416 = vmul.f32 %v1415, 1.442695
    %v1417 = vpow.pop %v1416
    %v1418 = vadd.f32 %v1417, 1.0
    %v1419 = vrcp.pop %v1418
    %v1420 = vmul.f32 %v1418, %v1419
    %v1421 = vsub.f32 1.0, %v1420
    %v1422 = vmul.f32 %v1419, %v1421
    %v1423 = vadd.f32 %v1419, %v1422
    %vm1424 = vweird.f32 %v1418
    %vm1425 = vweird.f32 %v1419
    %vm1426 = vmor %vm1424, %vm1425
    %v1427 = vsel %vm1426, %v1419, %v1423
    %v1428 = vand.u32 2147483647, %v1418
    %vm1429 = vcmp.eq.f32.partialorder %v1428, 8.507059e+37
    %v1430 = vand.u32 %v1418, 2147483648
    %v1431 = vor.u32 1.1754944e-38, %v1430
    %v1432 = vsel %vm1429, %v1431, %v1427
    %v1433 = vmul.f32 1.0, %v1432
    %v1434 = vmul.f32 %v1413, 0.0
    %v1435 = vmul.f32 %v1394, %v1414
    %v1436 = vadd.f32 %v1434, %v1435
    %v1437 = vtanh.pop %v1436
    %v1438 = vmul.f32 %v1433, %v1437
    %v1439 = vpack.c.bf16 %v1438, %v1438
    %v1440 = vld [vmem:[#allocation2 + $0x20] sm:$0xff]
    %v1441 = vld [vmem:[#allocation2 + $0x28] sm:$0xff]
    %v1442 = vld [vmem:[#allocation2 + $0x30] sm:$0xff]
    %v1443 = vld [vmem:[#allocation2 + $0x38] sm:$0xff]
    %v1444 = vadd.f32 %v1440, %v1187
    %v1445 = vadd.f32 %v1441, %v1213
    %v1446 = vadd.f32 %v1442, %v1239
    %v1447 = vadd.f32 %v1443, %v1265
    %v1448 = vxor.u32 %v1444, 2147483648
    %v1449 = vmul.f32 %v1448, 1.442695
    %v1450 = vpow.pop %v1449
    %v1451 = vadd.f32 %v1450, 1.0
    %v1452 = vrcp.pop %v1451
    %v1453 = vmul.f32 %v1451, %v1452
    %v1454 = vsub.f32 1.0, %v1453
    %v1455 = vmul.f32 %v1452, %v1454
    %v1456 = vadd.f32 %v1452, %v1455
    %vm1457 = vweird.f32 %v1451
    %vm1458 = vweird.f32 %v1452
    %vm1459 = vmor %vm1457, %vm1458
    %v1460 = vsel %vm1459, %v1452, %v1456
    %v1461 = vand.u32 2147483647, %v1451
    %vm1462 = vcmp.eq.f32.partialorder %v1461, 8.507059e+37
    %v1463 = vand.u32 %v1451, 2147483648
    %v1464 = vor.u32 1.1754944e-38, %v1463
    %v1465 = vsel %vm1462, %v1464, %v1460
    %v1466 = vmul.f32 1.0, %v1465
    %v1467 = vxor.u32 %v1445, 2147483648
    %v1468 = vmul.f32 %v1467, 1.442695
    %v1469 = vpow.pop %v1468
    %v1470 = vadd.f32 %v1469, 1.0
    %v1471 = vrcp.pop %v1470
    %v1472 = vmul.f32 %v1470, %v1471
    %v1473 = vsub.f32 1.0, %v1472
    %v1474 = vmul.f32 %v1471, %v1473
    %v1475 = vadd.f32 %v1471, %v1474
    %vm1476 = vweird.f32 %v1470
    %vm1477 = vweird.f32 %v1471
    %vm1478 = vmor %vm1476, %vm1477
    %v1479 = vsel %vm1478, %v1471, %v1475
    %v1480 = vand.u32 2147483647, %v1470
    %vm1481 = vcmp.eq.f32.partialorder %v1480, 8.507059e+37
    %v1482 = vand.u32 %v1470, 2147483648
    %v1483 = vor.u32 1.1754944e-38, %v1482
    %v1484 = vsel %vm1481, %v1483, %v1479
    %v1485 = vmul.f32 1.0, %v1484
    %v1486 = vtanh.pop %v1446
    %v1487 = vxor.u32 %v1447, 2147483648
    %v1488 = vmul.f32 %v1487, 1.442695
    %v1489 = vpow.pop %v1488
    %v1490 = vadd.f32 %v1489, 1.0
    %v1491 = vrcp.pop %v1490
    %v1492 = vmul.f32 %v1490, %v1491
    %v1493 = vsub.f32 1.0, %v1492
    %v1494 = vmul.f32 %v1491, %v1493
    %v1495 = vadd.f32 %v1491, %v1494
    %vm1496 = vweird.f32 %v1490
    %vm1497 = vweird.f32 %v1491
    %vm1498 = vmor %vm1496, %vm1497
    %v1499 = vsel %vm1498, %v1491, %v1495
    %v1500 = vand.u32 2147483647, %v1490
    %vm1501 = vcmp.eq.f32.partialorder %v1500, 8.507059e+37
    %v1502 = vand.u32 %v1490, 2147483648
    %v1503 = vor.u32 1.1754944e-38, %v1502
    %v1504 = vsel %vm1501, %v1503, %v1499
    %v1505 = vmul.f32 1.0, %v1504
    %v1506 = vmul.f32 %v1485, %v520
    %v1507 = vmul.f32 %v1466, %v1486
    %v1508 = vadd.f32 %v1506, %v1507
    %v1509 = vtanh.pop %v1508
    %v1510 = vmul.f32 %v1505, %v1509
    %v1511 = vpack.c.bf16 %v1510, %v1510
    %1512 = vmatpush.bf16.msra.mxu0 %v964
    %1513 = vmatpush.bf16.msra.mxu0 %v956
    %1514 = vmatpush.bf16.msra.mxu0 %v948
    %1515 = vmatpush.bf16.msra.mxu0 %v940
    %1516 = vmatpush.bf16.msra.mxu0 %v932
    %1517 = vmatpush.bf16.msra.mxu0 %v924
    %1518 = vmatpush.bf16.msra.mxu0 %v916
    %1519 = vmatpush.bf16.msra.mxu0 %v908
    %1520 = vmatmul.bf16.gmra.mxu0 %v1511
    %v1521 = vpop.f32.mrf.mxu0
    %v1522 = vadd.f32 0.0, %v1521
    %v1523 = vpop.f32.mrf.mxu0
    %1524 = vdwg.mxu0
    %1525 = vmatpush.bf16.msra.mxu0 %v1028
    %1526 = vmatpush.bf16.msra.mxu0 %v1020
    %1527 = vmatpush.bf16.msra.mxu0 %v1012
    %1528 = vmatpush.bf16.msra.mxu0 %v1004
    %1529 = vmatpush.bf16.msra.mxu0 %v996
    %1530 = vmatpush.bf16.msra.mxu0 %v988
    %1531 = vmatpush.bf16.msra.mxu0 %v980
    %1532 = vmatpush.bf16.msra.mxu0 %v972
    %1533 = vmatmul.bf16.gmra.mxu0 %v1439
    %v1534 = vpop.f32.mrf.mxu0
    %v1535 = vadd.f32 %v1522, %v1534
    %v1536 = vpop.f32.mrf.mxu0
    %1537 = vdwg.mxu0
    %1538 = vmatpush.bf16.msra.mxu0 %v965
    %1539 = vmatpush.bf16.msra.mxu0 %v957
    %1540 = vmatpush.bf16.msra.mxu0 %v949
    %1541 = vmatpush.bf16.msra.mxu0 %v941
    %1542 = vmatpush.bf16.msra.mxu0 %v933
    %1543 = vmatpush.bf16.msra.mxu0 %v925
    %1544 = vmatpush.bf16.msra.mxu0 %v917
    %1545 = vmatpush.bf16.msra.mxu0 %v909
    %1546 = vmatmul.bf16.gmra.mxu0 %v1511
    %v1547 = vpop.f32.mrf.mxu0
    %v1548 = vadd.f32 0.0, %v1547
    %v1549 = vpop.f32.mrf.mxu0
    %1550 = vdwg.mxu0
    %1551 = vmatpush.bf16.msra.mxu0 %v1029
    %1552 = vmatpush.bf16.msra.mxu0 %v1021
    %1553 = vmatpush.bf16.msra.mxu0 %v1013
    %1554 = vmatpush.bf16.msra.mxu0 %v1005
    %1555 = vmatpush.bf16.msra.mxu0 %v997
    %1556 = vmatpush.bf16.msra.mxu0 %v989
    %1557 = vmatpush.bf16.msra.mxu0 %v981
    %1558 = vmatpush.bf16.msra.mxu0 %v973
    %1559 = vmatmul.bf16.gmra.mxu0 %v1439
    %v1560 = vpop.f32.mrf.mxu0
    %v1561 = vadd.f32 %v1548, %v1560
    %v1562 = vpop.f32.mrf.mxu0
    %1563 = vdwg.mxu0
    %1564 = vmatpush.bf16.msra.mxu0 %v966
    %1565 = vmatpush.bf16.msra.mxu0 %v958
    %1566 = vmatpush.bf16.msra.mxu0 %v950
    %1567 = vmatpush.bf16.msra.mxu0 %v942
    %1568 = vmatpush.bf16.msra.mxu0 %v934
    %1569 = vmatpush.bf16.msra.mxu0 %v926
    %1570 = vmatpush.bf16.msra.mxu0 %v918
    %1571 = vmatpush.bf16.msra.mxu0 %v910
    %1572 = vmatmul.bf16.gmra.mxu0 %v1511
    %v1573 = vpop.f32.mrf.mxu0
    %v1574 = vadd.f32 0.0, %v1573
    %v1575 = vpop.f32.mrf.mxu0
    %1576 = vdwg.mxu0
    %1577 = vmatpush.bf16.msra.mxu0 %v1030
    %1578 = vmatpush.bf16.msra.mxu0 %v1022
    %1579 = vmatpush.bf16.msra.mxu0 %v1014
    %1580 = vmatpush.bf16.msra.mxu0 %v1006
    %1581 = vmatpush.bf16.msra.mxu0 %v998
    %1582 = vmatpush.bf16.msra.mxu0 %v990
    %1583 = vmatpush.bf16.msra.mxu0 %v982
    %1584 = vmatpush.bf16.msra.mxu0 %v974
    %1585 = vmatmul.bf16.gmra.mxu0 %v1439
    %v1586 = vpop.f32.mrf.mxu0
    %v1587 = vadd.f32 %v1574, %v1586
    %v1588 = vpop.f32.mrf.mxu0
    %1589 = vdwg.mxu0
    %1590 = vmatpush.bf16.msra.mxu0 %v967
    %1591 = vmatpush.bf16.msra.mxu0 %v959
    %1592 = vmatpush.bf16.msra.mxu0 %v951
    %1593 = vmatpush.bf16.msra.mxu0 %v943
    %1594 = vmatpush.bf16.msra.mxu0 %v935
    %1595 = vmatpush.bf16.msra.mxu0 %v927
    %1596 = vmatpush.bf16.msra.mxu0 %v919
    %1597 = vmatpush.bf16.msra.mxu0 %v911
    %1598 = vmatmul.bf16.gmra.mxu0 %v1511
    %v1599 = vpop.f32.mrf.mxu0
    %v1600 = vadd.f32 0.0, %v1599
    %v1601 = vpop.f32.mrf.mxu0
    %1602 = vdwg.mxu0
    %1603 = vmatpush.bf16.msra.mxu0 %v1031
    %1604 = vmatpush.bf16.msra.mxu0 %v1023
    %1605 = vmatpush.bf16.msra.mxu0 %v1015
    %1606 = vmatpush.bf16.msra.mxu0 %v1007
    %1607 = vmatpush.bf16.msra.mxu0 %v999
    %1608 = vmatpush.bf16.msra.mxu0 %v991
    %1609 = vmatpush.bf16.msra.mxu0 %v983
    %1610 = vmatpush.bf16.msra.mxu0 %v975
    %1611 = vmatmul.bf16.gmra.mxu0 %v1439
    %v1612 = vpop.f32.mrf.mxu0
    %v1613 = vadd.f32 %v1600, %v1612
    %v1614 = vpop.f32.mrf.mxu0
    %1615 = vdwg.mxu0
    %1616 = vmatpush.bf16.msra.mxu0 %v968
    %1617 = vmatpush.bf16.msra.mxu0 %v960
    %1618 = vmatpush.bf16.msra.mxu0 %v952
    %1619 = vmatpush.bf16.msra.mxu0 %v944
    %1620 = vmatpush.bf16.msra.mxu0 %v936
    %1621 = vmatpush.bf16.msra.mxu0 %v928
    %1622 = vmatpush.bf16.msra.mxu0 %v920
    %1623 = vmatpush.bf16.msra.mxu0 %v912
    %1624 = vmatmul.bf16.gmra.mxu0 %v1511
    %v1625 = vpop.f32.mrf.mxu0
    %v1626 = vadd.f32 0.0, %v1625
    %v1627 = vpop.f32.mrf.mxu0
    %1628 = vdwg.mxu0
    %1629 = vmatpush.bf16.msra.mxu0 %v1032
    %1630 = vmatpush.bf16.msra.mxu0 %v1024
    %1631 = vmatpush.bf16.msra.mxu0 %v1016
    %1632 = vmatpush.bf16.msra.mxu0 %v1008
    %1633 = vmatpush.bf16.msra.mxu0 %v1000
    %1634 = vmatpush.bf16.msra.mxu0 %v992
    %1635 = vmatpush.bf16.msra.mxu0 %v984
    %1636 = vmatpush.bf16.msra.mxu0 %v976
    %1637 = vmatmul.bf16.gmra.mxu0 %v1439
    %v1638 = vpop.f32.mrf.mxu0
    %v1639 = vadd.f32 %v1626, %v1638
    %v1640 = vpop.f32.mrf.mxu0
    %1641 = vdwg.mxu0
    %1642 = vmatpush.bf16.msra.mxu0 %v969
    %1643 = vmatpush.bf16.msra.mxu0 %v961
    %1644 = vmatpush.bf16.msra.mxu0 %v953
    %1645 = vmatpush.bf16.msra.mxu0 %v945
    %1646 = vmatpush.bf16.msra.mxu0 %v937
    %1647 = vmatpush.bf16.msra.mxu0 %v929
    %1648 = vmatpush.bf16.msra.mxu0 %v921
    %1649 = vmatpush.bf16.msra.mxu0 %v913
    %1650 = vmatmul.bf16.gmra.mxu0 %v1511
    %v1651 = vpop.f32.mrf.mxu0
    %v1652 = vadd.f32 0.0, %v1651
    %v1653 = vpop.f32.mrf.mxu0
    %1654 = vdwg.mxu0
    %1655 = vmatpush.bf16.msra.mxu0 %v1033
    %1656 = vmatpush.bf16.msra.mxu0 %v1025
    %1657 = vmatpush.bf16.msra.mxu0 %v1017
    %1658 = vmatpush.bf16.msra.mxu0 %v1009
    %1659 = vmatpush.bf16.msra.mxu0 %v1001
    %1660 = vmatpush.bf16.msra.mxu0 %v993
    %1661 = vmatpush.bf16.msra.mxu0 %v985
    %1662 = vmatpush.bf16.msra.mxu0 %v977
    %1663 = vmatmul.bf16.gmra.mxu0 %v1439
    %v1664 = vpop.f32.mrf.mxu0
    %v1665 = vadd.f32 %v1652, %v1664
    %v1666 = vpop.f32.mrf.mxu0
    %1667 = vdwg.mxu0
    %1668 = vmatpush.bf16.msra.mxu0 %v970
    %1669 = vmatpush.bf16.msra.mxu0 %v962
    %1670 = vmatpush.bf16.msra.mxu0 %v954
    %1671 = vmatpush.bf16.msra.mxu0 %v946
    %1672 = vmatpush.bf16.msra.mxu0 %v938
    %1673 = vmatpush.bf16.msra.mxu0 %v930
    %1674 = vmatpush.bf16.msra.mxu0 %v922
    %1675 = vmatpush.bf16.msra.mxu0 %v914
    %1676 = vmatmul.bf16.gmra.mxu0 %v1511
    %v1677 = vpop.f32.mrf.mxu0
    %v1678 = vadd.f32 0.0, %v1677
    %v1679 = vpop.f32.mrf.mxu0
    %1680 = vdwg.mxu0
    %1681 = vmatpush.bf16.msra.mxu0 %v1034
    %1682 = vmatpush.bf16.msra.mxu0 %v1026
    %1683 = vmatpush.bf16.msra.mxu0 %v1018
    %1684 = vmatpush.bf16.msra.mxu0 %v1010
    %1685 = vmatpush.bf16.msra.mxu0 %v1002
    %1686 = vmatpush.bf16.msra.mxu0 %v994
    %1687 = vmatpush.bf16.msra.mxu0 %v986
    %1688 = vmatpush.bf16.msra.mxu0 %v978
    %1689 = vmatmul.bf16.gmra.mxu0 %v1439
    %v1690 = vpop.f32.mrf.mxu0
    %v1691 = vadd.f32 %v1678, %v1690
    %v1692 = vpop.f32.mrf.mxu0
    %1693 = vdwg.mxu0
    %1694 = vmatpush.bf16.msra.mxu0 %v971
    %1695 = vmatpush.bf16.msra.mxu0 %v963
    %1696 = vmatpush.bf16.msra.mxu0 %v955
    %1697 = vmatpush.bf16.msra.mxu0 %v947
    %1698 = vmatpush.bf16.msra.mxu0 %v939
    %1699 = vmatpush.bf16.msra.mxu0 %v931
    %1700 = vmatpush.bf16.msra.mxu0 %v923
    %1701 = vmatpush.bf16.msra.mxu0 %v915
    %1702 = vmatmul.bf16.gmra.mxu0 %v1511
    %v1703 = vpop.f32.mrf.mxu0
    %v1704 = vadd.f32 0.0, %v1703
    %v1705 = vpop.f32.mrf.mxu0
    %1706 = vdwg.mxu0
    %1707 = vmatpush.bf16.msra.mxu0 %v1035
    %1708 = vmatpush.bf16.msra.mxu0 %v1027
    %1709 = vmatpush.bf16.msra.mxu0 %v1019
    %1710 = vmatpush.bf16.msra.mxu0 %v1011
    %1711 = vmatpush.bf16.msra.mxu0 %v1003
    %1712 = vmatpush.bf16.msra.mxu0 %v995
    %1713 = vmatpush.bf16.msra.mxu0 %v987
    %1714 = vmatpush.bf16.msra.mxu0 %v979
    %1715 = vmatmul.bf16.gmra.mxu0 %v1439
    %v1716 = vpop.f32.mrf.mxu0
    %v1717 = vadd.f32 %v1704, %v1716
    %v1718 = vpop.f32.mrf.mxu0
    %1719 = vdwg.mxu0
    %v1720 = vadd.f32 %v1639, %v448
    %v1721 = vadd.f32 %v1665, %v449
    %v1722 = vadd.f32 %v1691, %v450
    %v1723 = vadd.f32 %v1717, %v451
    %v1724 = vxor.u32 %v1720, 2147483648
    %v1725 = vmul.f32 %v1724, 1.442695
    %v1726 = vpow.pop %v1725
    %v1727 = vadd.f32 %v1726, 1.0
    %v1728 = vrcp.pop %v1727
    %v1729 = vmul.f32 %v1727, %v1728
    %v1730 = vsub.f32 1.0, %v1729
    %v1731 = vmul.f32 %v1728, %v1730
    %v1732 = vadd.f32 %v1728, %v1731
    %vm1733 = vweird.f32 %v1727
    %vm1734 = vweird.f32 %v1728
    %vm1735 = vmor %vm1733, %vm1734
    %v1736 = vsel %vm1735, %v1728, %v1732
    %v1737 = vand.u32 2147483647, %v1727
    %vm1738 = vcmp.eq.f32.partialorder %v1737, 8.507059e+37
    %v1739 = vand.u32 %v1727, 2147483648
    %v1740 = vor.u32 1.1754944e-38, %v1739
    %v1741 = vsel %vm1738, %v1740, %v1736
    %v1742 = vmul.f32 1.0, %v1741
    %v1743 = vxor.u32 %v1721, 2147483648
    %v1744 = vmul.f32 %v1743, 1.442695
    %v1745 = vpow.pop %v1744
    %v1746 = vadd.f32 %v1745, 1.0
    %v1747 = vrcp.pop %v1746
    %v1748 = vmul.f32 %v1746, %v1747
    %v1749 = vsub.f32 1.0, %v1748
    %v1750 = vmul.f32 %v1747, %v1749
    %v1751 = vadd.f32 %v1747, %v1750
    %vm1752 = vweird.f32 %v1746
    %vm1753 = vweird.f32 %v1747
    %vm1754 = vmor %vm1752, %vm1753
    %v1755 = vsel %vm1754, %v1747, %v1751
    %v1756 = vand.u32 2147483647, %v1746
    %vm1757 = vcmp.eq.f32.partialorder %v1756, 8.507059e+37
    %v1758 = vand.u32 %v1746, 2147483648
    %v1759 = vor.u32 1.1754944e-38, %v1758
    %v1760 = vsel %vm1757, %v1759, %v1755
    %v1761 = vmul.f32 1.0, %v1760
    %v1762 = vtanh.pop %v1722
    %v1763 = vxor.u32 %v1723, 2147483648
    %v1764 = vmul.f32 %v1763, 1.442695
    %v1765 = vpow.pop %v1764
    %v1766 = vadd.f32 %v1765, 1.0
    %v1767 = vrcp.pop %v1766
    %v1768 = vmul.f32 %v1766, %v1767
    %v1769 = vsub.f32 1.0, %v1768
    %v1770 = vmul.f32 %v1767, %v1769
    %v1771 = vadd.f32 %v1767, %v1770
    %vm1772 = vweird.f32 %v1766
    %vm1773 = vweird.f32 %v1767
    %vm1774 = vmor %vm1772, %vm1773
    %v1775 = vsel %vm1774, %v1767, %v1771
    %v1776 = vand.u32 2147483647, %v1766
    %vm1777 = vcmp.eq.f32.partialorder %v1776, 8.507059e+37
    %v1778 = vand.u32 %v1766, 2147483648
    %v1779 = vor.u32 1.1754944e-38, %v1778
    %v1780 = vsel %vm1777, %v1779, %v1775
    %v1781 = vmul.f32 1.0, %v1780
    %v1782 = vmul.f32 %v1761, %v1436
    %v1783 = vmul.f32 %v1742, %v1762
    %v1784 = vadd.f32 %v1782, %v1783
    %v1785 = vtanh.pop %v1784
    %v1786 = vmul.f32 %v1781, %v1785
    %v1787 = vpack.c.bf16 %v1786, %v1786
    %v1788 = vld [vmem:[#allocation2 + $0x40] sm:$0xff]
    %v1789 = vld [vmem:[#allocation2 + $0x48] sm:$0xff]
    %v1790 = vld [vmem:[#allocation2 + $0x50] sm:$0xff]
    %v1791 = vld [vmem:[#allocation2 + $0x58] sm:$0xff]
    %v1792 = vadd.f32 %v1788, %v1535
    %v1793 = vadd.f32 %v1789, %v1561
    %v1794 = vadd.f32 %v1790, %v1587
    %v1795 = vadd.f32 %v1791, %v1613
    %v1796 = vxor.u32 %v1792, 2147483648
    %v1797 = vmul.f32 %v1796, 1.442695
    %v1798 = vpow.pop %v1797
    %v1799 = vadd.f32 %v1798, 1.0
    %v1800 = vrcp.pop %v1799
    %v1801 = vmul.f32 %v1799, %v1800
    %v1802 = vsub.f32 1.0, %v1801
    %v1803 = vmul.f32 %v1800, %v1802
    %v1804 = vadd.f32 %v1800, %v1803
    %vm1805 = vweird.f32 %v1799
    %vm1806 = vweird.f32 %v1800
    %vm1807 = vmor %vm1805, %vm1806
    %v1808 = vsel %vm1807, %v1800, %v1804
    %v1809 = vand.u32 2147483647, %v1799
    %vm1810 = vcmp.eq.f32.partialorder %v1809, 8.507059e+37
    %v1811 = vand.u32 %v1799, 2147483648
    %v1812 = vor.u32 1.1754944e-38, %v1811
    %v1813 = vsel %vm1810, %v1812, %v1808
    %v1814 = vmul.f32 1.0, %v1813
    %v1815 = vxor.u32 %v1793, 2147483648
    %v1816 = vmul.f32 %v1815, 1.442695
    %v1817 = vpow.pop %v1816
    %v1818 = vadd.f32 %v1817, 1.0
    %v1819 = vrcp.pop %v1818
    %v1820 = vmul.f32 %v1818, %v1819
    %v1821 = vsub.f32 1.0, %v1820
    %v1822 = vmul.f32 %v1819, %v1821
    %v1823 = vadd.f32 %v1819, %v1822
    %vm1824 = vweird.f32 %v1818
    %vm1825 = vweird.f32 %v1819
    %vm1826 = vmor %vm1824, %vm1825
    %v1827 = vsel %vm1826, %v1819, %v1823
    %v1828 = vand.u32 2147483647, %v1818
    %vm1829 = vcmp.eq.f32.partialorder %v1828, 8.507059e+37
    %v1830 = vand.u32 %v1818, 2147483648
    %v1831 = vor.u32 1.1754944e-38, %v1830
    %v1832 = vsel %vm1829, %v1831, %v1827
    %v1833 = vmul.f32 1.0, %v1832
    %v1834 = vtanh.pop %v1794
    %v1835 = vxor.u32 %v1795, 2147483648
    %v1836 = vmul.f32 %v1835, 1.442695
    %v1837 = vpow.pop %v1836
    %v1838 = vadd.f32 %v1837, 1.0
    %v1839 = vrcp.pop %v1838
    %v1840 = vmul.f32 %v1838, %v1839
    %v1841 = vsub.f32 1.0, %v1840
    %v1842 = vmul.f32 %v1839, %v1841
    %v1843 = vadd.f32 %v1839, %v1842
    %vm1844 = vweird.f32 %v1838
    %vm1845 = vweird.f32 %v1839
    %vm1846 = vmor %vm1844, %vm1845
    %v1847 = vsel %vm1846, %v1839, %v1843
    %v1848 = vand.u32 2147483647, %v1838
    %vm1849 = vcmp.eq.f32.partialorder %v1848, 8.507059e+37
    %v1850 = vand.u32 %v1838, 2147483648
    %v1851 = vor.u32 1.1754944e-38, %v1850
    %v1852 = vsel %vm1849, %v1851, %v1847
    %v1853 = vmul.f32 1.0, %v1852
    %v1854 = vmul.f32 %v1833, %v1508
    %v1855 = vmul.f32 %v1814, %v1834
    %v1856 = vadd.f32 %v1854, %v1855
    %v1857 = vtanh.pop %v1856
    %v1858 = vmul.f32 %v1853, %v1857
    %v1859 = vpack.c.bf16 %v1858, %v1858
    %1860 = vmatpush.bf16.msra.mxu0 %v964
    %1861 = vmatpush.bf16.msra.mxu0 %v956
    %1862 = vmatpush.bf16.msra.mxu0 %v948
    %1863 = vmatpush.bf16.msra.mxu0 %v940
    %1864 = vmatpush.bf16.msra.mxu0 %v932
    %1865 = vmatpush.bf16.msra.mxu0 %v924
    %1866 = vmatpush.bf16.msra.mxu0 %v916
    %1867 = vmatpush.bf16.msra.mxu0 %v908
    %1868 = vmatmul.bf16.gmra.mxu0 %v1859
    %v1869 = vpop.f32.mrf.mxu0
    %v1870 = vadd.f32 0.0, %v1869
    %v1871 = vpop.f32.mrf.mxu0
    %1872 = vdwg.mxu0
    %1873 = vmatpush.bf16.msra.mxu0 %v1028
    %1874 = vmatpush.bf16.msra.mxu0 %v1020
    %1875 = vmatpush.bf16.msra.mxu0 %v1012
    %1876 = vmatpush.bf16.msra.mxu0 %v1004
    %1877 = vmatpush.bf16.msra.mxu0 %v996
    %1878 = vmatpush.bf16.msra.mxu0 %v988
    %1879 = vmatpush.bf16.msra.mxu0 %v980
    %1880 = vmatpush.bf16.msra.mxu0 %v972
    %1881 = vmatmul.bf16.gmra.mxu0 %v1787
    %v1882 = vpop.f32.mrf.mxu0
    %v1883 = vadd.f32 %v1870, %v1882
    %v1884 = vpop.f32.mrf.mxu0
    %1885 = vdwg.mxu0
    %1886 = vmatpush.bf16.msra.mxu0 %v965
    %1887 = vmatpush.bf16.msra.mxu0 %v957
    %1888 = vmatpush.bf16.msra.mxu0 %v949
    %1889 = vmatpush.bf16.msra.mxu0 %v941
    %1890 = vmatpush.bf16.msra.mxu0 %v933
    %1891 = vmatpush.bf16.msra.mxu0 %v925
    %1892 = vmatpush.bf16.msra.mxu0 %v917
    %1893 = vmatpush.bf16.msra.mxu0 %v909
    %1894 = vmatmul.bf16.gmra.mxu0 %v1859
    %v1895 = vpop.f32.mrf.mxu0
    %v1896 = vadd.f32 0.0, %v1895
    %v1897 = vpop.f32.mrf.mxu0
    %1898 = vdwg.mxu0
    %1899 = vmatpush.bf16.msra.mxu0 %v1029
    %1900 = vmatpush.bf16.msra.mxu0 %v1021
    %1901 = vmatpush.bf16.msra.mxu0 %v1013
    %1902 = vmatpush.bf16.msra.mxu0 %v1005
    %1903 = vmatpush.bf16.msra.mxu0 %v997
    %1904 = vmatpush.bf16.msra.mxu0 %v989
    %1905 = vmatpush.bf16.msra.mxu0 %v981
    %1906 = vmatpush.bf16.msra.mxu0 %v973
    %1907 = vmatmul.bf16.gmra.mxu0 %v1787
    %v1908 = vpop.f32.mrf.mxu0
    %v1909 = vadd.f32 %v1896, %v1908
    %v1910 = vpop.f32.mrf.mxu0
    %1911 = vdwg.mxu0
    %1912 = vmatpush.bf16.msra.mxu0 %v966
    %1913 = vmatpush.bf16.msra.mxu0 %v958
    %1914 = vmatpush.bf16.msra.mxu0 %v950
    %1915 = vmatpush.bf16.msra.mxu0 %v942
    %1916 = vmatpush.bf16.msra.mxu0 %v934
    %1917 = vmatpush.bf16.msra.mxu0 %v926
    %1918 = vmatpush.bf16.msra.mxu0 %v918
    %1919 = vmatpush.bf16.msra.mxu0 %v910
    %1920 = vmatmul.bf16.gmra.mxu0 %v1859
    %v1921 = vpop.f32.mrf.mxu0
    %v1922 = vadd.f32 0.0, %v1921
    %v1923 = vpop.f32.mrf.mxu0
    %1924 = vdwg.mxu0
    %1925 = vmatpush.bf16.msra.mxu0 %v1030
    %1926 = vmatpush.bf16.msra.mxu0 %v1022
    %1927 = vmatpush.bf16.msra.mxu0 %v1014
    %1928 = vmatpush.bf16.msra.mxu0 %v1006
    %1929 = vmatpush.bf16.msra.mxu0 %v998
    %1930 = vmatpush.bf16.msra.mxu0 %v990
    %1931 = vmatpush.bf16.msra.mxu0 %v982
    %1932 = vmatpush.bf16.msra.mxu0 %v974
    %1933 = vmatmul.bf16.gmra.mxu0 %v1787
    %v1934 = vpop.f32.mrf.mxu0
    %v1935 = vadd.f32 %v1922, %v1934
    %v1936 = vpop.f32.mrf.mxu0
    %1937 = vdwg.mxu0
    %1938 = vmatpush.bf16.msra.mxu0 %v967
    %1939 = vmatpush.bf16.msra.mxu0 %v959
    %1940 = vmatpush.bf16.msra.mxu0 %v951
    %1941 = vmatpush.bf16.msra.mxu0 %v943
    %1942 = vmatpush.bf16.msra.mxu0 %v935
    %1943 = vmatpush.bf16.msra.mxu0 %v927
    %1944 = vmatpush.bf16.msra.mxu0 %v919
    %1945 = vmatpush.bf16.msra.mxu0 %v911
    %1946 = vmatmul.bf16.gmra.mxu0 %v1859
    %v1947 = vpop.f32.mrf.mxu0
    %v1948 = vadd.f32 0.0, %v1947
    %v1949 = vpop.f32.mrf.mxu0
    %1950 = vdwg.mxu0
    %1951 = vmatpush.bf16.msra.mxu0 %v1031
    %1952 = vmatpush.bf16.msra.mxu0 %v1023
    %1953 = vmatpush.bf16.msra.mxu0 %v1015
    %1954 = vmatpush.bf16.msra.mxu0 %v1007
    %1955 = vmatpush.bf16.msra.mxu0 %v999
    %1956 = vmatpush.bf16.msra.mxu0 %v991
    %1957 = vmatpush.bf16.msra.mxu0 %v983
    %1958 = vmatpush.bf16.msra.mxu0 %v975
    %1959 = vmatmul.bf16.gmra.mxu0 %v1787
    %v1960 = vpop.f32.mrf.mxu0
    %v1961 = vadd.f32 %v1948, %v1960
    %v1962 = vpop.f32.mrf.mxu0
    %1963 = vdwg.mxu0
    %1964 = vmatpush.bf16.msra.mxu0 %v968
    %1965 = vmatpush.bf16.msra.mxu0 %v960
    %1966 = vmatpush.bf16.msra.mxu0 %v952
    %1967 = vmatpush.bf16.msra.mxu0 %v944
    %1968 = vmatpush.bf16.msra.mxu0 %v936
    %1969 = vmatpush.bf16.msra.mxu0 %v928
    %1970 = vmatpush.bf16.msra.mxu0 %v920
    %1971 = vmatpush.bf16.msra.mxu0 %v912
    %1972 = vmatmul.bf16.gmra.mxu0 %v1859
    %v1973 = vpop.f32.mrf.mxu0
    %v1974 = vadd.f32 0.0, %v1973
    %v1975 = vpop.f32.mrf.mxu0
    %1976 = vdwg.mxu0
    %1977 = vmatpush.bf16.msra.mxu0 %v1032
    %1978 = vmatpush.bf16.msra.mxu0 %v1024
    %1979 = vmatpush.bf16.msra.mxu0 %v1016
    %1980 = vmatpush.bf16.msra.mxu0 %v1008
    %1981 = vmatpush.bf16.msra.mxu0 %v1000
    %1982 = vmatpush.bf16.msra.mxu0 %v992
    %1983 = vmatpush.bf16.msra.mxu0 %v984
    %1984 = vmatpush.bf16.msra.mxu0 %v976
    %1985 = vmatmul.bf16.gmra.mxu0 %v1787
    %v1986 = vpop.f32.mrf.mxu0
    %v1987 = vadd.f32 %v1974, %v1986
    %v1988 = vpop.f32.mrf.mxu0
    %1989 = vdwg.mxu0
    %1990 = vmatpush.bf16.msra.mxu0 %v969
    %1991 = vmatpush.bf16.msra.mxu0 %v961
    %1992 = vmatpush.bf16.msra.mxu0 %v953
    %1993 = vmatpush.bf16.msra.mxu0 %v945
    %1994 = vmatpush.bf16.msra.mxu0 %v937
    %1995 = vmatpush.bf16.msra.mxu0 %v929
    %1996 = vmatpush.bf16.msra.mxu0 %v921
    %1997 = vmatpush.bf16.msra.mxu0 %v913
    %1998 = vmatmul.bf16.gmra.mxu0 %v1859
    %v1999 = vpop.f32.mrf.mxu0
    %v2000 = vadd.f32 0.0, %v1999
    %v2001 = vpop.f32.mrf.mxu0
    %2002 = vdwg.mxu0
    %2003 = vmatpush.bf16.msra.mxu0 %v1033
    %2004 = vmatpush.bf16.msra.mxu0 %v1025
    %2005 = vmatpush.bf16.msra.mxu0 %v1017
    %2006 = vmatpush.bf16.msra.mxu0 %v1009
    %2007 = vmatpush.bf16.msra.mxu0 %v1001
    %2008 = vmatpush.bf16.msra.mxu0 %v993
    %2009 = vmatpush.bf16.msra.mxu0 %v985
    %2010 = vmatpush.bf16.msra.mxu0 %v977
    %2011 = vmatmul.bf16.gmra.mxu0 %v1787
    %v2012 = vpop.f32.mrf.mxu0
    %v2013 = vadd.f32 %v2000, %v2012
    %v2014 = vpop.f32.mrf.mxu0
    %2015 = vdwg.mxu0
    %2016 = vmatpush.bf16.msra.mxu0 %v970
    %2017 = vmatpush.bf16.msra.mxu0 %v962
    %2018 = vmatpush.bf16.msra.mxu0 %v954
    %2019 = vmatpush.bf16.msra.mxu0 %v946
    %2020 = vmatpush.bf16.msra.mxu0 %v938
    %2021 = vmatpush.bf16.msra.mxu0 %v930
    %2022 = vmatpush.bf16.msra.mxu0 %v922
    %2023 = vmatpush.bf16.msra.mxu0 %v914
    %2024 = vmatmul.bf16.gmra.mxu0 %v1859
    %v2025 = vpop.f32.mrf.mxu0
    %v2026 = vadd.f32 0.0, %v2025
    %v2027 = vpop.f32.mrf.mxu0
    %2028 = vdwg.mxu0
    %2029 = vmatpush.bf16.msra.mxu0 %v1034
    %2030 = vmatpush.bf16.msra.mxu0 %v1026
    %2031 = vmatpush.bf16.msra.mxu0 %v1018
    %2032 = vmatpush.bf16.msra.mxu0 %v1010
    %2033 = vmatpush.bf16.msra.mxu0 %v1002
    %2034 = vmatpush.bf16.msra.mxu0 %v994
    %2035 = vmatpush.bf16.msra.mxu0 %v986
    %2036 = vmatpush.bf16.msra.mxu0 %v978
    %2037 = vmatmul.bf16.gmra.mxu0 %v1787
    %v2038 = vpop.f32.mrf.mxu0
    %v2039 = vadd.f32 %v2026, %v2038
    %v2040 = vpop.f32.mrf.mxu0
    %2041 = vdwg.mxu0
    %2042 = vmatpush.bf16.msra.mxu0 %v971
    %2043 = vmatpush.bf16.msra.mxu0 %v963
    %2044 = vmatpush.bf16.msra.mxu0 %v955
    %2045 = vmatpush.bf16.msra.mxu0 %v947
    %2046 = vmatpush.bf16.msra.mxu0 %v939
    %2047 = vmatpush.bf16.msra.mxu0 %v931
    %2048 = vmatpush.bf16.msra.mxu0 %v923
    %2049 = vmatpush.bf16.msra.mxu0 %v915
    %2050 = vmatmul.bf16.gmra.mxu0 %v1859
    %v2051 = vpop.f32.mrf.mxu0
    %v2052 = vadd.f32 0.0, %v2051
    %v2053 = vpop.f32.mrf.mxu0
    %2054 = vdwg.mxu0
    %2055 = vmatpush.bf16.msra.mxu0 %v1035
    %2056 = vmatpush.bf16.msra.mxu0 %v1027
    %2057 = vmatpush.bf16.msra.mxu0 %v1019
    %2058 = vmatpush.bf16.msra.mxu0 %v1011
    %2059 = vmatpush.bf16.msra.mxu0 %v1003
    %2060 = vmatpush.bf16.msra.mxu0 %v995
    %2061 = vmatpush.bf16.msra.mxu0 %v987
    %2062 = vmatpush.bf16.msra.mxu0 %v979
    %2063 = vmatmul.bf16.gmra.mxu0 %v1787
    %v2064 = vpop.f32.mrf.mxu0
    %v2065 = vadd.f32 %v2052, %v2064
    %v2066 = vpop.f32.mrf.mxu0
    %2067 = vdwg.mxu0
    %v2068 = vadd.f32 %v1987, %v448
    %v2069 = vadd.f32 %v2013, %v449
    %v2070 = vadd.f32 %v2039, %v450
    %v2071 = vadd.f32 %v2065, %v451
    %v2072 = vxor.u32 %v2068, 2147483648
    %v2073 = vmul.f32 %v2072, 1.442695
    %v2074 = vpow.pop %v2073
    %v2075 = vadd.f32 %v2074, 1.0
    %v2076 = vrcp.pop %v2075
    %v2077 = vmul.f32 %v2075, %v2076
    %v2078 = vsub.f32 1.0, %v2077
    %v2079 = vmul.f32 %v2076, %v2078
    %v2080 = vadd.f32 %v2076, %v2079
    %vm2081 = vweird.f32 %v2075
    %vm2082 = vweird.f32 %v2076
    %vm2083 = vmor %vm2081, %vm2082
    %v2084 = vsel %vm2083, %v2076, %v2080
    %v2085 = vand.u32 2147483647, %v2075
    %vm2086 = vcmp.eq.f32.partialorder %v2085, 8.507059e+37
    %v2087 = vand.u32 %v2075, 2147483648
    %v2088 = vor.u32 1.1754944e-38, %v2087
    %v2089 = vsel %vm2086, %v2088, %v2084
    %v2090 = vmul.f32 1.0, %v2089
    %v2091 = vxor.u32 %v2069, 2147483648
    %v2092 = vmul.f32 %v2091, 1.442695
    %v2093 = vpow.pop %v2092
    %v2094 = vadd.f32 %v2093, 1.0
    %v2095 = vrcp.pop %v2094
    %v2096 = vmul.f32 %v2094, %v2095
    %v2097 = vsub.f32 1.0, %v2096
    %v2098 = vmul.f32 %v2095, %v2097
    %v2099 = vadd.f32 %v2095, %v2098
    %vm2100 = vweird.f32 %v2094
    %vm2101 = vweird.f32 %v2095
    %vm2102 = vmor %vm2100, %vm2101
    %v2103 = vsel %vm2102, %v2095, %v2099
    %v2104 = vand.u32 2147483647, %v2094
    %vm2105 = vcmp.eq.f32.partialorder %v2104, 8.507059e+37
    %v2106 = vand.u32 %v2094, 2147483648
    %v2107 = vor.u32 1.1754944e-38, %v2106
    %v2108 = vsel %vm2105, %v2107, %v2103
    %v2109 = vmul.f32 1.0, %v2108
    %v2110 = vtanh.pop %v2070
    %v2111 = vxor.u32 %v2071, 2147483648
    %v2112 = vmul.f32 %v2111, 1.442695
    %v2113 = vpow.pop %v2112
    %v2114 = vadd.f32 %v2113, 1.0
    %v2115 = vrcp.pop %v2114
    %v2116 = vmul.f32 %v2114, %v2115
    %v2117 = vsub.f32 1.0, %v2116
    %v2118 = vmul.f32 %v2115, %v2117
    %v2119 = vadd.f32 %v2115, %v2118
    %vm2120 = vweird.f32 %v2114
    %vm2121 = vweird.f32 %v2115
    %vm2122 = vmor %vm2120, %vm2121
    %v2123 = vsel %vm2122, %v2115, %v2119
    %v2124 = vand.u32 2147483647, %v2114
    %vm2125 = vcmp.eq.f32.partialorder %v2124, 8.507059e+37
    %v2126 = vand.u32 %v2114, 2147483648
    %v2127 = vor.u32 1.1754944e-38, %v2126
    %v2128 = vsel %vm2125, %v2127, %v2123
    %v2129 = vmul.f32 1.0, %v2128
    %v2130 = vmul.f32 %v2109, %v1784
    %v2131 = vmul.f32 %v2090, %v2110
    %v2132 = vadd.f32 %v2130, %v2131
    %v2133 = vtanh.pop %v2132
    %v2134 = vmul.f32 %v2129, %v2133
    %v2135 = vpack.c.bf16 %v2134, %v2134
    %v2136 = vld [vmem:[#allocation2 + $0x60] sm:$0xff]
    %v2137 = vld [vmem:[#allocation2 + $0x68] sm:$0xff]
    %v2138 = vld [vmem:[#allocation2 + $0x70] sm:$0xff]
    %v2139 = vld [vmem:[#allocation2 + $0x78] sm:$0xff]
    %v2140 = vadd.f32 %v2136, %v1883
    %v2141 = vadd.f32 %v2137, %v1909
    %v2142 = vadd.f32 %v2138, %v1935
    %v2143 = vadd.f32 %v2139, %v1961
    %v2144 = vxor.u32 %v2140, 2147483648
    %v2145 = vmul.f32 %v2144, 1.442695
    %v2146 = vpow.pop %v2145
    %v2147 = vadd.f32 %v2146, 1.0
    %v2148 = vrcp.pop %v2147
    %v2149 = vmul.f32 %v2147, %v2148
    %v2150 = vsub.f32 1.0, %v2149
    %v2151 = vmul.f32 %v2148, %v2150
    %v2152 = vadd.f32 %v2148, %v2151
    %vm2153 = vweird.f32 %v2147
    %vm2154 = vweird.f32 %v2148
    %vm2155 = vmor %vm2153, %vm2154
    %v2156 = vsel %vm2155, %v2148, %v2152
    %v2157 = vand.u32 2147483647, %v2147
    %vm2158 = vcmp.eq.f32.partialorder %v2157, 8.507059e+37
    %v2159 = vand.u32 %v2147, 2147483648
    %v2160 = vor.u32 1.1754944e-38, %v2159
    %v2161 = vsel %vm2158, %v2160, %v2156
    %v2162 = vmul.f32 1.0, %v2161
    %v2163 = vxor.u32 %v2141, 2147483648
    %v2164 = vmul.f32 %v2163, 1.442695
    %v2165 = vpow.pop %v2164
    %v2166 = vadd.f32 %v2165, 1.0
    %v2167 = vrcp.pop %v2166
    %v2168 = vmul.f32 %v2166, %v2167
    %v2169 = vsub.f32 1.0, %v2168
    %v2170 = vmul.f32 %v2167, %v2169
    %v2171 = vadd.f32 %v2167, %v2170
    %vm2172 = vweird.f32 %v2166
    %vm2173 = vweird.f32 %v2167
    %vm2174 = vmor %vm2172, %vm2173
    %v2175 = vsel %vm2174, %v2167, %v2171
    %v2176 = vand.u32 2147483647, %v2166
    %vm2177 = vcmp.eq.f32.partialorder %v2176, 8.507059e+37
    %v2178 = vand.u32 %v2166, 2147483648
    %v2179 = vor.u32 1.1754944e-38, %v2178
    %v2180 = vsel %vm2177, %v2179, %v2175
    %v2181 = vmul.f32 1.0, %v2180
    %v2182 = vtanh.pop %v2142
    %v2183 = vxor.u32 %v2143, 2147483648
    %v2184 = vmul.f32 %v2183, 1.442695
    %v2185 = vpow.pop %v2184
    %v2186 = vadd.f32 %v2185, 1.0
    %v2187 = vrcp.pop %v2186
    %v2188 = vmul.f32 %v2186, %v2187
    %v2189 = vsub.f32 1.0, %v2188
    %v2190 = vmul.f32 %v2187, %v2189
    %v2191 = vadd.f32 %v2187, %v2190
    %vm2192 = vweird.f32 %v2186
    %vm2193 = vweird.f32 %v2187
    %vm2194 = vmor %vm2192, %vm2193
    %v2195 = vsel %vm2194, %v2187, %v2191
    %v2196 = vand.u32 2147483647, %v2186
    %vm2197 = vcmp.eq.f32.partialorder %v2196, 8.507059e+37
    %v2198 = vand.u32 %v2186, 2147483648
    %v2199 = vor.u32 1.1754944e-38, %v2198
    %v2200 = vsel %vm2197, %v2199, %v2195
    %v2201 = vmul.f32 1.0, %v2200
    %v2202 = vmul.f32 %v2181, %v1856
    %v2203 = vmul.f32 %v2162, %v2182
    %v2204 = vadd.f32 %v2202, %v2203
    %v2205 = vtanh.pop %v2204
    %v2206 = vmul.f32 %v2201, %v2205
    %v2207 = vpack.c.bf16 %v2206, %v2206
    %2208 = vmatpush.bf16.msra.mxu0 %v964
    %2209 = vmatpush.bf16.msra.mxu0 %v956
    %2210 = vmatpush.bf16.msra.mxu0 %v948
    %2211 = vmatpush.bf16.msra.mxu0 %v940
    %2212 = vmatpush.bf16.msra.mxu0 %v932
    %2213 = vmatpush.bf16.msra.mxu0 %v924
    %2214 = vmatpush.bf16.msra.mxu0 %v916
    %2215 = vmatpush.bf16.msra.mxu0 %v908
    %2216 = vmatmul.bf16.gmra.mxu0 %v2207
    %v2217 = vpop.f32.mrf.mxu0
    %v2218 = vadd.f32 0.0, %v2217
    %v2219 = vpop.f32.mrf.mxu0
    %2220 = vdwg.mxu0
    %2221 = vmatpush.bf16.msra.mxu0 %v1028
    %2222 = vmatpush.bf16.msra.mxu0 %v1020
    %2223 = vmatpush.bf16.msra.mxu0 %v1012
    %2224 = vmatpush.bf16.msra.mxu0 %v1004
    %2225 = vmatpush.bf16.msra.mxu0 %v996
    %2226 = vmatpush.bf16.msra.mxu0 %v988
    %2227 = vmatpush.bf16.msra.mxu0 %v980
    %2228 = vmatpush.bf16.msra.mxu0 %v972
    %2229 = vmatmul.bf16.gmra.mxu0 %v2135
    %v2230 = vpop.f32.mrf.mxu0
    %v2231 = vadd.f32 %v2218, %v2230
    %v2232 = vpop.f32.mrf.mxu0
    %2233 = vdwg.mxu0
    %2234 = vmatpush.bf16.msra.mxu0 %v965
    %2235 = vmatpush.bf16.msra.mxu0 %v957
    %2236 = vmatpush.bf16.msra.mxu0 %v949
    %2237 = vmatpush.bf16.msra.mxu0 %v941
    %2238 = vmatpush.bf16.msra.mxu0 %v933
    %2239 = vmatpush.bf16.msra.mxu0 %v925
    %2240 = vmatpush.bf16.msra.mxu0 %v917
    %2241 = vmatpush.bf16.msra.mxu0 %v909
    %2242 = vmatmul.bf16.gmra.mxu0 %v2207
    %v2243 = vpop.f32.mrf.mxu0
    %v2244 = vadd.f32 0.0, %v2243
    %v2245 = vpop.f32.mrf.mxu0
    %2246 = vdwg.mxu0
    %2247 = vmatpush.bf16.msra.mxu0 %v1029
    %2248 = vmatpush.bf16.msra.mxu0 %v1021
    %2249 = vmatpush.bf16.msra.mxu0 %v1013
    %2250 = vmatpush.bf16.msra.mxu0 %v1005
    %2251 = vmatpush.bf16.msra.mxu0 %v997
    %2252 = vmatpush.bf16.msra.mxu0 %v989
    %2253 = vmatpush.bf16.msra.mxu0 %v981
    %2254 = vmatpush.bf16.msra.mxu0 %v973
    %2255 = vmatmul.bf16.gmra.mxu0 %v2135
    %v2256 = vpop.f32.mrf.mxu0
    %v2257 = vadd.f32 %v2244, %v2256
    %v2258 = vpop.f32.mrf.mxu0
    %2259 = vdwg.mxu0
    %2260 = vmatpush.bf16.msra.mxu0 %v966
    %2261 = vmatpush.bf16.msra.mxu0 %v958
    %2262 = vmatpush.bf16.msra.mxu0 %v950
    %2263 = vmatpush.bf16.msra.mxu0 %v942
    %2264 = vmatpush.bf16.msra.mxu0 %v934
    %2265 = vmatpush.bf16.msra.mxu0 %v926
    %2266 = vmatpush.bf16.msra.mxu0 %v918
    %2267 = vmatpush.bf16.msra.mxu0 %v910
    %2268 = vmatmul.bf16.gmra.mxu0 %v2207
    %v2269 = vpop.f32.mrf.mxu0
    %v2270 = vadd.f32 0.0, %v2269
    %v2271 = vpop.f32.mrf.mxu0
    %2272 = vdwg.mxu0
    %2273 = vmatpush.bf16.msra.mxu0 %v1030
    %2274 = vmatpush.bf16.msra.mxu0 %v1022
    %2275 = vmatpush.bf16.msra.mxu0 %v1014
    %2276 = vmatpush.bf16.msra.mxu0 %v1006
    %2277 = vmatpush.bf16.msra.mxu0 %v998
    %2278 = vmatpush.bf16.msra.mxu0 %v990
    %2279 = vmatpush.bf16.msra.mxu0 %v982
    %2280 = vmatpush.bf16.msra.mxu0 %v974
    %2281 = vmatmul.bf16.gmra.mxu0 %v2135
    %v2282 = vpop.f32.mrf.mxu0
    %v2283 = vadd.f32 %v2270, %v2282
    %v2284 = vpop.f32.mrf.mxu0
    %2285 = vdwg.mxu0
    %2286 = vmatpush.bf16.msra.mxu0 %v967
    %2287 = vmatpush.bf16.msra.mxu0 %v959
    %2288 = vmatpush.bf16.msra.mxu0 %v951
    %2289 = vmatpush.bf16.msra.mxu0 %v943
    %2290 = vmatpush.bf16.msra.mxu0 %v935
    %2291 = vmatpush.bf16.msra.mxu0 %v927
    %2292 = vmatpush.bf16.msra.mxu0 %v919
    %2293 = vmatpush.bf16.msra.mxu0 %v911
    %2294 = vmatmul.bf16.gmra.mxu0 %v2207
    %v2295 = vpop.f32.mrf.mxu0
    %v2296 = vadd.f32 0.0, %v2295
    %v2297 = vpop.f32.mrf.mxu0
    %2298 = vdwg.mxu0
    %2299 = vmatpush.bf16.msra.mxu0 %v1031
    %2300 = vmatpush.bf16.msra.mxu0 %v1023
    %2301 = vmatpush.bf16.msra.mxu0 %v1015
    %2302 = vmatpush.bf16.msra.mxu0 %v1007
    %2303 = vmatpush.bf16.msra.mxu0 %v999
    %2304 = vmatpush.bf16.msra.mxu0 %v991
    %2305 = vmatpush.bf16.msra.mxu0 %v983
    %2306 = vmatpush.bf16.msra.mxu0 %v975
    %2307 = vmatmul.bf16.gmra.mxu0 %v2135
    %v2308 = vpop.f32.mrf.mxu0
    %v2309 = vadd.f32 %v2296, %v2308
    %v2310 = vpop.f32.mrf.mxu0
    %2311 = vdwg.mxu0
    %2312 = vmatpush.bf16.msra.mxu0 %v968
    %2313 = vmatpush.bf16.msra.mxu0 %v960
    %2314 = vmatpush.bf16.msra.mxu0 %v952
    %2315 = vmatpush.bf16.msra.mxu0 %v944
    %2316 = vmatpush.bf16.msra.mxu0 %v936
    %2317 = vmatpush.bf16.msra.mxu0 %v928
    %2318 = vmatpush.bf16.msra.mxu0 %v920
    %2319 = vmatpush.bf16.msra.mxu0 %v912
    %2320 = vmatmul.bf16.gmra.mxu0 %v2207
    %v2321 = vpop.f32.mrf.mxu0
    %v2322 = vadd.f32 0.0, %v2321
    %v2323 = vpop.f32.mrf.mxu0
    %2324 = vdwg.mxu0
    %2325 = vmatpush.bf16.msra.mxu0 %v1032
    %2326 = vmatpush.bf16.msra.mxu0 %v1024
    %2327 = vmatpush.bf16.msra.mxu0 %v1016
    %2328 = vmatpush.bf16.msra.mxu0 %v1008
    %2329 = vmatpush.bf16.msra.mxu0 %v1000
    %2330 = vmatpush.bf16.msra.mxu0 %v992
    %2331 = vmatpush.bf16.msra.mxu0 %v984
    %2332 = vmatpush.bf16.msra.mxu0 %v976
    %2333 = vmatmul.bf16.gmra.mxu0 %v2135
    %v2334 = vpop.f32.mrf.mxu0
    %v2335 = vadd.f32 %v2322, %v2334
    %v2336 = vpop.f32.mrf.mxu0
    %2337 = vdwg.mxu0
    %2338 = vmatpush.bf16.msra.mxu0 %v969
    %2339 = vmatpush.bf16.msra.mxu0 %v961
    %2340 = vmatpush.bf16.msra.mxu0 %v953
    %2341 = vmatpush.bf16.msra.mxu0 %v945
    %2342 = vmatpush.bf16.msra.mxu0 %v937
    %2343 = vmatpush.bf16.msra.mxu0 %v929
    %2344 = vmatpush.bf16.msra.mxu0 %v921
    %2345 = vmatpush.bf16.msra.mxu0 %v913
    %2346 = vmatmul.bf16.gmra.mxu0 %v2207
    %v2347 = vpop.f32.mrf.mxu0
    %v2348 = vadd.f32 0.0, %v2347
    %v2349 = vpop.f32.mrf.mxu0
    %2350 = vdwg.mxu0
    %2351 = vmatpush.bf16.msra.mxu0 %v1033
    %2352 = vmatpush.bf16.msra.mxu0 %v1025
    %2353 = vmatpush.bf16.msra.mxu0 %v1017
    %2354 = vmatpush.bf16.msra.mxu0 %v1009
    %2355 = vmatpush.bf16.msra.mxu0 %v1001
    %2356 = vmatpush.bf16.msra.mxu0 %v993
    %2357 = vmatpush.bf16.msra.mxu0 %v985
    %2358 = vmatpush.bf16.msra.mxu0 %v977
    %2359 = vmatmul.bf16.gmra.mxu0 %v2135
    %v2360 = vpop.f32.mrf.mxu0
    %v2361 = vadd.f32 %v2348, %v2360
    %v2362 = vpop.f32.mrf.mxu0
    %2363 = vdwg.mxu0
    %2364 = vmatpush.bf16.msra.mxu0 %v970
    %2365 = vmatpush.bf16.msra.mxu0 %v962
    %2366 = vmatpush.bf16.msra.mxu0 %v954
    %2367 = vmatpush.bf16.msra.mxu0 %v946
    %2368 = vmatpush.bf16.msra.mxu0 %v938
    %2369 = vmatpush.bf16.msra.mxu0 %v930
    %2370 = vmatpush.bf16.msra.mxu0 %v922
    %2371 = vmatpush.bf16.msra.mxu0 %v914
    %2372 = vmatmul.bf16.gmra.mxu0 %v2207
    %v2373 = vpop.f32.mrf.mxu0
    %v2374 = vadd.f32 0.0, %v2373
    %v2375 = vpop.f32.mrf.mxu0
    %2376 = vdwg.mxu0
    %2377 = vmatpush.bf16.msra.mxu0 %v1034
    %2378 = vmatpush.bf16.msra.mxu0 %v1026
    %2379 = vmatpush.bf16.msra.mxu0 %v1018
    %2380 = vmatpush.bf16.msra.mxu0 %v1010
    %2381 = vmatpush.bf16.msra.mxu0 %v1002
    %2382 = vmatpush.bf16.msra.mxu0 %v994
    %2383 = vmatpush.bf16.msra.mxu0 %v986
    %2384 = vmatpush.bf16.msra.mxu0 %v978
    %2385 = vmatmul.bf16.gmra.mxu0 %v2135
    %v2386 = vpop.f32.mrf.mxu0
    %v2387 = vadd.f32 %v2374, %v2386
    %v2388 = vpop.f32.mrf.mxu0
    %2389 = vdwg.mxu0
    %2390 = vmatpush.bf16.msra.mxu0 %v971
    %2391 = vmatpush.bf16.msra.mxu0 %v963
    %2392 = vmatpush.bf16.msra.mxu0 %v955
    %2393 = vmatpush.bf16.msra.mxu0 %v947
    %2394 = vmatpush.bf16.msra.mxu0 %v939
    %2395 = vmatpush.bf16.msra.mxu0 %v931
    %2396 = vmatpush.bf16.msra.mxu0 %v923
    %2397 = vmatpush.bf16.msra.mxu0 %v915
    %2398 = vmatmul.bf16.gmra.mxu0 %v2207
    %v2399 = vpop.f32.mrf.mxu0
    %v2400 = vadd.f32 0.0, %v2399
    %v2401 = vpop.f32.mrf.mxu0
    %2402 = vdwg.mxu0
    %2403 = vmatpush.bf16.msra.mxu0 %v1035
    %2404 = vmatpush.bf16.msra.mxu0 %v1027
    %2405 = vmatpush.bf16.msra.mxu0 %v1019
    %2406 = vmatpush.bf16.msra.mxu0 %v1011
    %2407 = vmatpush.bf16.msra.mxu0 %v1003
    %2408 = vmatpush.bf16.msra.mxu0 %v995
    %2409 = vmatpush.bf16.msra.mxu0 %v987
    %2410 = vmatpush.bf16.msra.mxu0 %v979
    %2411 = vmatmul.bf16.gmra.mxu0 %v2135
    %v2412 = vpop.f32.mrf.mxu0
    %v2413 = vadd.f32 %v2400, %v2412
    %v2414 = vpop.f32.mrf.mxu0
    %2415 = vdwg.mxu0
    %v2416 = vadd.f32 %v2335, %v448
    %v2417 = vadd.f32 %v2361, %v449
    %v2418 = vadd.f32 %v2387, %v450
    %v2419 = vadd.f32 %v2413, %v451
    %v2420 = vxor.u32 %v2416, 2147483648
    %v2421 = vmul.f32 %v2420, 1.442695
    %v2422 = vpow.pop %v2421
    %v2423 = vadd.f32 %v2422, 1.0
    %v2424 = vrcp.pop %v2423
    %v2425 = vmul.f32 %v2423, %v2424
    %v2426 = vsub.f32 1.0, %v2425
    %v2427 = vmul.f32 %v2424, %v2426
    %v2428 = vadd.f32 %v2424, %v2427
    %vm2429 = vweird.f32 %v2423
    %vm2430 = vweird.f32 %v2424
    %vm2431 = vmor %vm2429, %vm2430
    %v2432 = vsel %vm2431, %v2424, %v2428
    %v2433 = vand.u32 2147483647, %v2423
    %vm2434 = vcmp.eq.f32.partialorder %v2433, 8.507059e+37
    %v2435 = vand.u32 %v2423, 2147483648
    %v2436 = vor.u32 1.1754944e-38, %v2435
    %v2437 = vsel %vm2434, %v2436, %v2432
    %v2438 = vmul.f32 1.0, %v2437
    %v2439 = vxor.u32 %v2417, 2147483648
    %v2440 = vmul.f32 %v2439, 1.442695
    %v2441 = vpow.pop %v2440
    %v2442 = vadd.f32 %v2441, 1.0
    %v2443 = vrcp.pop %v2442
    %v2444 = vmul.f32 %v2442, %v2443
    %v2445 = vsub.f32 1.0, %v2444
    %v2446 = vmul.f32 %v2443, %v2445
    %v2447 = vadd.f32 %v2443, %v2446
    %vm2448 = vweird.f32 %v2442
    %vm2449 = vweird.f32 %v2443
    %vm2450 = vmor %vm2448, %vm2449
    %v2451 = vsel %vm2450, %v2443, %v2447
    %v2452 = vand.u32 2147483647, %v2442
    %vm2453 = vcmp.eq.f32.partialorder %v2452, 8.507059e+37
    %v2454 = vand.u32 %v2442, 2147483648
    %v2455 = vor.u32 1.1754944e-38, %v2454
    %v2456 = vsel %vm2453, %v2455, %v2451
    %v2457 = vmul.f32 1.0, %v2456
    %v2458 = vtanh.pop %v2418
    %v2459 = vxor.u32 %v2419, 2147483648
    %v2460 = vmul.f32 %v2459, 1.442695
    %v2461 = vpow.pop %v2460
    %v2462 = vadd.f32 %v2461, 1.0
    %v2463 = vrcp.pop %v2462
    %v2464 = vmul.f32 %v2462, %v2463
    %v2465 = vsub.f32 1.0, %v2464
    %v2466 = vmul.f32 %v2463, %v2465
    %v2467 = vadd.f32 %v2463, %v2466
    %vm2468 = vweird.f32 %v2462
    %vm2469 = vweird.f32 %v2463
    %vm2470 = vmor %vm2468, %vm2469
    %v2471 = vsel %vm2470, %v2463, %v2467
    %v2472 = vand.u32 2147483647, %v2462
    %vm2473 = vcmp.eq.f32.partialorder %v2472, 8.507059e+37
    %v2474 = vand.u32 %v2462, 2147483648
    %v2475 = vor.u32 1.1754944e-38, %v2474
    %v2476 = vsel %vm2473, %v2475, %v2471
    %v2477 = vmul.f32 1.0, %v2476
    %v2478 = vmul.f32 %v2457, %v2132
    %v2479 = vmul.f32 %v2438, %v2458
    %v2480 = vadd.f32 %v2478, %v2479
    %v2481 = vtanh.pop %v2480
    %v2482 = vmul.f32 %v2477, %v2481
    %v2483 = vpack.c.bf16 %v2482, %v2482
    %v2484 = vld [vmem:[#allocation2 + $0x80] sm:$0xff]
    %v2485 = vld [vmem:[#allocation2 + $0x88] sm:$0xff]
    %v2486 = vld [vmem:[#allocation2 + $0x90] sm:$0xff]
    %v2487 = vld [vmem:[#allocation2 + $0x98] sm:$0xff]
    %v2488 = vadd.f32 %v2484, %v2231
    %v2489 = vadd.f32 %v2485, %v2257
    %v2490 = vadd.f32 %v2486, %v2283
    %v2491 = vadd.f32 %v2487, %v2309
    %v2492 = vxor.u32 %v2488, 2147483648
    %v2493 = vmul.f32 %v2492, 1.442695
    %v2494 = vpow.pop %v2493
    %v2495 = vadd.f32 %v2494, 1.0
    %v2496 = vrcp.pop %v2495
    %v2497 = vmul.f32 %v2495, %v2496
    %v2498 = vsub.f32 1.0, %v2497
    %v2499 = vmul.f32 %v2496, %v2498
    %v2500 = vadd.f32 %v2496, %v2499
    %vm2501 = vweird.f32 %v2495
    %vm2502 = vweird.f32 %v2496
    %vm2503 = vmor %vm2501, %vm2502
    %v2504 = vsel %vm2503, %v2496, %v2500
    %v2505 = vand.u32 2147483647, %v2495
    %vm2506 = vcmp.eq.f32.partialorder %v2505, 8.507059e+37
    %v2507 = vand.u32 %v2495, 2147483648
    %v2508 = vor.u32 1.1754944e-38, %v2507
    %v2509 = vsel %vm2506, %v2508, %v2504
    %v2510 = vmul.f32 1.0, %v2509
    %v2511 = vxor.u32 %v2489, 2147483648
    %v2512 = vmul.f32 %v2511, 1.442695
    %v2513 = vpow.pop %v2512
    %v2514 = vadd.f32 %v2513, 1.0
    %v2515 = vrcp.pop %v2514
    %v2516 = vmul.f32 %v2514, %v2515
    %v2517 = vsub.f32 1.0, %v2516
    %v2518 = vmul.f32 %v2515, %v2517
    %v2519 = vadd.f32 %v2515, %v2518
    %vm2520 = vweird.f32 %v2514
    %vm2521 = vweird.f32 %v2515
    %vm2522 = vmor %vm2520, %vm2521
    %v2523 = vsel %vm2522, %v2515, %v2519
    %v2524 = vand.u32 2147483647, %v2514
    %vm2525 = vcmp.eq.f32.partialorder %v2524, 8.507059e+37
    %v2526 = vand.u32 %v2514, 2147483648
    %v2527 = vor.u32 1.1754944e-38, %v2526
    %v2528 = vsel %vm2525, %v2527, %v2523
    %v2529 = vmul.f32 1.0, %v2528
    %v2530 = vtanh.pop %v2490
    %v2531 = vxor.u32 %v2491, 2147483648
    %v2532 = vmul.f32 %v2531, 1.442695
    %v2533 = vpow.pop %v2532
    %v2534 = vadd.f32 %v2533, 1.0
    %v2535 = vrcp.pop %v2534
    %v2536 = vmul.f32 %v2534, %v2535
    %v2537 = vsub.f32 1.0, %v2536
    %v2538 = vmul.f32 %v2535, %v2537
    %v2539 = vadd.f32 %v2535, %v2538
    %vm2540 = vweird.f32 %v2534
    %vm2541 = vweird.f32 %v2535
    %vm2542 = vmor %vm2540, %vm2541
    %v2543 = vsel %vm2542, %v2535, %v2539
    %v2544 = vand.u32 2147483647, %v2534
    %vm2545 = vcmp.eq.f32.partialorder %v2544, 8.507059e+37
    %v2546 = vand.u32 %v2534, 2147483648
    %v2547 = vor.u32 1.1754944e-38, %v2546
    %v2548 = vsel %vm2545, %v2547, %v2543
    %v2549 = vmul.f32 1.0, %v2548
    %v2550 = vmul.f32 %v2529, %v2204
    %v2551 = vmul.f32 %v2510, %v2530
    %v2552 = vadd.f32 %v2550, %v2551
    %v2553 = vtanh.pop %v2552
    %v2554 = vmul.f32 %v2549, %v2553
    %v2555 = vpack.c.bf16 %v2554, %v2554
    %2556 = vmatpush.bf16.msra.mxu0 %v964
    %2557 = vmatpush.bf16.msra.mxu0 %v956
    %2558 = vmatpush.bf16.msra.mxu0 %v948
    %2559 = vmatpush.bf16.msra.mxu0 %v940
    %2560 = vmatpush.bf16.msra.mxu0 %v932
    %2561 = vmatpush.bf16.msra.mxu0 %v924
    %2562 = vmatpush.bf16.msra.mxu0 %v916
    %2563 = vmatpush.bf16.msra.mxu0 %v908
    %2564 = vmatmul.bf16.gmra.mxu0 %v2555
    %v2565 = vpop.f32.mrf.mxu0
    %v2566 = vadd.f32 0.0, %v2565
    %v2567 = vpop.f32.mrf.mxu0
    %2568 = vdwg.mxu0
    %2569 = vmatpush.bf16.msra.mxu0 %v1028
    %2570 = vmatpush.bf16.msra.mxu0 %v1020
    %2571 = vmatpush.bf16.msra.mxu0 %v1012
    %2572 = vmatpush.bf16.msra.mxu0 %v1004
    %2573 = vmatpush.bf16.msra.mxu0 %v996
    %2574 = vmatpush.bf16.msra.mxu0 %v988
    %2575 = vmatpush.bf16.msra.mxu0 %v980
    %2576 = vmatpush.bf16.msra.mxu0 %v972
    %2577 = vmatmul.bf16.gmra.mxu0 %v2483
    %v2578 = vpop.f32.mrf.mxu0
    %v2579 = vadd.f32 %v2566, %v2578
    %v2580 = vpop.f32.mrf.mxu0
    %2581 = vdwg.mxu0
    %2582 = vmatpush.bf16.msra.mxu0 %v965
    %2583 = vmatpush.bf16.msra.mxu0 %v957
    %2584 = vmatpush.bf16.msra.mxu0 %v949
    %2585 = vmatpush.bf16.msra.mxu0 %v941
    %2586 = vmatpush.bf16.msra.mxu0 %v933
    %2587 = vmatpush.bf16.msra.mxu0 %v925
    %2588 = vmatpush.bf16.msra.mxu0 %v917
    %2589 = vmatpush.bf16.msra.mxu0 %v909
    %2590 = vmatmul.bf16.gmra.mxu0 %v2555
    %v2591 = vpop.f32.mrf.mxu0
    %v2592 = vadd.f32 0.0, %v2591
    %v2593 = vpop.f32.mrf.mxu0
    %2594 = vdwg.mxu0
    %2595 = vmatpush.bf16.msra.mxu0 %v1029
    %2596 = vmatpush.bf16.msra.mxu0 %v1021
    %2597 = vmatpush.bf16.msra.mxu0 %v1013
    %2598 = vmatpush.bf16.msra.mxu0 %v1005
    %2599 = vmatpush.bf16.msra.mxu0 %v997
    %2600 = vmatpush.bf16.msra.mxu0 %v989
    %2601 = vmatpush.bf16.msra.mxu0 %v981
    %2602 = vmatpush.bf16.msra.mxu0 %v973
    %2603 = vmatmul.bf16.gmra.mxu0 %v2483
    %v2604 = vpop.f32.mrf.mxu0
    %v2605 = vadd.f32 %v2592, %v2604
    %v2606 = vpop.f32.mrf.mxu0
    %2607 = vdwg.mxu0
    %2608 = vmatpush.bf16.msra.mxu0 %v966
    %2609 = vmatpush.bf16.msra.mxu0 %v958
    %2610 = vmatpush.bf16.msra.mxu0 %v950
    %2611 = vmatpush.bf16.msra.mxu0 %v942
    %2612 = vmatpush.bf16.msra.mxu0 %v934
    %2613 = vmatpush.bf16.msra.mxu0 %v926
    %2614 = vmatpush.bf16.msra.mxu0 %v918
    %2615 = vmatpush.bf16.msra.mxu0 %v910
    %2616 = vmatmul.bf16.gmra.mxu0 %v2555
    %v2617 = vpop.f32.mrf.mxu0
    %v2618 = vadd.f32 0.0, %v2617
    %v2619 = vpop.f32.mrf.mxu0
    %2620 = vdwg.mxu0
    %2621 = vmatpush.bf16.msra.mxu0 %v1030
    %2622 = vmatpush.bf16.msra.mxu0 %v1022
    %2623 = vmatpush.bf16.msra.mxu0 %v1014
    %2624 = vmatpush.bf16.msra.mxu0 %v1006
    %2625 = vmatpush.bf16.msra.mxu0 %v998
    %2626 = vmatpush.bf16.msra.mxu0 %v990
    %2627 = vmatpush.bf16.msra.mxu0 %v982
    %2628 = vmatpush.bf16.msra.mxu0 %v974
    %2629 = vmatmul.bf16.gmra.mxu0 %v2483
    %v2630 = vpop.f32.mrf.mxu0
    %v2631 = vadd.f32 %v2618, %v2630
    %v2632 = vpop.f32.mrf.mxu0
    %2633 = vdwg.mxu0
    %2634 = vmatpush.bf16.msra.mxu0 %v967
    %2635 = vmatpush.bf16.msra.mxu0 %v959
    %2636 = vmatpush.bf16.msra.mxu0 %v951
    %2637 = vmatpush.bf16.msra.mxu0 %v943
    %2638 = vmatpush.bf16.msra.mxu0 %v935
    %2639 = vmatpush.bf16.msra.mxu0 %v927
    %2640 = vmatpush.bf16.msra.mxu0 %v919
    %2641 = vmatpush.bf16.msra.mxu0 %v911
    %2642 = vmatmul.bf16.gmra.mxu0 %v2555
    %v2643 = vpop.f32.mrf.mxu0
    %v2644 = vadd.f32 0.0, %v2643
    %v2645 = vpop.f32.mrf.mxu0
    %2646 = vdwg.mxu0
    %2647 = vmatpush.bf16.msra.mxu0 %v1031
    %2648 = vmatpush.bf16.msra.mxu0 %v1023
    %2649 = vmatpush.bf16.msra.mxu0 %v1015
    %2650 = vmatpush.bf16.msra.mxu0 %v1007
    %2651 = vmatpush.bf16.msra.mxu0 %v999
    %2652 = vmatpush.bf16.msra.mxu0 %v991
    %2653 = vmatpush.bf16.msra.mxu0 %v983
    %2654 = vmatpush.bf16.msra.mxu0 %v975
    %2655 = vmatmul.bf16.gmra.mxu0 %v2483
    %v2656 = vpop.f32.mrf.mxu0
    %v2657 = vadd.f32 %v2644, %v2656
    %v2658 = vpop.f32.mrf.mxu0
    %2659 = vdwg.mxu0
    %2660 = vmatpush.bf16.msra.mxu0 %v968
    %2661 = vmatpush.bf16.msra.mxu0 %v960
    %2662 = vmatpush.bf16.msra.mxu0 %v952
    %2663 = vmatpush.bf16.msra.mxu0 %v944
    %2664 = vmatpush.bf16.msra.mxu0 %v936
    %2665 = vmatpush.bf16.msra.mxu0 %v928
    %2666 = vmatpush.bf16.msra.mxu0 %v920
    %2667 = vmatpush.bf16.msra.mxu0 %v912
    %2668 = vmatmul.bf16.gmra.mxu0 %v2555
    %v2669 = vpop.f32.mrf.mxu0
    %v2670 = vadd.f32 0.0, %v2669
    %v2671 = vpop.f32.mrf.mxu0
    %2672 = vdwg.mxu0
    %2673 = vmatpush.bf16.msra.mxu0 %v1032
    %2674 = vmatpush.bf16.msra.mxu0 %v1024
    %2675 = vmatpush.bf16.msra.mxu0 %v1016
    %2676 = vmatpush.bf16.msra.mxu0 %v1008
    %2677 = vmatpush.bf16.msra.mxu0 %v1000
    %2678 = vmatpush.bf16.msra.mxu0 %v992
    %2679 = vmatpush.bf16.msra.mxu0 %v984
    %2680 = vmatpush.bf16.msra.mxu0 %v976
    %2681 = vmatmul.bf16.gmra.mxu0 %v2483
    %v2682 = vpop.f32.mrf.mxu0
    %v2683 = vadd.f32 %v2670, %v2682
    %v2684 = vpop.f32.mrf.mxu0
    %2685 = vdwg.mxu0
    %2686 = vmatpush.bf16.msra.mxu0 %v969
    %2687 = vmatpush.bf16.msra.mxu0 %v961
    %2688 = vmatpush.bf16.msra.mxu0 %v953
    %2689 = vmatpush.bf16.msra.mxu0 %v945
    %2690 = vmatpush.bf16.msra.mxu0 %v937
    %2691 = vmatpush.bf16.msra.mxu0 %v929
    %2692 = vmatpush.bf16.msra.mxu0 %v921
    %2693 = vmatpush.bf16.msra.mxu0 %v913
    %2694 = vmatmul.bf16.gmra.mxu0 %v2555
    %v2695 = vpop.f32.mrf.mxu0
    %v2696 = vadd.f32 0.0, %v2695
    %v2697 = vpop.f32.mrf.mxu0
    %2698 = vdwg.mxu0
    %2699 = vmatpush.bf16.msra.mxu0 %v1033
    %2700 = vmatpush.bf16.msra.mxu0 %v1025
    %2701 = vmatpush.bf16.msra.mxu0 %v1017
    %2702 = vmatpush.bf16.msra.mxu0 %v1009
    %2703 = vmatpush.bf16.msra.mxu0 %v1001
    %2704 = vmatpush.bf16.msra.mxu0 %v993
    %2705 = vmatpush.bf16.msra.mxu0 %v985
    %2706 = vmatpush.bf16.msra.mxu0 %v977
    %2707 = vmatmul.bf16.gmra.mxu0 %v2483
    %v2708 = vpop.f32.mrf.mxu0
    %v2709 = vadd.f32 %v2696, %v2708
    %v2710 = vpop.f32.mrf.mxu0
    %2711 = vdwg.mxu0
    %2712 = vmatpush.bf16.msra.mxu0 %v970
    %2713 = vmatpush.bf16.msra.mxu0 %v962
    %2714 = vmatpush.bf16.msra.mxu0 %v954
    %2715 = vmatpush.bf16.msra.mxu0 %v946
    %2716 = vmatpush.bf16.msra.mxu0 %v938
    %2717 = vmatpush.bf16.msra.mxu0 %v930
    %2718 = vmatpush.bf16.msra.mxu0 %v922
    %2719 = vmatpush.bf16.msra.mxu0 %v914
    %2720 = vmatmul.bf16.gmra.mxu0 %v2555
    %v2721 = vpop.f32.mrf.mxu0
    %v2722 = vadd.f32 0.0, %v2721
    %v2723 = vpop.f32.mrf.mxu0
    %2724 = vdwg.mxu0
    %2725 = vmatpush.bf16.msra.mxu0 %v1034
    %2726 = vmatpush.bf16.msra.mxu0 %v1026
    %2727 = vmatpush.bf16.msra.mxu0 %v1018
    %2728 = vmatpush.bf16.msra.mxu0 %v1010
    %2729 = vmatpush.bf16.msra.mxu0 %v1002
    %2730 = vmatpush.bf16.msra.mxu0 %v994
    %2731 = vmatpush.bf16.msra.mxu0 %v986
    %2732 = vmatpush.bf16.msra.mxu0 %v978
    %2733 = vmatmul.bf16.gmra.mxu0 %v2483
    %v2734 = vpop.f32.mrf.mxu0
    %v2735 = vadd.f32 %v2722, %v2734
    %v2736 = vpop.f32.mrf.mxu0
    %2737 = vdwg.mxu0
    %2738 = vmatpush.bf16.msra.mxu0 %v971
    %2739 = vmatpush.bf16.msra.mxu0 %v963
    %2740 = vmatpush.bf16.msra.mxu0 %v955
    %2741 = vmatpush.bf16.msra.mxu0 %v947
    %2742 = vmatpush.bf16.msra.mxu0 %v939
    %2743 = vmatpush.bf16.msra.mxu0 %v931
    %2744 = vmatpush.bf16.msra.mxu0 %v923
    %2745 = vmatpush.bf16.msra.mxu0 %v915
    %2746 = vmatmul.bf16.gmra.mxu0 %v2555
    %v2747 = vpop.f32.mrf.mxu0
    %v2748 = vadd.f32 0.0, %v2747
    %v2749 = vpop.f32.mrf.mxu0
    %2750 = vdwg.mxu0
    %2751 = vmatpush.bf16.msra.mxu0 %v1035
    %2752 = vmatpush.bf16.msra.mxu0 %v1027
    %2753 = vmatpush.bf16.msra.mxu0 %v1019
    %2754 = vmatpush.bf16.msra.mxu0 %v1011
    %2755 = vmatpush.bf16.msra.mxu0 %v1003
    %2756 = vmatpush.bf16.msra.mxu0 %v995
    %2757 = vmatpush.bf16.msra.mxu0 %v987
    %2758 = vmatpush.bf16.msra.mxu0 %v979
    %2759 = vmatmul.bf16.gmra.mxu0 %v2483
    %v2760 = vpop.f32.mrf.mxu0
    %v2761 = vadd.f32 %v2748, %v2760
    %v2762 = vpop.f32.mrf.mxu0
    %2763 = vdwg.mxu0
    %v2764 = vadd.f32 %v2683, %v448
    %v2765 = vadd.f32 %v2709, %v449
    %v2766 = vadd.f32 %v2735, %v450
    %v2767 = vadd.f32 %v2761, %v451
    %v2768 = vxor.u32 %v2764, 2147483648
    %v2769 = vmul.f32 %v2768, 1.442695
    %v2770 = vpow.pop %v2769
    %v2771 = vadd.f32 %v2770, 1.0
    %v2772 = vrcp.pop %v2771
    %v2773 = vmul.f32 %v2771, %v2772
    %v2774 = vsub.f32 1.0, %v2773
    %v2775 = vmul.f32 %v2772, %v2774
    %v2776 = vadd.f32 %v2772, %v2775
    %vm2777 = vweird.f32 %v2771
    %vm2778 = vweird.f32 %v2772
    %vm2779 = vmor %vm2777, %vm2778
    %v2780 = vsel %vm2779, %v2772, %v2776
    %v2781 = vand.u32 2147483647, %v2771
    %vm2782 = vcmp.eq.f32.partialorder %v2781, 8.507059e+37
    %v2783 = vand.u32 %v2771, 2147483648
    %v2784 = vor.u32 1.1754944e-38, %v2783
    %v2785 = vsel %vm2782, %v2784, %v2780
    %v2786 = vmul.f32 1.0, %v2785
    %v2787 = vxor.u32 %v2765, 2147483648
    %v2788 = vmul.f32 %v2787, 1.442695
    %v2789 = vpow.pop %v2788
    %v2790 = vadd.f32 %v2789, 1.0
    %v2791 = vrcp.pop %v2790
    %v2792 = vmul.f32 %v2790, %v2791
    %v2793 = vsub.f32 1.0, %v2792
    %v2794 = vmul.f32 %v2791, %v2793
    %v2795 = vadd.f32 %v2791, %v2794
    %vm2796 = vweird.f32 %v2790
    %vm2797 = vweird.f32 %v2791
    %vm2798 = vmor %vm2796, %vm2797
    %v2799 = vsel %vm2798, %v2791, %v2795
    %v2800 = vand.u32 2147483647, %v2790
    %vm2801 = vcmp.eq.f32.partialorder %v2800, 8.507059e+37
    %v2802 = vand.u32 %v2790, 2147483648
    %v2803 = vor.u32 1.1754944e-38, %v2802
    %v2804 = vsel %vm2801, %v2803, %v2799
    %v2805 = vmul.f32 1.0, %v2804
    %v2806 = vtanh.pop %v2766
    %v2807 = vxor.u32 %v2767, 2147483648
    %v2808 = vmul.f32 %v2807, 1.442695
    %v2809 = vpow.pop %v2808
    %v2810 = vadd.f32 %v2809, 1.0
    %v2811 = vrcp.pop %v2810
    %v2812 = vmul.f32 %v2810, %v2811
    %v2813 = vsub.f32 1.0, %v2812
    %v2814 = vmul.f32 %v2811, %v2813
    %v2815 = vadd.f32 %v2811, %v2814
    %vm2816 = vweird.f32 %v2810
    %vm2817 = vweird.f32 %v2811
    %vm2818 = vmor %vm2816, %vm2817
    %v2819 = vsel %vm2818, %v2811, %v2815
    %v2820 = vand.u32 2147483647, %v2810
    %vm2821 = vcmp.eq.f32.partialorder %v2820, 8.507059e+37
    %v2822 = vand.u32 %v2810, 2147483648
    %v2823 = vor.u32 1.1754944e-38, %v2822
    %v2824 = vsel %vm2821, %v2823, %v2819
    %v2825 = vmul.f32 1.0, %v2824
    %v2826 = vmul.f32 %v2805, %v2480
    %v2827 = vmul.f32 %v2786, %v2806
    %v2828 = vadd.f32 %v2826, %v2827
    %v2829 = vtanh.pop %v2828
    %v2830 = vmul.f32 %v2825, %v2829
    %v2831 = vpack.c.bf16 %v2830, %v2830
    %v2832 = vld [vmem:[#allocation2 + $0xa0] sm:$0xff]
    %v2833 = vld [vmem:[#allocation2 + $0xa8] sm:$0xff]
    %v2834 = vld [vmem:[#allocation2 + $0xb0] sm:$0xff]
    %v2835 = vld [vmem:[#allocation2 + $0xb8] sm:$0xff]
    %v2836 = vadd.f32 %v2832, %v2579
    %v2837 = vadd.f32 %v2833, %v2605
    %v2838 = vadd.f32 %v2834, %v2631
    %v2839 = vadd.f32 %v2835, %v2657
    %v2840 = vxor.u32 %v2836, 2147483648
    %v2841 = vmul.f32 %v2840, 1.442695
    %v2842 = vpow.pop %v2841
    %v2843 = vadd.f32 %v2842, 1.0
    %v2844 = vrcp.pop %v2843
    %v2845 = vmul.f32 %v2843, %v2844
    %v2846 = vsub.f32 1.0, %v2845
    %v2847 = vmul.f32 %v2844, %v2846
    %v2848 = vadd.f32 %v2844, %v2847
    %vm2849 = vweird.f32 %v2843
    %vm2850 = vweird.f32 %v2844
    %vm2851 = vmor %vm2849, %vm2850
    %v2852 = vsel %vm2851, %v2844, %v2848
    %v2853 = vand.u32 2147483647, %v2843
    %vm2854 = vcmp.eq.f32.partialorder %v2853, 8.507059e+37
    %v2855 = vand.u32 %v2843, 2147483648
    %v2856 = vor.u32 1.1754944e-38, %v2855
    %v2857 = vsel %vm2854, %v2856, %v2852
    %v2858 = vmul.f32 1.0, %v2857
    %v2859 = vxor.u32 %v2837, 2147483648
    %v2860 = vmul.f32 %v2859, 1.442695
    %v2861 = vpow.pop %v2860
    %v2862 = vadd.f32 %v2861, 1.0
    %v2863 = vrcp.pop %v2862
    %v2864 = vmul.f32 %v2862, %v2863
    %v2865 = vsub.f32 1.0, %v2864
    %v2866 = vmul.f32 %v2863, %v2865
    %v2867 = vadd.f32 %v2863, %v2866
    %vm2868 = vweird.f32 %v2862
    %vm2869 = vweird.f32 %v2863
    %vm2870 = vmor %vm2868, %vm2869
    %v2871 = vsel %vm2870, %v2863, %v2867
    %v2872 = vand.u32 2147483647, %v2862
    %vm2873 = vcmp.eq.f32.partialorder %v2872, 8.507059e+37
    %v2874 = vand.u32 %v2862, 2147483648
    %v2875 = vor.u32 1.1754944e-38, %v2874
    %v2876 = vsel %vm2873, %v2875, %v2871
    %v2877 = vmul.f32 1.0, %v2876
    %v2878 = vtanh.pop %v2838
    %v2879 = vxor.u32 %v2839, 2147483648
    %v2880 = vmul.f32 %v2879, 1.442695
    %v2881 = vpow.pop %v2880
    %v2882 = vadd.f32 %v2881, 1.0
    %v2883 = vrcp.pop %v2882
    %v2884 = vmul.f32 %v2882, %v2883
    %v2885 = vsub.f32 1.0, %v2884
    %v2886 = vmul.f32 %v2883, %v2885
    %v2887 = vadd.f32 %v2883, %v2886
    %vm2888 = vweird.f32 %v2882
    %vm2889 = vweird.f32 %v2883
    %vm2890 = vmor %vm2888, %vm2889
    %v2891 = vsel %vm2890, %v2883, %v2887
    %v2892 = vand.u32 2147483647, %v2882
    %vm2893 = vcmp.eq.f32.partialorder %v2892, 8.507059e+37
    %v2894 = vand.u32 %v2882, 2147483648
    %v2895 = vor.u32 1.1754944e-38, %v2894
    %v2896 = vsel %vm2893, %v2895, %v2891
    %v2897 = vmul.f32 1.0, %v2896
    %v2898 = vmul.f32 %v2877, %v2552
    %v2899 = vmul.f32 %v2858, %v2878
    %v2900 = vadd.f32 %v2898, %v2899
    %v2901 = vtanh.pop %v2900
    %v2902 = vmul.f32 %v2897, %v2901
    %v2903 = vpack.c.bf16 %v2902, %v2902
    %2904 = vmatpush.bf16.msra.mxu0 %v964
    %2905 = vmatpush.bf16.msra.mxu0 %v956
    %2906 = vmatpush.bf16.msra.mxu0 %v948
    %2907 = vmatpush.bf16.msra.mxu0 %v940
    %2908 = vmatpush.bf16.msra.mxu0 %v932
    %2909 = vmatpush.bf16.msra.mxu0 %v924
    %2910 = vmatpush.bf16.msra.mxu0 %v916
    %2911 = vmatpush.bf16.msra.mxu0 %v908
    %2912 = vmatmul.bf16.gmra.mxu0 %v2903
    %v2913 = vpop.f32.mrf.mxu0
    %v2914 = vadd.f32 0.0, %v2913
    %v2915 = vpop.f32.mrf.mxu0
    %2916 = vdwg.mxu0
    %2917 = vmatpush.bf16.msra.mxu0 %v1028
    %2918 = vmatpush.bf16.msra.mxu0 %v1020
    %2919 = vmatpush.bf16.msra.mxu0 %v1012
    %2920 = vmatpush.bf16.msra.mxu0 %v1004
    %2921 = vmatpush.bf16.msra.mxu0 %v996
    %2922 = vmatpush.bf16.msra.mxu0 %v988
    %2923 = vmatpush.bf16.msra.mxu0 %v980
    %2924 = vmatpush.bf16.msra.mxu0 %v972
    %2925 = vmatmul.bf16.gmra.mxu0 %v2831
    %v2926 = vpop.f32.mrf.mxu0
    %v2927 = vadd.f32 %v2914, %v2926
    %v2928 = vpop.f32.mrf.mxu0
    %2929 = vdwg.mxu0
    %2930 = vmatpush.bf16.msra.mxu0 %v965
    %2931 = vmatpush.bf16.msra.mxu0 %v957
    %2932 = vmatpush.bf16.msra.mxu0 %v949
    %2933 = vmatpush.bf16.msra.mxu0 %v941
    %2934 = vmatpush.bf16.msra.mxu0 %v933
    %2935 = vmatpush.bf16.msra.mxu0 %v925
    %2936 = vmatpush.bf16.msra.mxu0 %v917
    %2937 = vmatpush.bf16.msra.mxu0 %v909
    %2938 = vmatmul.bf16.gmra.mxu0 %v2903
    %v2939 = vpop.f32.mrf.mxu0
    %v2940 = vadd.f32 0.0, %v2939
    %v2941 = vpop.f32.mrf.mxu0
    %2942 = vdwg.mxu0
    %2943 = vmatpush.bf16.msra.mxu0 %v1029
    %2944 = vmatpush.bf16.msra.mxu0 %v1021
    %2945 = vmatpush.bf16.msra.mxu0 %v1013
    %2946 = vmatpush.bf16.msra.mxu0 %v1005
    %2947 = vmatpush.bf16.msra.mxu0 %v997
    %2948 = vmatpush.bf16.msra.mxu0 %v989
    %2949 = vmatpush.bf16.msra.mxu0 %v981
    %2950 = vmatpush.bf16.msra.mxu0 %v973
    %2951 = vmatmul.bf16.gmra.mxu0 %v2831
    %v2952 = vpop.f32.mrf.mxu0
    %v2953 = vadd.f32 %v2940, %v2952
    %v2954 = vpop.f32.mrf.mxu0
    %2955 = vdwg.mxu0
    %2956 = vmatpush.bf16.msra.mxu0 %v966
    %2957 = vmatpush.bf16.msra.mxu0 %v958
    %2958 = vmatpush.bf16.msra.mxu0 %v950
    %2959 = vmatpush.bf16.msra.mxu0 %v942
    %2960 = vmatpush.bf16.msra.mxu0 %v934
    %2961 = vmatpush.bf16.msra.mxu0 %v926
    %2962 = vmatpush.bf16.msra.mxu0 %v918
    %2963 = vmatpush.bf16.msra.mxu0 %v910
    %2964 = vmatmul.bf16.gmra.mxu0 %v2903
    %v2965 = vpop.f32.mrf.mxu0
    %v2966 = vadd.f32 0.0, %v2965
    %v2967 = vpop.f32.mrf.mxu0
    %2968 = vdwg.mxu0
    %2969 = vmatpush.bf16.msra.mxu0 %v1030
    %2970 = vmatpush.bf16.msra.mxu0 %v1022
    %2971 = vmatpush.bf16.msra.mxu0 %v1014
    %2972 = vmatpush.bf16.msra.mxu0 %v1006
    %2973 = vmatpush.bf16.msra.mxu0 %v998
    %2974 = vmatpush.bf16.msra.mxu0 %v990
    %2975 = vmatpush.bf16.msra.mxu0 %v982
    %2976 = vmatpush.bf16.msra.mxu0 %v974
    %2977 = vmatmul.bf16.gmra.mxu0 %v2831
    %v2978 = vpop.f32.mrf.mxu0
    %v2979 = vadd.f32 %v2966, %v2978
    %v2980 = vpop.f32.mrf.mxu0
    %2981 = vdwg.mxu0
    %2982 = vmatpush.bf16.msra.mxu0 %v967
    %2983 = vmatpush.bf16.msra.mxu0 %v959
    %2984 = vmatpush.bf16.msra.mxu0 %v951
    %2985 = vmatpush.bf16.msra.mxu0 %v943
    %2986 = vmatpush.bf16.msra.mxu0 %v935
    %2987 = vmatpush.bf16.msra.mxu0 %v927
    %2988 = vmatpush.bf16.msra.mxu0 %v919
    %2989 = vmatpush.bf16.msra.mxu0 %v911
    %2990 = vmatmul.bf16.gmra.mxu0 %v2903
    %v2991 = vpop.f32.mrf.mxu0
    %v2992 = vadd.f32 0.0, %v2991
    %v2993 = vpop.f32.mrf.mxu0
    %2994 = vdwg.mxu0
    %2995 = vmatpush.bf16.msra.mxu0 %v1031
    %2996 = vmatpush.bf16.msra.mxu0 %v1023
    %2997 = vmatpush.bf16.msra.mxu0 %v1015
    %2998 = vmatpush.bf16.msra.mxu0 %v1007
    %2999 = vmatpush.bf16.msra.mxu0 %v999
    %3000 = vmatpush.bf16.msra.mxu0 %v991
    %3001 = vmatpush.bf16.msra.mxu0 %v983
    %3002 = vmatpush.bf16.msra.mxu0 %v975
    %3003 = vmatmul.bf16.gmra.mxu0 %v2831
    %v3004 = vpop.f32.mrf.mxu0
    %v3005 = vadd.f32 %v2992, %v3004
    %v3006 = vpop.f32.mrf.mxu0
    %3007 = vdwg.mxu0
    %3008 = vmatpush.bf16.msra.mxu0 %v968
    %3009 = vmatpush.bf16.msra.mxu0 %v960
    %3010 = vmatpush.bf16.msra.mxu0 %v952
    %3011 = vmatpush.bf16.msra.mxu0 %v944
    %3012 = vmatpush.bf16.msra.mxu0 %v936
    %3013 = vmatpush.bf16.msra.mxu0 %v928
    %3014 = vmatpush.bf16.msra.mxu0 %v920
    %3015 = vmatpush.bf16.msra.mxu0 %v912
    %3016 = vmatmul.bf16.gmra.mxu0 %v2903
    %v3017 = vpop.f32.mrf.mxu0
    %v3018 = vadd.f32 0.0, %v3017
    %v3019 = vpop.f32.mrf.mxu0
    %3020 = vdwg.mxu0
    %3021 = vmatpush.bf16.msra.mxu0 %v1032
    %3022 = vmatpush.bf16.msra.mxu0 %v1024
    %3023 = vmatpush.bf16.msra.mxu0 %v1016
    %3024 = vmatpush.bf16.msra.mxu0 %v1008
    %3025 = vmatpush.bf16.msra.mxu0 %v1000
    %3026 = vmatpush.bf16.msra.mxu0 %v992
    %3027 = vmatpush.bf16.msra.mxu0 %v984
    %3028 = vmatpush.bf16.msra.mxu0 %v976
    %3029 = vmatmul.bf16.gmra.mxu0 %v2831
    %v3030 = vpop.f32.mrf.mxu0
    %v3031 = vadd.f32 %v3018, %v3030
    %v3032 = vpop.f32.mrf.mxu0
    %3033 = vdwg.mxu0
    %3034 = vmatpush.bf16.msra.mxu0 %v969
    %3035 = vmatpush.bf16.msra.mxu0 %v961
    %3036 = vmatpush.bf16.msra.mxu0 %v953
    %3037 = vmatpush.bf16.msra.mxu0 %v945
    %3038 = vmatpush.bf16.msra.mxu0 %v937
    %3039 = vmatpush.bf16.msra.mxu0 %v929
    %3040 = vmatpush.bf16.msra.mxu0 %v921
    %3041 = vmatpush.bf16.msra.mxu0 %v913
    %3042 = vmatmul.bf16.gmra.mxu0 %v2903
    %v3043 = vpop.f32.mrf.mxu0
    %v3044 = vadd.f32 0.0, %v3043
    %v3045 = vpop.f32.mrf.mxu0
    %3046 = vdwg.mxu0
    %3047 = vmatpush.bf16.msra.mxu0 %v1033
    %3048 = vmatpush.bf16.msra.mxu0 %v1025
    %3049 = vmatpush.bf16.msra.mxu0 %v1017
    %3050 = vmatpush.bf16.msra.mxu0 %v1009
    %3051 = vmatpush.bf16.msra.mxu0 %v1001
    %3052 = vmatpush.bf16.msra.mxu0 %v993
    %3053 = vmatpush.bf16.msra.mxu0 %v985
    %3054 = vmatpush.bf16.msra.mxu0 %v977
    %3055 = vmatmul.bf16.gmra.mxu0 %v2831
    %v3056 = vpop.f32.mrf.mxu0
    %v3057 = vadd.f32 %v3044, %v3056
    %v3058 = vpop.f32.mrf.mxu0
    %3059 = vdwg.mxu0
    %3060 = vmatpush.bf16.msra.mxu0 %v970
    %3061 = vmatpush.bf16.msra.mxu0 %v962
    %3062 = vmatpush.bf16.msra.mxu0 %v954
    %3063 = vmatpush.bf16.msra.mxu0 %v946
    %3064 = vmatpush.bf16.msra.mxu0 %v938
    %3065 = vmatpush.bf16.msra.mxu0 %v930
    %3066 = vmatpush.bf16.msra.mxu0 %v922
    %3067 = vmatpush.bf16.msra.mxu0 %v914
    %3068 = vmatmul.bf16.gmra.mxu0 %v2903
    %v3069 = vpop.f32.mrf.mxu0
    %v3070 = vadd.f32 0.0, %v3069
    %v3071 = vpop.f32.mrf.mxu0
    %3072 = vdwg.mxu0
    %3073 = vmatpush.bf16.msra.mxu0 %v1034
    %3074 = vmatpush.bf16.msra.mxu0 %v1026
    %3075 = vmatpush.bf16.msra.mxu0 %v1018
    %3076 = vmatpush.bf16.msra.mxu0 %v1010
    %3077 = vmatpush.bf16.msra.mxu0 %v1002
    %3078 = vmatpush.bf16.msra.mxu0 %v994
    %3079 = vmatpush.bf16.msra.mxu0 %v986
    %3080 = vmatpush.bf16.msra.mxu0 %v978
    %3081 = vmatmul.bf16.gmra.mxu0 %v2831
    %v3082 = vpop.f32.mrf.mxu0
    %v3083 = vadd.f32 %v3070, %v3082
    %v3084 = vpop.f32.mrf.mxu0
    %3085 = vdwg.mxu0
    %3086 = vmatpush.bf16.msra.mxu0 %v971
    %3087 = vmatpush.bf16.msra.mxu0 %v963
    %3088 = vmatpush.bf16.msra.mxu0 %v955
    %3089 = vmatpush.bf16.msra.mxu0 %v947
    %3090 = vmatpush.bf16.msra.mxu0 %v939
    %3091 = vmatpush.bf16.msra.mxu0 %v931
    %3092 = vmatpush.bf16.msra.mxu0 %v923
    %3093 = vmatpush.bf16.msra.mxu0 %v915
    %3094 = vmatmul.bf16.gmra.mxu0 %v2903
    %v3095 = vpop.f32.mrf.mxu0
    %v3096 = vadd.f32 0.0, %v3095
    %v3097 = vpop.f32.mrf.mxu0
    %3098 = vdwg.mxu0
    %3099 = vmatpush.bf16.msra.mxu0 %v1035
    %3100 = vmatpush.bf16.msra.mxu0 %v1027
    %3101 = vmatpush.bf16.msra.mxu0 %v1019
    %3102 = vmatpush.bf16.msra.mxu0 %v1011
    %3103 = vmatpush.bf16.msra.mxu0 %v1003
    %3104 = vmatpush.bf16.msra.mxu0 %v995
    %3105 = vmatpush.bf16.msra.mxu0 %v987
    %3106 = vmatpush.bf16.msra.mxu0 %v979
    %3107 = vmatmul.bf16.gmra.mxu0 %v2831
    %v3108 = vpop.f32.mrf.mxu0
    %v3109 = vadd.f32 %v3096, %v3108
    %v3110 = vpop.f32.mrf.mxu0
    %3111 = vdwg.mxu0
    %v3112 = vadd.f32 %v3031, %v448
    %v3113 = vadd.f32 %v3057, %v449
    %v3114 = vadd.f32 %v3083, %v450
    %v3115 = vadd.f32 %v3109, %v451
    %v3116 = vxor.u32 %v3112, 2147483648
    %v3117 = vmul.f32 %v3116, 1.442695
    %v3118 = vpow.pop %v3117
    %v3119 = vadd.f32 %v3118, 1.0
    %v3120 = vrcp.pop %v3119
    %v3121 = vmul.f32 %v3119, %v3120
    %v3122 = vsub.f32 1.0, %v3121
    %v3123 = vmul.f32 %v3120, %v3122
    %v3124 = vadd.f32 %v3120, %v3123
    %vm3125 = vweird.f32 %v3119
    %vm3126 = vweird.f32 %v3120
    %vm3127 = vmor %vm3125, %vm3126
    %v3128 = vsel %vm3127, %v3120, %v3124
    %v3129 = vand.u32 2147483647, %v3119
    %vm3130 = vcmp.eq.f32.partialorder %v3129, 8.507059e+37
    %v3131 = vand.u32 %v3119, 2147483648
    %v3132 = vor.u32 1.1754944e-38, %v3131
    %v3133 = vsel %vm3130, %v3132, %v3128
    %v3134 = vmul.f32 1.0, %v3133
    %v3135 = vxor.u32 %v3113, 2147483648
    %v3136 = vmul.f32 %v3135, 1.442695
    %v3137 = vpow.pop %v3136
    %v3138 = vadd.f32 %v3137, 1.0
    %v3139 = vrcp.pop %v3138
    %v3140 = vmul.f32 %v3138, %v3139
    %v3141 = vsub.f32 1.0, %v3140
    %v3142 = vmul.f32 %v3139, %v3141
    %v3143 = vadd.f32 %v3139, %v3142
    %vm3144 = vweird.f32 %v3138
    %vm3145 = vweird.f32 %v3139
    %vm3146 = vmor %vm3144, %vm3145
    %v3147 = vsel %vm3146, %v3139, %v3143
    %v3148 = vand.u32 2147483647, %v3138
    %vm3149 = vcmp.eq.f32.partialorder %v3148, 8.507059e+37
    %v3150 = vand.u32 %v3138, 2147483648
    %v3151 = vor.u32 1.1754944e-38, %v3150
    %v3152 = vsel %vm3149, %v3151, %v3147
    %v3153 = vmul.f32 1.0, %v3152
    %v3154 = vtanh.pop %v3114
    %v3155 = vxor.u32 %v3115, 2147483648
    %v3156 = vmul.f32 %v3155, 1.442695
    %v3157 = vpow.pop %v3156
    %v3158 = vadd.f32 %v3157, 1.0
    %v3159 = vrcp.pop %v3158
    %v3160 = vmul.f32 %v3158, %v3159
    %v3161 = vsub.f32 1.0, %v3160
    %v3162 = vmul.f32 %v3159, %v3161
    %v3163 = vadd.f32 %v3159, %v3162
    %vm3164 = vweird.f32 %v3158
    %vm3165 = vweird.f32 %v3159
    %vm3166 = vmor %vm3164, %vm3165
    %v3167 = vsel %vm3166, %v3159, %v3163
    %v3168 = vand.u32 2147483647, %v3158
    %vm3169 = vcmp.eq.f32.partialorder %v3168, 8.507059e+37
    %v3170 = vand.u32 %v3158, 2147483648
    %v3171 = vor.u32 1.1754944e-38, %v3170
    %v3172 = vsel %vm3169, %v3171, %v3167
    %v3173 = vmul.f32 1.0, %v3172
    %v3174 = vmul.f32 %v3153, %v2828
    %v3175 = vmul.f32 %v3134, %v3154
    %v3176 = vadd.f32 %v3174, %v3175
    %v3177 = vtanh.pop %v3176
    %v3178 = vmul.f32 %v3173, %v3177
    %v3179 = vpack.c.bf16 %v3178, %v3178
    %v3180 = vld [vmem:[#allocation2 + $0xc0] sm:$0xff]
    %v3181 = vld [vmem:[#allocation2 + $0xc8] sm:$0xff]
    %v3182 = vld [vmem:[#allocation2 + $0xd0] sm:$0xff]
    %v3183 = vld [vmem:[#allocation2 + $0xd8] sm:$0xff]
    %v3184 = vadd.f32 %v3180, %v2927
    %v3185 = vadd.f32 %v3181, %v2953
    %v3186 = vadd.f32 %v3182, %v2979
    %v3187 = vadd.f32 %v3183, %v3005
    %v3188 = vxor.u32 %v3184, 2147483648
    %v3189 = vmul.f32 %v3188, 1.442695
    %v3190 = vpow.pop %v3189
    %v3191 = vadd.f32 %v3190, 1.0
    %v3192 = vrcp.pop %v3191
    %v3193 = vmul.f32 %v3191, %v3192
    %v3194 = vsub.f32 1.0, %v3193
    %v3195 = vmul.f32 %v3192, %v3194
    %v3196 = vadd.f32 %v3192, %v3195
    %vm3197 = vweird.f32 %v3191
    %vm3198 = vweird.f32 %v3192
    %vm3199 = vmor %vm3197, %vm3198
    %v3200 = vsel %vm3199, %v3192, %v3196
    %v3201 = vand.u32 2147483647, %v3191
    %vm3202 = vcmp.eq.f32.partialorder %v3201, 8.507059e+37
    %v3203 = vand.u32 %v3191, 2147483648
    %v3204 = vor.u32 1.1754944e-38, %v3203
    %v3205 = vsel %vm3202, %v3204, %v3200
    %v3206 = vmul.f32 1.0, %v3205
    %v3207 = vxor.u32 %v3185, 2147483648
    %v3208 = vmul.f32 %v3207, 1.442695
    %v3209 = vpow.pop %v3208
    %v3210 = vadd.f32 %v3209, 1.0
    %v3211 = vrcp.pop %v3210
    %v3212 = vmul.f32 %v3210, %v3211
    %v3213 = vsub.f32 1.0, %v3212
    %v3214 = vmul.f32 %v3211, %v3213
    %v3215 = vadd.f32 %v3211, %v3214
    %vm3216 = vweird.f32 %v3210
    %vm3217 = vweird.f32 %v3211
    %vm3218 = vmor %vm3216, %vm3217
    %v3219 = vsel %vm3218, %v3211, %v3215
    %v3220 = vand.u32 2147483647, %v3210
    %vm3221 = vcmp.eq.f32.partialorder %v3220, 8.507059e+37
    %v3222 = vand.u32 %v3210, 2147483648
    %v3223 = vor.u32 1.1754944e-38, %v3222
    %v3224 = vsel %vm3221, %v3223, %v3219
    %v3225 = vmul.f32 1.0, %v3224
    %v3226 = vtanh.pop %v3186
    %v3227 = vxor.u32 %v3187, 2147483648
    %v3228 = vmul.f32 %v3227, 1.442695
    %v3229 = vpow.pop %v3228
    %v3230 = vadd.f32 %v3229, 1.0
    %v3231 = vrcp.pop %v3230
    %v3232 = vmul.f32 %v3230, %v3231
    %v3233 = vsub.f32 1.0, %v3232
    %v3234 = vmul.f32 %v3231, %v3233
    %v3235 = vadd.f32 %v3231, %v3234
    %vm3236 = vweird.f32 %v3230
    %vm3237 = vweird.f32 %v3231
    %vm3238 = vmor %vm3236, %vm3237
    %v3239 = vsel %vm3238, %v3231, %v3235
    %v3240 = vand.u32 2147483647, %v3230
    %vm3241 = vcmp.eq.f32.partialorder %v3240, 8.507059e+37
    %v3242 = vand.u32 %v3230, 2147483648
    %v3243 = vor.u32 1.1754944e-38, %v3242
    %v3244 = vsel %vm3241, %v3243, %v3239
    %v3245 = vmul.f32 1.0, %v3244
    %v3246 = vmul.f32 %v3225, %v2900
    %v3247 = vmul.f32 %v3206, %v3226
    %v3248 = vadd.f32 %v3246, %v3247
    %v3249 = vtanh.pop %v3248
    %v3250 = vmul.f32 %v3245, %v3249
    %v3251 = vpack.c.bf16 %v3250, %v3250
    %3252 = vmatpush.bf16.msra.mxu0 %v964
    %3253 = vmatpush.bf16.msra.mxu0 %v956
    %3254 = vmatpush.bf16.msra.mxu0 %v948
    %3255 = vmatpush.bf16.msra.mxu0 %v940
    %3256 = vmatpush.bf16.msra.mxu0 %v932
    %3257 = vmatpush.bf16.msra.mxu0 %v924
    %3258 = vmatpush.bf16.msra.mxu0 %v916
    %3259 = vmatpush.bf16.msra.mxu0 %v908
    %3260 = vmatmul.bf16.gmra.mxu0 %v3251
    %v3261 = vpop.f32.mrf.mxu0
    %v3262 = vadd.f32 0.0, %v3261
    %v3263 = vpop.f32.mrf.mxu0
    %3264 = vdwg.mxu0
    %3265 = vmatpush.bf16.msra.mxu0 %v1028
    %3266 = vmatpush.bf16.msra.mxu0 %v1020
    %3267 = vmatpush.bf16.msra.mxu0 %v1012
    %3268 = vmatpush.bf16.msra.mxu0 %v1004
    %3269 = vmatpush.bf16.msra.mxu0 %v996
    %3270 = vmatpush.bf16.msra.mxu0 %v988
    %3271 = vmatpush.bf16.msra.mxu0 %v980
    %3272 = vmatpush.bf16.msra.mxu0 %v972
    %3273 = vmatmul.bf16.gmra.mxu0 %v3179
    %v3274 = vpop.f32.mrf.mxu0
    %v3275 = vadd.f32 %v3262, %v3274
    %v3276 = vpop.f32.mrf.mxu0
    %3277 = vdwg.mxu0
    %3278 = vmatpush.bf16.msra.mxu0 %v965
    %3279 = vmatpush.bf16.msra.mxu0 %v957
    %3280 = vmatpush.bf16.msra.mxu0 %v949
    %3281 = vmatpush.bf16.msra.mxu0 %v941
    %3282 = vmatpush.bf16.msra.mxu0 %v933
    %3283 = vmatpush.bf16.msra.mxu0 %v925
    %3284 = vmatpush.bf16.msra.mxu0 %v917
    %3285 = vmatpush.bf16.msra.mxu0 %v909
    %3286 = vmatmul.bf16.gmra.mxu0 %v3251
    %v3287 = vpop.f32.mrf.mxu0
    %v3288 = vadd.f32 0.0, %v3287
    %v3289 = vpop.f32.mrf.mxu0
    %3290 = vdwg.mxu0
    %3291 = vmatpush.bf16.msra.mxu0 %v1029
    %3292 = vmatpush.bf16.msra.mxu0 %v1021
    %3293 = vmatpush.bf16.msra.mxu0 %v1013
    %3294 = vmatpush.bf16.msra.mxu0 %v1005
    %3295 = vmatpush.bf16.msra.mxu0 %v997
    %3296 = vmatpush.bf16.msra.mxu0 %v989
    %3297 = vmatpush.bf16.msra.mxu0 %v981
    %3298 = vmatpush.bf16.msra.mxu0 %v973
    %3299 = vmatmul.bf16.gmra.mxu0 %v3179
    %v3300 = vpop.f32.mrf.mxu0
    %v3301 = vadd.f32 %v3288, %v3300
    %v3302 = vpop.f32.mrf.mxu0
    %3303 = vdwg.mxu0
    %3304 = vmatpush.bf16.msra.mxu0 %v966
    %3305 = vmatpush.bf16.msra.mxu0 %v958
    %3306 = vmatpush.bf16.msra.mxu0 %v950
    %3307 = vmatpush.bf16.msra.mxu0 %v942
    %3308 = vmatpush.bf16.msra.mxu0 %v934
    %3309 = vmatpush.bf16.msra.mxu0 %v926
    %3310 = vmatpush.bf16.msra.mxu0 %v918
    %3311 = vmatpush.bf16.msra.mxu0 %v910
    %3312 = vmatmul.bf16.gmra.mxu0 %v3251
    %v3313 = vpop.f32.mrf.mxu0
    %v3314 = vadd.f32 0.0, %v3313
    %v3315 = vpop.f32.mrf.mxu0
    %3316 = vdwg.mxu0
    %3317 = vmatpush.bf16.msra.mxu0 %v1030
    %3318 = vmatpush.bf16.msra.mxu0 %v1022
    %3319 = vmatpush.bf16.msra.mxu0 %v1014
    %3320 = vmatpush.bf16.msra.mxu0 %v1006
    %3321 = vmatpush.bf16.msra.mxu0 %v998
    %3322 = vmatpush.bf16.msra.mxu0 %v990
    %3323 = vmatpush.bf16.msra.mxu0 %v982
    %3324 = vmatpush.bf16.msra.mxu0 %v974
    %3325 = vmatmul.bf16.gmra.mxu0 %v3179
    %v3326 = vpop.f32.mrf.mxu0
    %v3327 = vadd.f32 %v3314, %v3326
    %v3328 = vpop.f32.mrf.mxu0
    %3329 = vdwg.mxu0
    %3330 = vmatpush.bf16.msra.mxu0 %v967
    %3331 = vmatpush.bf16.msra.mxu0 %v959
    %3332 = vmatpush.bf16.msra.mxu0 %v951
    %3333 = vmatpush.bf16.msra.mxu0 %v943
    %3334 = vmatpush.bf16.msra.mxu0 %v935
    %3335 = vmatpush.bf16.msra.mxu0 %v927
    %3336 = vmatpush.bf16.msra.mxu0 %v919
    %3337 = vmatpush.bf16.msra.mxu0 %v911
    %3338 = vmatmul.bf16.gmra.mxu0 %v3251
    %v3339 = vpop.f32.mrf.mxu0
    %v3340 = vadd.f32 0.0, %v3339
    %v3341 = vpop.f32.mrf.mxu0
    %3342 = vdwg.mxu0
    %3343 = vmatpush.bf16.msra.mxu0 %v1031
    %3344 = vmatpush.bf16.msra.mxu0 %v1023
    %3345 = vmatpush.bf16.msra.mxu0 %v1015
    %3346 = vmatpush.bf16.msra.mxu0 %v1007
    %3347 = vmatpush.bf16.msra.mxu0 %v999
    %3348 = vmatpush.bf16.msra.mxu0 %v991
    %3349 = vmatpush.bf16.msra.mxu0 %v983
    %3350 = vmatpush.bf16.msra.mxu0 %v975
    %3351 = vmatmul.bf16.gmra.mxu0 %v3179
    %v3352 = vpop.f32.mrf.mxu0
    %v3353 = vadd.f32 %v3340, %v3352
    %v3354 = vpop.f32.mrf.mxu0
    %3355 = vdwg.mxu0
    %3356 = vmatpush.bf16.msra.mxu0 %v968
    %3357 = vmatpush.bf16.msra.mxu0 %v960
    %3358 = vmatpush.bf16.msra.mxu0 %v952
    %3359 = vmatpush.bf16.msra.mxu0 %v944
    %3360 = vmatpush.bf16.msra.mxu0 %v936
    %3361 = vmatpush.bf16.msra.mxu0 %v928
    %3362 = vmatpush.bf16.msra.mxu0 %v920
    %3363 = vmatpush.bf16.msra.mxu0 %v912
    %3364 = vmatmul.bf16.gmra.mxu0 %v3251
    %v3365 = vpop.f32.mrf.mxu0
    %v3366 = vadd.f32 0.0, %v3365
    %v3367 = vpop.f32.mrf.mxu0
    %3368 = vdwg.mxu0
    %3369 = vmatpush.bf16.msra.mxu0 %v1032
    %3370 = vmatpush.bf16.msra.mxu0 %v1024
    %3371 = vmatpush.bf16.msra.mxu0 %v1016
    %3372 = vmatpush.bf16.msra.mxu0 %v1008
    %3373 = vmatpush.bf16.msra.mxu0 %v1000
    %3374 = vmatpush.bf16.msra.mxu0 %v992
    %3375 = vmatpush.bf16.msra.mxu0 %v984
    %3376 = vmatpush.bf16.msra.mxu0 %v976
    %3377 = vmatmul.bf16.gmra.mxu0 %v3179
    %v3378 = vpop.f32.mrf.mxu0
    %v3379 = vadd.f32 %v3366, %v3378
    %v3380 = vpop.f32.mrf.mxu0
    %3381 = vdwg.mxu0
    %3382 = vmatpush.bf16.msra.mxu0 %v969
    %3383 = vmatpush.bf16.msra.mxu0 %v961
    %3384 = vmatpush.bf16.msra.mxu0 %v953
    %3385 = vmatpush.bf16.msra.mxu0 %v945
    %3386 = vmatpush.bf16.msra.mxu0 %v937
    %3387 = vmatpush.bf16.msra.mxu0 %v929
    %3388 = vmatpush.bf16.msra.mxu0 %v921
    %3389 = vmatpush.bf16.msra.mxu0 %v913
    %3390 = vmatmul.bf16.gmra.mxu0 %v3251
    %v3391 = vpop.f32.mrf.mxu0
    %v3392 = vadd.f32 0.0, %v3391
    %v3393 = vpop.f32.mrf.mxu0
    %3394 = vdwg.mxu0
    %3395 = vmatpush.bf16.msra.mxu0 %v1033
    %3396 = vmatpush.bf16.msra.mxu0 %v1025
    %3397 = vmatpush.bf16.msra.mxu0 %v1017
    %3398 = vmatpush.bf16.msra.mxu0 %v1009
    %3399 = vmatpush.bf16.msra.mxu0 %v1001
    %3400 = vmatpush.bf16.msra.mxu0 %v993
    %3401 = vmatpush.bf16.msra.mxu0 %v985
    %3402 = vmatpush.bf16.msra.mxu0 %v977
    %3403 = vmatmul.bf16.gmra.mxu0 %v3179
    %v3404 = vpop.f32.mrf.mxu0
    %v3405 = vadd.f32 %v3392, %v3404
    %v3406 = vpop.f32.mrf.mxu0
    %3407 = vdwg.mxu0
    %3408 = vmatpush.bf16.msra.mxu0 %v970
    %3409 = vmatpush.bf16.msra.mxu0 %v962
    %3410 = vmatpush.bf16.msra.mxu0 %v954
    %3411 = vmatpush.bf16.msra.mxu0 %v946
    %3412 = vmatpush.bf16.msra.mxu0 %v938
    %3413 = vmatpush.bf16.msra.mxu0 %v930
    %3414 = vmatpush.bf16.msra.mxu0 %v922
    %3415 = vmatpush.bf16.msra.mxu0 %v914
    %3416 = vmatmul.bf16.gmra.mxu0 %v3251
    %v3417 = vpop.f32.mrf.mxu0
    %v3418 = vadd.f32 0.0, %v3417
    %v3419 = vpop.f32.mrf.mxu0
    %3420 = vdwg.mxu0
    %3421 = vmatpush.bf16.msra.mxu0 %v1034
    %3422 = vmatpush.bf16.msra.mxu0 %v1026
    %3423 = vmatpush.bf16.msra.mxu0 %v1018
    %3424 = vmatpush.bf16.msra.mxu0 %v1010
    %3425 = vmatpush.bf16.msra.mxu0 %v1002
    %3426 = vmatpush.bf16.msra.mxu0 %v994
    %3427 = vmatpush.bf16.msra.mxu0 %v986
    %3428 = vmatpush.bf16.msra.mxu0 %v978
    %3429 = vmatmul.bf16.gmra.mxu0 %v3179
    %v3430 = vpop.f32.mrf.mxu0
    %v3431 = vadd.f32 %v3418, %v3430
    %v3432 = vpop.f32.mrf.mxu0
    %3433 = vdwg.mxu0
    %3434 = vmatpush.bf16.msra.mxu0 %v971
    %3435 = vmatpush.bf16.msra.mxu0 %v963
    %3436 = vmatpush.bf16.msra.mxu0 %v955
    %3437 = vmatpush.bf16.msra.mxu0 %v947
    %3438 = vmatpush.bf16.msra.mxu0 %v939
    %3439 = vmatpush.bf16.msra.mxu0 %v931
    %3440 = vmatpush.bf16.msra.mxu0 %v923
    %3441 = vmatpush.bf16.msra.mxu0 %v915
    %3442 = vmatmul.bf16.gmra.mxu0 %v3251
    %v3443 = vpop.f32.mrf.mxu0
    %v3444 = vadd.f32 0.0, %v3443
    %v3445 = vpop.f32.mrf.mxu0
    %3446 = vdwg.mxu0
    %3447 = vmatpush.bf16.msra.mxu0 %v1035
    %3448 = vmatpush.bf16.msra.mxu0 %v1027
    %3449 = vmatpush.bf16.msra.mxu0 %v1019
    %3450 = vmatpush.bf16.msra.mxu0 %v1011
    %3451 = vmatpush.bf16.msra.mxu0 %v1003
    %3452 = vmatpush.bf16.msra.mxu0 %v995
    %3453 = vmatpush.bf16.msra.mxu0 %v987
    %3454 = vmatpush.bf16.msra.mxu0 %v979
    %3455 = vmatmul.bf16.gmra.mxu0 %v3179
    %v3456 = vpop.f32.mrf.mxu0
    %v3457 = vadd.f32 %v3444, %v3456
    %v3458 = vpop.f32.mrf.mxu0
    %3459 = vdwg.mxu0
    %v3460 = vadd.f32 %v3379, %v448
    %v3461 = vadd.f32 %v3405, %v449
    %v3462 = vadd.f32 %v3431, %v450
    %v3463 = vadd.f32 %v3457, %v451
    %v3464 = vxor.u32 %v3460, 2147483648
    %v3465 = vmul.f32 %v3464, 1.442695
    %v3466 = vpow.pop %v3465
    %v3467 = vadd.f32 %v3466, 1.0
    %v3468 = vrcp.pop %v3467
    %v3469 = vmul.f32 %v3467, %v3468
    %v3470 = vsub.f32 1.0, %v3469
    %v3471 = vmul.f32 %v3468, %v3470
    %v3472 = vadd.f32 %v3468, %v3471
    %vm3473 = vweird.f32 %v3467
    %vm3474 = vweird.f32 %v3468
    %vm3475 = vmor %vm3473, %vm3474
    %v3476 = vsel %vm3475, %v3468, %v3472
    %v3477 = vand.u32 2147483647, %v3467
    %vm3478 = vcmp.eq.f32.partialorder %v3477, 8.507059e+37
    %v3479 = vand.u32 %v3467, 2147483648
    %v3480 = vor.u32 1.1754944e-38, %v3479
    %v3481 = vsel %vm3478, %v3480, %v3476
    %v3482 = vmul.f32 1.0, %v3481
    %v3483 = vxor.u32 %v3461, 2147483648
    %v3484 = vmul.f32 %v3483, 1.442695
    %v3485 = vpow.pop %v3484
    %v3486 = vadd.f32 %v3485, 1.0
    %v3487 = vrcp.pop %v3486
    %v3488 = vmul.f32 %v3486, %v3487
    %v3489 = vsub.f32 1.0, %v3488
    %v3490 = vmul.f32 %v3487, %v3489
    %v3491 = vadd.f32 %v3487, %v3490
    %vm3492 = vweird.f32 %v3486
    %vm3493 = vweird.f32 %v3487
    %vm3494 = vmor %vm3492, %vm3493
    %v3495 = vsel %vm3494, %v3487, %v3491
    %v3496 = vand.u32 2147483647, %v3486
    %vm3497 = vcmp.eq.f32.partialorder %v3496, 8.507059e+37
    %v3498 = vand.u32 %v3486, 2147483648
    %v3499 = vor.u32 1.1754944e-38, %v3498
    %v3500 = vsel %vm3497, %v3499, %v3495
    %v3501 = vmul.f32 1.0, %v3500
    %v3502 = vtanh.pop %v3462
    %v3503 = vxor.u32 %v3463, 2147483648
    %v3504 = vmul.f32 %v3503, 1.442695
    %v3505 = vpow.pop %v3504
    %v3506 = vadd.f32 %v3505, 1.0
    %v3507 = vrcp.pop %v3506
    %v3508 = vmul.f32 %v3506, %v3507
    %v3509 = vsub.f32 1.0, %v3508
    %v3510 = vmul.f32 %v3507, %v3509
    %v3511 = vadd.f32 %v3507, %v3510
    %vm3512 = vweird.f32 %v3506
    %vm3513 = vweird.f32 %v3507
    %vm3514 = vmor %vm3512, %vm3513
    %v3515 = vsel %vm3514, %v3507, %v3511
    %v3516 = vand.u32 2147483647, %v3506
    %vm3517 = vcmp.eq.f32.partialorder %v3516, 8.507059e+37
    %v3518 = vand.u32 %v3506, 2147483648
    %v3519 = vor.u32 1.1754944e-38, %v3518
    %v3520 = vsel %vm3517, %v3519, %v3515
    %v3521 = vmul.f32 1.0, %v3520
    %v3522 = vmul.f32 %v3501, %v3176
    %v3523 = vmul.f32 %v3482, %v3502
    %v3524 = vadd.f32 %v3522, %v3523
    %v3525 = vtanh.pop %v3524
    %v3526 = vmul.f32 %v3521, %v3525
    %v3527 = vpack.c.bf16 %v3526, %v3526
    %v3528 = vld [vmem:[#allocation2 + $0xe0] sm:$0xff]
    %v3529 = vld [vmem:[#allocation2 + $0xe8] sm:$0xff]
    %v3530 = vld [vmem:[#allocation2 + $0xf0] sm:$0xff]
    %v3531 = vld [vmem:[#allocation2 + $0xf8] sm:$0xff]
    %v3532 = vadd.f32 %v3528, %v3275
    %v3533 = vadd.f32 %v3529, %v3301
    %v3534 = vadd.f32 %v3530, %v3327
    %v3535 = vadd.f32 %v3531, %v3353
    %v3536 = vxor.u32 %v3532, 2147483648
    %v3537 = vmul.f32 %v3536, 1.442695
    %v3538 = vpow.pop %v3537
    %v3539 = vadd.f32 %v3538, 1.0
    %v3540 = vrcp.pop %v3539
    %v3541 = vmul.f32 %v3539, %v3540
    %v3542 = vsub.f32 1.0, %v3541
    %v3543 = vmul.f32 %v3540, %v3542
    %v3544 = vadd.f32 %v3540, %v3543
    %vm3545 = vweird.f32 %v3539
    %vm3546 = vweird.f32 %v3540
    %vm3547 = vmor %vm3545, %vm3546
    %v3548 = vsel %vm3547, %v3540, %v3544
    %v3549 = vand.u32 2147483647, %v3539
    %vm3550 = vcmp.eq.f32.partialorder %v3549, 8.507059e+37
    %v3551 = vand.u32 %v3539, 2147483648
    %v3552 = vor.u32 1.1754944e-38, %v3551
    %v3553 = vsel %vm3550, %v3552, %v3548
    %v3554 = vmul.f32 1.0, %v3553
    %v3555 = vxor.u32 %v3533, 2147483648
    %v3556 = vmul.f32 %v3555, 1.442695
    %v3557 = vpow.pop %v3556
    %v3558 = vadd.f32 %v3557, 1.0
    %v3559 = vrcp.pop %v3558
    %v3560 = vmul.f32 %v3558, %v3559
    %v3561 = vsub.f32 1.0, %v3560
    %v3562 = vmul.f32 %v3559, %v3561
    %v3563 = vadd.f32 %v3559, %v3562
    %vm3564 = vweird.f32 %v3558
    %vm3565 = vweird.f32 %v3559
    %vm3566 = vmor %vm3564, %vm3565
    %v3567 = vsel %vm3566, %v3559, %v3563
    %v3568 = vand.u32 2147483647, %v3558
    %vm3569 = vcmp.eq.f32.partialorder %v3568, 8.507059e+37
    %v3570 = vand.u32 %v3558, 2147483648
    %v3571 = vor.u32 1.1754944e-38, %v3570
    %v3572 = vsel %vm3569, %v3571, %v3567
    %v3573 = vmul.f32 1.0, %v3572
    %v3574 = vtanh.pop %v3534
    %v3575 = vxor.u32 %v3535, 2147483648
    %v3576 = vmul.f32 %v3575, 1.442695
    %v3577 = vpow.pop %v3576
    %v3578 = vadd.f32 %v3577, 1.0
    %v3579 = vrcp.pop %v3578
    %v3580 = vmul.f32 %v3578, %v3579
    %v3581 = vsub.f32 1.0, %v3580
    %v3582 = vmul.f32 %v3579, %v3581
    %v3583 = vadd.f32 %v3579, %v3582
    %vm3584 = vweird.f32 %v3578
    %vm3585 = vweird.f32 %v3579
    %vm3586 = vmor %vm3584, %vm3585
    %v3587 = vsel %vm3586, %v3579, %v3583
    %v3588 = vand.u32 2147483647, %v3578
    %vm3589 = vcmp.eq.f32.partialorder %v3588, 8.507059e+37
    %v3590 = vand.u32 %v3578, 2147483648
    %v3591 = vor.u32 1.1754944e-38, %v3590
    %v3592 = vsel %vm3589, %v3591, %v3587
    %v3593 = vmul.f32 1.0, %v3592
    %v3594 = vmul.f32 %v3573, %v3248
    %v3595 = vmul.f32 %v3554, %v3574
    %v3596 = vadd.f32 %v3594, %v3595
    %v3597 = vtanh.pop %v3596
    %v3598 = vmul.f32 %v3593, %v3597
    %v3599 = vpack.c.bf16 %v3598, %v3598
    %3600 = vmatpush.bf16.msra.mxu0 %v968
    %3601 = vmatpush.bf16.msra.mxu0 %v960
    %3602 = vmatpush.bf16.msra.mxu0 %v952
    %3603 = vmatpush.bf16.msra.mxu0 %v944
    %3604 = vmatpush.bf16.msra.mxu0 %v936
    %3605 = vmatpush.bf16.msra.mxu0 %v928
    %3606 = vmatpush.bf16.msra.mxu0 %v920
    %3607 = vmatpush.bf16.msra.mxu0 %v912
    %3608 = vmatmul.bf16.gmra.mxu0 %v3599
    %v3609 = vpop.f32.mrf.mxu0
    %v3610 = vadd.f32 0.0, %v3609
    %v3611 = vpop.f32.mrf.mxu0
    %3612 = vdwg.mxu0
    %3613 = vmatpush.bf16.msra.mxu0 %v1032
    %3614 = vmatpush.bf16.msra.mxu0 %v1024
    %3615 = vmatpush.bf16.msra.mxu0 %v1016
    %3616 = vmatpush.bf16.msra.mxu0 %v1008
    %3617 = vmatpush.bf16.msra.mxu0 %v1000
    %3618 = vmatpush.bf16.msra.mxu0 %v992
    %3619 = vmatpush.bf16.msra.mxu0 %v984
    %3620 = vmatpush.bf16.msra.mxu0 %v976
    %3621 = vmatmul.bf16.gmra.mxu0 %v3527
    %v3622 = vpop.f32.mrf.mxu0
    %v3623 = vadd.f32 %v3610, %v3622
    %v3624 = vpop.f32.mrf.mxu0
    %3625 = vdwg.mxu0
    %3626 = vmatpush.bf16.msra.mxu0 %v969
    %3627 = vmatpush.bf16.msra.mxu0 %v961
    %3628 = vmatpush.bf16.msra.mxu0 %v953
    %3629 = vmatpush.bf16.msra.mxu0 %v945
    %3630 = vmatpush.bf16.msra.mxu0 %v937
    %3631 = vmatpush.bf16.msra.mxu0 %v929
    %3632 = vmatpush.bf16.msra.mxu0 %v921
    %3633 = vmatpush.bf16.msra.mxu0 %v913
    %3634 = vmatmul.bf16.gmra.mxu0 %v3599
    %v3635 = vpop.f32.mrf.mxu0
    %v3636 = vadd.f32 0.0, %v3635
    %v3637 = vpop.f32.mrf.mxu0
    %3638 = vdwg.mxu0
    %3639 = vmatpush.bf16.msra.mxu0 %v1033
    %3640 = vmatpush.bf16.msra.mxu0 %v1025
    %3641 = vmatpush.bf16.msra.mxu0 %v1017
    %3642 = vmatpush.bf16.msra.mxu0 %v1009
    %3643 = vmatpush.bf16.msra.mxu0 %v1001
    %3644 = vmatpush.bf16.msra.mxu0 %v993
    %3645 = vmatpush.bf16.msra.mxu0 %v985
    %3646 = vmatpush.bf16.msra.mxu0 %v977
    %3647 = vmatmul.bf16.gmra.mxu0 %v3527
    %v3648 = vpop.f32.mrf.mxu0
    %v3649 = vadd.f32 %v3636, %v3648
    %v3650 = vpop.f32.mrf.mxu0
    %3651 = vdwg.mxu0
    %3652 = vmatpush.bf16.msra.mxu0 %v970
    %3653 = vmatpush.bf16.msra.mxu0 %v962
    %3654 = vmatpush.bf16.msra.mxu0 %v954
    %3655 = vmatpush.bf16.msra.mxu0 %v946
    %3656 = vmatpush.bf16.msra.mxu0 %v938
    %3657 = vmatpush.bf16.msra.mxu0 %v930
    %3658 = vmatpush.bf16.msra.mxu0 %v922
    %3659 = vmatpush.bf16.msra.mxu0 %v914
    %3660 = vmatmul.bf16.gmra.mxu0 %v3599
    %v3661 = vpop.f32.mrf.mxu0
    %v3662 = vadd.f32 0.0, %v3661
    %v3663 = vpop.f32.mrf.mxu0
    %3664 = vdwg.mxu0
    %3665 = vmatpush.bf16.msra.mxu0 %v1034
    %3666 = vmatpush.bf16.msra.mxu0 %v1026
    %3667 = vmatpush.bf16.msra.mxu0 %v1018
    %3668 = vmatpush.bf16.msra.mxu0 %v1010
    %3669 = vmatpush.bf16.msra.mxu0 %v1002
    %3670 = vmatpush.bf16.msra.mxu0 %v994
    %3671 = vmatpush.bf16.msra.mxu0 %v986
    %3672 = vmatpush.bf16.msra.mxu0 %v978
    %3673 = vmatmul.bf16.gmra.mxu0 %v3527
    %v3674 = vpop.f32.mrf.mxu0
    %v3675 = vadd.f32 %v3662, %v3674
    %v3676 = vpop.f32.mrf.mxu0
    %3677 = vdwg.mxu0
    %3678 = vmatpush.bf16.msra.mxu0 %v971
    %3679 = vmatpush.bf16.msra.mxu0 %v963
    %3680 = vmatpush.bf16.msra.mxu0 %v955
    %3681 = vmatpush.bf16.msra.mxu0 %v947
    %3682 = vmatpush.bf16.msra.mxu0 %v939
    %3683 = vmatpush.bf16.msra.mxu0 %v931
    %3684 = vmatpush.bf16.msra.mxu0 %v923
    %3685 = vmatpush.bf16.msra.mxu0 %v915
    %3686 = vmatmul.bf16.gmra.mxu0 %v3599
    %v3687 = vpop.f32.mrf.mxu0
    %v3688 = vadd.f32 0.0, %v3687
    %v3689 = vpop.f32.mrf.mxu0
    %3690 = vdwg.mxu0
    %3691 = vmatpush.bf16.msra.mxu0 %v1035
    %3692 = vmatpush.bf16.msra.mxu0 %v1027
    %3693 = vmatpush.bf16.msra.mxu0 %v1019
    %3694 = vmatpush.bf16.msra.mxu0 %v1011
    %3695 = vmatpush.bf16.msra.mxu0 %v1003
    %3696 = vmatpush.bf16.msra.mxu0 %v995
    %3697 = vmatpush.bf16.msra.mxu0 %v987
    %3698 = vmatpush.bf16.msra.mxu0 %v979
    %3699 = vmatmul.bf16.gmra.mxu0 %v3527
    %v3700 = vpop.f32.mrf.mxu0
    %v3701 = vadd.f32 %v3688, %v3700
    %v3702 = vpop.f32.mrf.mxu0
    %3703 = vdwg.mxu0
    %v3704 = vadd.f32 %v3623, %v448
    %v3705 = vadd.f32 %v3649, %v449
    %v3706 = vadd.f32 %v3675, %v450
    %v3707 = vadd.f32 %v3701, %v451
    %v3708 = vxor.u32 %v3704, 2147483648
    %v3709 = vmul.f32 %v3708, 1.442695
    %v3710 = vpow.pop %v3709
    %v3711 = vadd.f32 %v3710, 1.0
    %v3712 = vrcp.pop %v3711
    %v3713 = vmul.f32 %v3711, %v3712
    %v3714 = vsub.f32 1.0, %v3713
    %v3715 = vmul.f32 %v3712, %v3714
    %v3716 = vadd.f32 %v3712, %v3715
    %vm3717 = vweird.f32 %v3711
    %vm3718 = vweird.f32 %v3712
    %vm3719 = vmor %vm3717, %vm3718
    %v3720 = vsel %vm3719, %v3712, %v3716
    %v3721 = vand.u32 2147483647, %v3711
    %vm3722 = vcmp.eq.f32.partialorder %v3721, 8.507059e+37
    %v3723 = vand.u32 %v3711, 2147483648
    %v3724 = vor.u32 1.1754944e-38, %v3723
    %v3725 = vsel %vm3722, %v3724, %v3720
    %v3726 = vmul.f32 1.0, %v3725
    %v3727 = vxor.u32 %v3705, 2147483648
    %v3728 = vmul.f32 %v3727, 1.442695
    %v3729 = vpow.pop %v3728
    %v3730 = vadd.f32 %v3729, 1.0
    %v3731 = vrcp.pop %v3730
    %v3732 = vmul.f32 %v3730, %v3731
    %v3733 = vsub.f32 1.0, %v3732
    %v3734 = vmul.f32 %v3731, %v3733
    %v3735 = vadd.f32 %v3731, %v3734
    %vm3736 = vweird.f32 %v3730
    %vm3737 = vweird.f32 %v3731
    %vm3738 = vmor %vm3736, %vm3737
    %v3739 = vsel %vm3738, %v3731, %v3735
    %v3740 = vand.u32 2147483647, %v3730
    %vm3741 = vcmp.eq.f32.partialorder %v3740, 8.507059e+37
    %v3742 = vand.u32 %v3730, 2147483648
    %v3743 = vor.u32 1.1754944e-38, %v3742
    %v3744 = vsel %vm3741, %v3743, %v3739
    %v3745 = vmul.f32 1.0, %v3744
    %v3746 = vtanh.pop %v3706
    %v3747 = vxor.u32 %v3707, 2147483648
    %v3748 = vmul.f32 %v3747, 1.442695
    %v3749 = vpow.pop %v3748
    %v3750 = vadd.f32 %v3749, 1.0
    %v3751 = vrcp.pop %v3750
    %v3752 = vmul.f32 %v3750, %v3751
    %v3753 = vsub.f32 1.0, %v3752
    %v3754 = vmul.f32 %v3751, %v3753
    %v3755 = vadd.f32 %v3751, %v3754
    %vm3756 = vweird.f32 %v3750
    %vm3757 = vweird.f32 %v3751
    %vm3758 = vmor %vm3756, %vm3757
    %v3759 = vsel %vm3758, %v3751, %v3755
    %v3760 = vand.u32 2147483647, %v3750
    %vm3761 = vcmp.eq.f32.partialorder %v3760, 8.507059e+37
    %v3762 = vand.u32 %v3750, 2147483648
    %v3763 = vor.u32 1.1754944e-38, %v3762
    %v3764 = vsel %vm3761, %v3763, %v3759
    %v3765 = vmul.f32 1.0, %v3764
    %v3766 = vmul.f32 %v3745, %v3524
    %v3767 = vmul.f32 %v3726, %v3746
    %v3768 = vadd.f32 %v3766, %v3767
    %v3769 = vtanh.pop %v3768
    %v3770 = vmul.f32 %v3765, %v3769
    %v3771 = vpack.c.bf16 %v3770, %v3770
    %v3772 = vld [vmem:[#allocation6] sm:$0xff]
    %v3773 = vld [vmem:[#allocation6 + $0x8] sm:$0xff]
    %v3774 = vld [vmem:[#allocation6 + $0x10] sm:$0xff]
    %v3775 = vld [vmem:[#allocation6 + $0x18] sm:$0xff]
    %v3776 = vld [vmem:[#allocation6 + $0x20] sm:$0xff]
    %v3777 = vld [vmem:[#allocation6 + $0x28] sm:$0xff]
    %v3778 = vld [vmem:[#allocation6 + $0x30] sm:$0xff]
    %v3779 = vld [vmem:[#allocation6 + $0x38] sm:$0xff]
    %v3780 = vld [vmem:[#allocation6 + $0x40] sm:$0xff]
    %v3781 = vld [vmem:[#allocation6 + $0x48] sm:$0xff]
    %v3782 = vld [vmem:[#allocation6 + $0x50] sm:$0xff]
    %v3783 = vld [vmem:[#allocation6 + $0x58] sm:$0xff]
    %v3784 = vld [vmem:[#allocation6 + $0x60] sm:$0xff]
    %v3785 = vld [vmem:[#allocation6 + $0x68] sm:$0xff]
    %v3786 = vld [vmem:[#allocation6 + $0x70] sm:$0xff]
    %v3787 = vld [vmem:[#allocation6 + $0x78] sm:$0xff]
    %v3788 = vld [vmem:[#allocation6 + $0x80] sm:$0xff]
    %v3789 = vld [vmem:[#allocation6 + $0x88] sm:$0xff]
    %v3790 = vld [vmem:[#allocation6 + $0x90] sm:$0xff]
    %v3791 = vld [vmem:[#allocation6 + $0x98] sm:$0xff]
    %v3792 = vld [vmem:[#allocation6 + $0xa0] sm:$0xff]
    %v3793 = vld [vmem:[#allocation6 + $0xa8] sm:$0xff]
    %v3794 = vld [vmem:[#allocation6 + $0xb0] sm:$0xff]
    %v3795 = vld [vmem:[#allocation6 + $0xb8] sm:$0xff]
    %v3796 = vld [vmem:[#allocation6 + $0xc0] sm:$0xff]
    %v3797 = vld [vmem:[#allocation6 + $0xc8] sm:$0xff]
    %v3798 = vld [vmem:[#allocation6 + $0xd0] sm:$0xff]
    %v3799 = vld [vmem:[#allocation6 + $0xd8] sm:$0xff]
    %v3800 = vld [vmem:[#allocation6 + $0xe0] sm:$0xff]
    %v3801 = vld [vmem:[#allocation6 + $0xe8] sm:$0xff]
    %v3802 = vld [vmem:[#allocation6 + $0xf0] sm:$0xff]
    %v3803 = vld [vmem:[#allocation6 + $0xf8] sm:$0xff]
    %v3804 = vld [vmem:[%s6] sm:$0xf]
    %v3806 = vperm.slane %v3804, 0
    %v3807 = vperm.slane %v3804, 1
    %v3808 = vperm.slane %v3804, 2
    %v3809 = vperm.slane %v3804, 3
    %v3846 = vunpack.c.l.b16 %v3772
    %v3847 = vunpack.c.h.b16 %v3772
    %v3848 = vunpack.c.l.b16 %v3773
    %v3849 = vunpack.c.h.b16 %v3773
    %v3850 = vunpack.c.l.b16 %v3774
    %v3851 = vunpack.c.h.b16 %v3774
    %v3852 = vunpack.c.l.b16 %v3775
    %v3853 = vunpack.c.h.b16 %v3775
    %v3854 = vunpack.c.l.b16 %v3776
    %v3855 = vunpack.c.h.b16 %v3776
    %v3856 = vunpack.c.l.b16 %v3777
    %v3857 = vunpack.c.h.b16 %v3777
    %v3858 = vunpack.c.l.b16 %v3778
    %v3859 = vunpack.c.h.b16 %v3778
    %v3860 = vunpack.c.l.b16 %v3779
    %v3861 = vunpack.c.h.b16 %v3779
    %v3862 = vunpack.c.l.b16 %v3780
    %v3863 = vunpack.c.h.b16 %v3780
    %v3864 = vunpack.c.l.b16 %v3781
    %v3865 = vunpack.c.h.b16 %v3781
    %v3866 = vunpack.c.l.b16 %v3782
    %v3867 = vunpack.c.h.b16 %v3782
    %v3868 = vunpack.c.l.b16 %v3783
    %v3869 = vunpack.c.h.b16 %v3783
    %v3870 = vunpack.c.l.b16 %v3784
    %v3871 = vunpack.c.h.b16 %v3784
    %v3872 = vunpack.c.l.b16 %v3785
    %v3873 = vunpack.c.h.b16 %v3785
    %v3874 = vunpack.c.l.b16 %v3786
    %v3875 = vunpack.c.h.b16 %v3786
    %v3876 = vunpack.c.l.b16 %v3787
    %v3877 = vunpack.c.h.b16 %v3787
    %v3878 = vunpack.c.l.b16 %v3788
    %v3879 = vunpack.c.h.b16 %v3788
    %v3880 = vunpack.c.l.b16 %v3789
    %v3881 = vunpack.c.h.b16 %v3789
    %v3882 = vunpack.c.l.b16 %v3790
    %v3883 = vunpack.c.h.b16 %v3790
    %v3884 = vunpack.c.l.b16 %v3791
    %v3885 = vunpack.c.h.b16 %v3791
    %v3886 = vunpack.c.l.b16 %v3792
    %v3887 = vunpack.c.h.b16 %v3792
    %v3888 = vunpack.c.l.b16 %v3793
    %v3889 = vunpack.c.h.b16 %v3793
    %v3890 = vunpack.c.l.b16 %v3794
    %v3891 = vunpack.c.h.b16 %v3794
    %v3892 = vunpack.c.l.b16 %v3795
    %v3893 = vunpack.c.h.b16 %v3795
    %v3894 = vunpack.c.l.b16 %v3796
    %v3895 = vunpack.c.h.b16 %v3796
    %v3896 = vunpack.c.l.b16 %v3797
    %v3897 = vunpack.c.h.b16 %v3797
    %v3898 = vunpack.c.l.b16 %v3798
    %v3899 = vunpack.c.h.b16 %v3798
    %v3900 = vunpack.c.l.b16 %v3799
    %v3901 = vunpack.c.h.b16 %v3799
    %v3902 = vunpack.c.l.b16 %v3800
    %v3903 = vunpack.c.h.b16 %v3800
    %v3904 = vunpack.c.l.b16 %v3801
    %v3905 = vunpack.c.h.b16 %v3801
    %v3906 = vunpack.c.l.b16 %v3802
    %v3907 = vunpack.c.h.b16 %v3802
    %v3908 = vunpack.c.l.b16 %v3803
    %v3909 = vunpack.c.h.b16 %v3803
    %v3910 = vpack.c.b16 %v3850, %v3846
    %v3911 = vpack.c.b16 %v3851, %v3847
    %v3912 = vpack.c.b16 %v3852, %v3848
    %v3913 = vpack.c.b16 %v3853, %v3849
    %v3914 = vpack.c.b16 %v3858, %v3854
    %v3915 = vpack.c.b16 %v3859, %v3855
    %v3916 = vpack.c.b16 %v3860, %v3856
    %v3917 = vpack.c.b16 %v3861, %v3857
    %v3918 = vpack.c.b16 %v3866, %v3862
    %v3919 = vpack.c.b16 %v3867, %v3863
    %v3920 = vpack.c.b16 %v3868, %v3864
    %v3921 = vpack.c.b16 %v3869, %v3865
    %v3922 = vpack.c.b16 %v3874, %v3870
    %v3923 = vpack.c.b16 %v3875, %v3871
    %v3924 = vpack.c.b16 %v3876, %v3872
    %v3925 = vpack.c.b16 %v3877, %v3873
    %v3926 = vpack.c.b16 %v3882, %v3878
    %v3927 = vpack.c.b16 %v3883, %v3879
    %v3928 = vpack.c.b16 %v3884, %v3880
    %v3929 = vpack.c.b16 %v3885, %v3881
    %v3930 = vpack.c.b16 %v3890, %v3886
    %v3931 = vpack.c.b16 %v3891, %v3887
    %v3932 = vpack.c.b16 %v3892, %v3888
    %v3933 = vpack.c.b16 %v3893, %v3889
    %v3934 = vpack.c.b16 %v3898, %v3894
    %v3935 = vpack.c.b16 %v3899, %v3895
    %v3936 = vpack.c.b16 %v3900, %v3896
    %v3937 = vpack.c.b16 %v3901, %v3897
    %v3938 = vpack.c.b16 %v3906, %v3902
    %v3939 = vpack.c.b16 %v3907, %v3903
    %v3940 = vpack.c.b16 %v3908, %v3904
    %v3941 = vpack.c.b16 %v3909, %v3905
    %3974 = vmatpush.bf16.msra.mxu0 %v3938
    %3975 = vmatpush.bf16.msra.mxu0 %v3934
    %3976 = vmatpush.bf16.msra.mxu0 %v3930
    %3977 = vmatpush.bf16.msra.mxu0 %v3926
    %3978 = vmatpush.bf16.msra.mxu0 %v3922
    %3979 = vmatpush.bf16.msra.mxu0 %v3918
    %3980 = vmatpush.bf16.msra.mxu0 %v3914
    %3981 = vmatpush.bf16.msra.mxu0 %v3910
    %3982 = vmatmul.bf16.gmra.mxu0 %v3771
    %v3983 = vpop.f32.mrf.mxu0
    %v3984 = vadd.f32 %v3806, %v3983
    %v3985 = vpop.f32.mrf.mxu0
    %3986 = vdwg.mxu0
    %3987 = vmatpush.bf16.msra.mxu0 %v3939
    %3988 = vmatpush.bf16.msra.mxu0 %v3935
    %3989 = vmatpush.bf16.msra.mxu0 %v3931
    %3990 = vmatpush.bf16.msra.mxu0 %v3927
    %3991 = vmatpush.bf16.msra.mxu0 %v3923
    %3992 = vmatpush.bf16.msra.mxu0 %v3919
    %3993 = vmatpush.bf16.msra.mxu0 %v3915
    %3994 = vmatpush.bf16.msra.mxu0 %v3911
    %3995 = vmatmul.bf16.gmra.mxu0 %v3771
    %v3996 = vpop.f32.mrf.mxu0
    %v3997 = vadd.f32 %v3807, %v3996
    %v3998 = vpop.f32.mrf.mxu0
    %3999 = vdwg.mxu0
    %4000 = vmatpush.bf16.msra.mxu0 %v3940
    %4001 = vmatpush.bf16.msra.mxu0 %v3936
    %4002 = vmatpush.bf16.msra.mxu0 %v3932
    %4003 = vmatpush.bf16.msra.mxu0 %v3928
    %4004 = vmatpush.bf16.msra.mxu0 %v3924
    %4005 = vmatpush.bf16.msra.mxu0 %v3920
    %4006 = vmatpush.bf16.msra.mxu0 %v3916
    %4007 = vmatpush.bf16.msra.mxu0 %v3912
    %4008 = vmatmul.bf16.gmra.mxu0 %v3771
    %v4009 = vpop.f32.mrf.mxu0
    %v4010 = vadd.f32 %v3808, %v4009
    %v4011 = vpop.f32.mrf.mxu0
    %4012 = vdwg.mxu0
    %4013 = vmatpush.bf16.msra.mxu0 %v3941
    %4014 = vmatpush.bf16.msra.mxu0 %v3937
    %4015 = vmatpush.bf16.msra.mxu0 %v3933
    %4016 = vmatpush.bf16.msra.mxu0 %v3929
    %4017 = vmatpush.bf16.msra.mxu0 %v3925
    %4018 = vmatpush.bf16.msra.mxu0 %v3921
    %4019 = vmatpush.bf16.msra.mxu0 %v3917
    %4020 = vmatpush.bf16.msra.mxu0 %v3913
    %4021 = vmatmul.bf16.gmra.mxu0 %v3771
    %v4022 = vpop.f32.mrf.mxu0
    %v4023 = vadd.f32 %v3809, %v4022
    %v4024 = vpop.f32.mrf.mxu0
    %4025 = vdwg.mxu0
    %vm4026 = vcmp.gt.f32.partialorder %v3984, 0.0
    %vm4027 = vcmp.gt.f32.partialorder %v3997, 0.0
    %vm4028 = vcmp.gt.f32.partialorder %v4010, 0.0
    %vm4029 = vcmp.gt.f32.partialorder %v4023, 0.0
    %v4030 = vmul.f32 %v3984, 0.01
    %v4031 = vmul.f32 %v3997, 0.01
    %v4032 = vmul.f32 %v4010, 0.01
    %v4033 = vmul.f32 %v4023, 0.01
    %v4034 = vsel %vm4026, %v3984, %v4030
    %v4035 = vsel %vm4027, %v3997, %v4031
    %v4036 = vsel %vm4028, %v4010, %v4032
    %v4037 = vsel %vm4029, %v4023, %v4033
    %v4038 = vpack.c.bf16 %v4034, %v4034
    %v4039 = vpack.c.bf16 %v4035, %v4035
    %v4040 = vpack.c.bf16 %v4036, %v4036
    %v4041 = vpack.c.bf16 %v4037, %v4037
    %v4042 = vld [vmem:[#allocation8] sm:$0xff]
    %v4043 = vld [vmem:[#allocation8 + $0x8] sm:$0xff]
    %v4044 = vld [vmem:[#allocation8 + $0x10] sm:$0xff]
    %v4045 = vld [vmem:[#allocation8 + $0x18] sm:$0xff]
    %v4046 = vld [vmem:[#allocation8 + $0x20] sm:$0xff]
    %v4047 = vld [vmem:[#allocation8 + $0x28] sm:$0xff]
    %v4048 = vld [vmem:[#allocation8 + $0x30] sm:$0xff]
    %v4049 = vld [vmem:[#allocation8 + $0x38] sm:$0xff]
    %v4050 = vld [vmem:[#allocation8 + $0x40] sm:$0xff]
    %v4051 = vld [vmem:[#allocation8 + $0x48] sm:$0xff]
    %v4052 = vld [vmem:[#allocation8 + $0x50] sm:$0xff]
    %v4053 = vld [vmem:[#allocation8 + $0x58] sm:$0xff]
    %v4054 = vld [vmem:[#allocation8 + $0x60] sm:$0xff]
    %v4055 = vld [vmem:[#allocation8 + $0x68] sm:$0xff]
    %v4056 = vld [vmem:[#allocation8 + $0x70] sm:$0xff]
    %v4057 = vld [vmem:[#allocation8 + $0x78] sm:$0xff]
    %v4058 = vld [vmem:[#allocation8 + $0x80] sm:$0xff]
    %v4059 = vld [vmem:[#allocation8 + $0x88] sm:$0xff]
    %v4060 = vld [vmem:[#allocation8 + $0x90] sm:$0xff]
    %v4061 = vld [vmem:[#allocation8 + $0x98] sm:$0xff]
    %v4062 = vld [vmem:[#allocation8 + $0xa0] sm:$0xff]
    %v4063 = vld [vmem:[#allocation8 + $0xa8] sm:$0xff]
    %v4064 = vld [vmem:[#allocation8 + $0xb0] sm:$0xff]
    %v4065 = vld [vmem:[#allocation8 + $0xb8] sm:$0xff]
    %v4066 = vld [vmem:[#allocation8 + $0xc0] sm:$0xff]
    %v4067 = vld [vmem:[#allocation8 + $0xc8] sm:$0xff]
    %v4068 = vld [vmem:[#allocation8 + $0xd0] sm:$0xff]
    %v4069 = vld [vmem:[#allocation8 + $0xd8] sm:$0xff]
    %v4070 = vld [vmem:[#allocation8 + $0xe0] sm:$0xff]
    %v4071 = vld [vmem:[#allocation8 + $0xe8] sm:$0xff]
    %v4072 = vld [vmem:[#allocation8 + $0xf0] sm:$0xff]
    %v4073 = vld [vmem:[#allocation8 + $0xf8] sm:$0xff]
    %v4074 = vld [vmem:[#allocation8 + $0x100] sm:$0xff]
    %v4075 = vld [vmem:[#allocation8 + $0x108] sm:$0xff]
    %v4076 = vld [vmem:[#allocation8 + $0x110] sm:$0xff]
    %v4077 = vld [vmem:[#allocation8 + $0x118] sm:$0xff]
    %v4078 = vld [vmem:[#allocation8 + $0x120] sm:$0xff]
    %v4079 = vld [vmem:[#allocation8 + $0x128] sm:$0xff]
    %v4080 = vld [vmem:[#allocation8 + $0x130] sm:$0xff]
    %v4081 = vld [vmem:[#allocation8 + $0x138] sm:$0xff]
    %v4082 = vld [vmem:[#allocation8 + $0x140] sm:$0xff]
    %v4083 = vld [vmem:[#allocation8 + $0x148] sm:$0xff]
    %v4084 = vld [vmem:[#allocation8 + $0x150] sm:$0xff]
    %v4085 = vld [vmem:[#allocation8 + $0x158] sm:$0xff]
    %v4086 = vld [vmem:[#allocation8 + $0x160] sm:$0xff]
    %v4087 = vld [vmem:[#allocation8 + $0x168] sm:$0xff]
    %v4088 = vld [vmem:[#allocation8 + $0x170] sm:$0xff]
    %v4089 = vld [vmem:[#allocation8 + $0x178] sm:$0xff]
    %v4090 = vld [vmem:[#allocation8 + $0x180] sm:$0xff]
    %v4091 = vld [vmem:[#allocation8 + $0x188] sm:$0xff]
    %v4092 = vld [vmem:[#allocation8 + $0x190] sm:$0xff]
    %v4093 = vld [vmem:[#allocation8 + $0x198] sm:$0xff]
    %v4094 = vld [vmem:[#allocation8 + $0x1a0] sm:$0xff]
    %v4095 = vld [vmem:[#allocation8 + $0x1a8] sm:$0xff]
    %v4096 = vld [vmem:[#allocation8 + $0x1b0] sm:$0xff]
    %v4097 = vld [vmem:[#allocation8 + $0x1b8] sm:$0xff]
    %v4098 = vld [vmem:[#allocation8 + $0x1c0] sm:$0xff]
    %v4099 = vld [vmem:[#allocation8 + $0x1c8] sm:$0xff]
    %v4100 = vld [vmem:[#allocation8 + $0x1d0] sm:$0xff]
    %v4101 = vld [vmem:[#allocation8 + $0x1d8] sm:$0xff]
    %v4102 = vld [vmem:[#allocation8 + $0x1e0] sm:$0xff]
    %v4103 = vld [vmem:[#allocation8 + $0x1e8] sm:$0xff]
    %v4104 = vld [vmem:[#allocation8 + $0x1f0] sm:$0xff]
    %v4105 = vld [vmem:[#allocation8 + $0x1f8] sm:$0xff]
    %v4106 = vld [vmem:[%s8] sm:$0x3]
    %v4108 = vperm.slane %v4106, 0
    %v4109 = vperm.slane %v4106, 1
    %v4176 = vunpack.c.l.b16 %v4042
    %v4177 = vunpack.c.h.b16 %v4042
    %v4178 = vunpack.c.l.b16 %v4043
    %v4179 = vunpack.c.h.b16 %v4043
    %v4180 = vunpack.c.l.b16 %v4044
    %v4181 = vunpack.c.h.b16 %v4044
    %v4182 = vunpack.c.l.b16 %v4045
    %v4183 = vunpack.c.h.b16 %v4045
    %v4184 = vunpack.c.l.b16 %v4046
    %v4185 = vunpack.c.h.b16 %v4046
    %v4186 = vunpack.c.l.b16 %v4047
    %v4187 = vunpack.c.h.b16 %v4047
    %v4188 = vunpack.c.l.b16 %v4048
    %v4189 = vunpack.c.h.b16 %v4048
    %v4190 = vunpack.c.l.b16 %v4049
    %v4191 = vunpack.c.h.b16 %v4049
    %v4192 = vunpack.c.l.b16 %v4050
    %v4193 = vunpack.c.h.b16 %v4050
    %v4194 = vunpack.c.l.b16 %v4051
    %v4195 = vunpack.c.h.b16 %v4051
    %v4196 = vunpack.c.l.b16 %v4052
    %v4197 = vunpack.c.h.b16 %v4052
    %v4198 = vunpack.c.l.b16 %v4053
    %v4199 = vunpack.c.h.b16 %v4053
    %v4200 = vunpack.c.l.b16 %v4054
    %v4201 = vunpack.c.h.b16 %v4054
    %v4202 = vunpack.c.l.b16 %v4055
    %v4203 = vunpack.c.h.b16 %v4055
    %v4204 = vunpack.c.l.b16 %v4056
    %v4205 = vunpack.c.h.b16 %v4056
    %v4206 = vunpack.c.l.b16 %v4057
    %v4207 = vunpack.c.h.b16 %v4057
    %v4208 = vunpack.c.l.b16 %v4058
    %v4209 = vunpack.c.h.b16 %v4058
    %v4210 = vunpack.c.l.b16 %v4059
    %v4211 = vunpack.c.h.b16 %v4059
    %v4212 = vunpack.c.l.b16 %v4060
    %v4213 = vunpack.c.h.b16 %v4060
    %v4214 = vunpack.c.l.b16 %v4061
    %v4215 = vunpack.c.h.b16 %v4061
    %v4216 = vunpack.c.l.b16 %v4062
    %v4217 = vunpack.c.h.b16 %v4062
    %v4218 = vunpack.c.l.b16 %v4063
    %v4219 = vunpack.c.h.b16 %v4063
    %v4220 = vunpack.c.l.b16 %v4064
    %v4221 = vunpack.c.h.b16 %v4064
    %v4222 = vunpack.c.l.b16 %v4065
    %v4223 = vunpack.c.h.b16 %v4065
    %v4224 = vunpack.c.l.b16 %v4066
    %v4225 = vunpack.c.h.b16 %v4066
    %v4226 = vunpack.c.l.b16 %v4067
    %v4227 = vunpack.c.h.b16 %v4067
    %v4228 = vunpack.c.l.b16 %v4068
    %v4229 = vunpack.c.h.b16 %v4068
    %v4230 = vunpack.c.l.b16 %v4069
    %v4231 = vunpack.c.h.b16 %v4069
    %v4232 = vunpack.c.l.b16 %v4070
    %v4233 = vunpack.c.h.b16 %v4070
    %v4234 = vunpack.c.l.b16 %v4071
    %v4235 = vunpack.c.h.b16 %v4071
    %v4236 = vunpack.c.l.b16 %v4072
    %v4237 = vunpack.c.h.b16 %v4072
    %v4238 = vunpack.c.l.b16 %v4073
    %v4239 = vunpack.c.h.b16 %v4073
    %v4240 = vunpack.c.l.b16 %v4074
    %v4241 = vunpack.c.h.b16 %v4074
    %v4242 = vunpack.c.l.b16 %v4075
    %v4243 = vunpack.c.h.b16 %v4075
    %v4244 = vunpack.c.l.b16 %v4076
    %v4245 = vunpack.c.h.b16 %v4076
    %v4246 = vunpack.c.l.b16 %v4077
    %v4247 = vunpack.c.h.b16 %v4077
    %v4248 = vunpack.c.l.b16 %v4078
    %v4249 = vunpack.c.h.b16 %v4078
    %v4250 = vunpack.c.l.b16 %v4079
    %v4251 = vunpack.c.h.b16 %v4079
    %v4252 = vunpack.c.l.b16 %v4080
    %v4253 = vunpack.c.h.b16 %v4080
    %v4254 = vunpack.c.l.b16 %v4081
    %v4255 = vunpack.c.h.b16 %v4081
    %v4256 = vunpack.c.l.b16 %v4082
    %v4257 = vunpack.c.h.b16 %v4082
    %v4258 = vunpack.c.l.b16 %v4083
    %v4259 = vunpack.c.h.b16 %v4083
    %v4260 = vunpack.c.l.b16 %v4084
    %v4261 = vunpack.c.h.b16 %v4084
    %v4262 = vunpack.c.l.b16 %v4085
    %v4263 = vunpack.c.h.b16 %v4085
    %v4264 = vunpack.c.l.b16 %v4086
    %v4265 = vunpack.c.h.b16 %v4086
    %v4266 = vunpack.c.l.b16 %v4087
    %v4267 = vunpack.c.h.b16 %v4087
    %v4268 = vunpack.c.l.b16 %v4088
    %v4269 = vunpack.c.h.b16 %v4088
    %v4270 = vunpack.c.l.b16 %v4089
    %v4271 = vunpack.c.h.b16 %v4089
    %v4272 = vunpack.c.l.b16 %v4090
    %v4273 = vunpack.c.h.b16 %v4090
    %v4274 = vunpack.c.l.b16 %v4091
    %v4275 = vunpack.c.h.b16 %v4091
    %v4276 = vunpack.c.l.b16 %v4092
    %v4277 = vunpack.c.h.b16 %v4092
    %v4278 = vunpack.c.l.b16 %v4093
    %v4279 = vunpack.c.h.b16 %v4093
    %v4280 = vunpack.c.l.b16 %v4094
    %v4281 = vunpack.c.h.b16 %v4094
    %v4282 = vunpack.c.l.b16 %v4095
    %v4283 = vunpack.c.h.b16 %v4095
    %v4284 = vunpack.c.l.b16 %v4096
    %v4285 = vunpack.c.h.b16 %v4096
    %v4286 = vunpack.c.l.b16 %v4097
    %v4287 = vunpack.c.h.b16 %v4097
    %v4288 = vunpack.c.l.b16 %v4098
    %v4289 = vunpack.c.h.b16 %v4098
    %v4290 = vunpack.c.l.b16 %v4099
    %v4291 = vunpack.c.h.b16 %v4099
    %v4292 = vunpack.c.l.b16 %v4100
    %v4293 = vunpack.c.h.b16 %v4100
    %v4294 = vunpack.c.l.b16 %v4101
    %v4295 = vunpack.c.h.b16 %v4101
    %v4296 = vunpack.c.l.b16 %v4102
    %v4297 = vunpack.c.h.b16 %v4102
    %v4298 = vunpack.c.l.b16 %v4103
    %v4299 = vunpack.c.h.b16 %v4103
    %v4300 = vunpack.c.l.b16 %v4104
    %v4301 = vunpack.c.h.b16 %v4104
    %v4302 = vunpack.c.l.b16 %v4105
    %v4303 = vunpack.c.h.b16 %v4105
    %v4304 = vpack.c.b16 %v4178, %v4176
    %v4305 = vpack.c.b16 %v4179, %v4177
    %v4306 = vpack.c.b16 %v4182, %v4180
    %v4307 = vpack.c.b16 %v4183, %v4181
    %v4308 = vpack.c.b16 %v4186, %v4184
    %v4309 = vpack.c.b16 %v4187, %v4185
    %v4310 = vpack.c.b16 %v4190, %v4188
    %v4311 = vpack.c.b16 %v4191, %v4189
    %v4312 = vpack.c.b16 %v4194, %v4192
    %v4313 = vpack.c.b16 %v4195, %v4193
    %v4314 = vpack.c.b16 %v4198, %v4196
    %v4315 = vpack.c.b16 %v4199, %v4197
    %v4316 = vpack.c.b16 %v4202, %v4200
    %v4317 = vpack.c.b16 %v4203, %v4201
    %v4318 = vpack.c.b16 %v4206, %v4204
    %v4319 = vpack.c.b16 %v4207, %v4205
    %v4320 = vpack.c.b16 %v4210, %v4208
    %v4321 = vpack.c.b16 %v4211, %v4209
    %v4322 = vpack.c.b16 %v4214, %v4212
    %v4323 = vpack.c.b16 %v4215, %v4213
    %v4324 = vpack.c.b16 %v4218, %v4216
    %v4325 = vpack.c.b16 %v4219, %v4217
    %v4326 = vpack.c.b16 %v4222, %v4220
    %v4327 = vpack.c.b16 %v4223, %v4221
    %v4328 = vpack.c.b16 %v4226, %v4224
    %v4329 = vpack.c.b16 %v4227, %v4225
    %v4330 = vpack.c.b16 %v4230, %v4228
    %v4331 = vpack.c.b16 %v4231, %v4229
    %v4332 = vpack.c.b16 %v4234, %v4232
    %v4333 = vpack.c.b16 %v4235, %v4233
    %v4334 = vpack.c.b16 %v4238, %v4236
    %v4335 = vpack.c.b16 %v4239, %v4237
    %v4336 = vpack.c.b16 %v4242, %v4240
    %v4337 = vpack.c.b16 %v4243, %v4241
    %v4338 = vpack.c.b16 %v4246, %v4244
    %v4339 = vpack.c.b16 %v4247, %v4245
    %v4340 = vpack.c.b16 %v4250, %v4248
    %v4341 = vpack.c.b16 %v4251, %v4249
    %v4342 = vpack.c.b16 %v4254, %v4252
    %v4343 = vpack.c.b16 %v4255, %v4253
    %v4344 = vpack.c.b16 %v4258, %v4256
    %v4345 = vpack.c.b16 %v4259, %v4257
    %v4346 = vpack.c.b16 %v4262, %v4260
    %v4347 = vpack.c.b16 %v4263, %v4261
    %v4348 = vpack.c.b16 %v4266, %v4264
    %v4349 = vpack.c.b16 %v4267, %v4265
    %v4350 = vpack.c.b16 %v4270, %v4268
    %v4351 = vpack.c.b16 %v4271, %v4269
    %v4352 = vpack.c.b16 %v4274, %v4272
    %v4353 = vpack.c.b16 %v4275, %v4273
    %v4354 = vpack.c.b16 %v4278, %v4276
    %v4355 = vpack.c.b16 %v4279, %v4277
    %v4356 = vpack.c.b16 %v4282, %v4280
    %v4357 = vpack.c.b16 %v4283, %v4281
    %v4358 = vpack.c.b16 %v4286, %v4284
    %v4359 = vpack.c.b16 %v4287, %v4285
    %v4360 = vpack.c.b16 %v4290, %v4288
    %v4361 = vpack.c.b16 %v4291, %v4289
    %v4362 = vpack.c.b16 %v4294, %v4292
    %v4363 = vpack.c.b16 %v4295, %v4293
    %v4364 = vpack.c.b16 %v4298, %v4296
    %v4365 = vpack.c.b16 %v4299, %v4297
    %v4366 = vpack.c.b16 %v4302, %v4300
    %v4367 = vpack.c.b16 %v4303, %v4301
    %4432 = vmatpush.bf16.msra.mxu0 %v4318
    %4433 = vmatpush.bf16.msra.mxu0 %v4316
    %4434 = vmatpush.bf16.msra.mxu0 %v4314
    %4435 = vmatpush.bf16.msra.mxu0 %v4312
    %4436 = vmatpush.bf16.msra.mxu0 %v4310
    %4437 = vmatpush.bf16.msra.mxu0 %v4308
    %4438 = vmatpush.bf16.msra.mxu0 %v4306
    %4439 = vmatpush.bf16.msra.mxu0 %v4304
    %4440 = vmatmul.bf16.gmra.mxu0 %v4038
    %v4441 = vpop.f32.mrf.mxu0
    %v4442 = vadd.f32 %v4108, %v4441
    %v4443 = vpop.f32.mrf.mxu0
    %4444 = vdwg.mxu0
    %4445 = vmatpush.bf16.msra.mxu0 %v4334
    %4446 = vmatpush.bf16.msra.mxu0 %v4332
    %4447 = vmatpush.bf16.msra.mxu0 %v4330
    %4448 = vmatpush.bf16.msra.mxu0 %v4328
    %4449 = vmatpush.bf16.msra.mxu0 %v4326
    %4450 = vmatpush.bf16.msra.mxu0 %v4324
    %4451 = vmatpush.bf16.msra.mxu0 %v4322
    %4452 = vmatpush.bf16.msra.mxu0 %v4320
    %4453 = vmatmul.bf16.gmra.mxu0 %v4039
    %v4454 = vpop.f32.mrf.mxu0
    %v4455 = vadd.f32 %v4442, %v4454
    %v4456 = vpop.f32.mrf.mxu0
    %4457 = vdwg.mxu0
    %4458 = vmatpush.bf16.msra.mxu0 %v4350
    %4459 = vmatpush.bf16.msra.mxu0 %v4348
    %4460 = vmatpush.bf16.msra.mxu0 %v4346
    %4461 = vmatpush.bf16.msra.mxu0 %v4344
    %4462 = vmatpush.bf16.msra.mxu0 %v4342
    %4463 = vmatpush.bf16.msra.mxu0 %v4340
    %4464 = vmatpush.bf16.msra.mxu0 %v4338
    %4465 = vmatpush.bf16.msra.mxu0 %v4336
    %4466 = vmatmul.bf16.gmra.mxu0 %v4040
    %v4467 = vpop.f32.mrf.mxu0
    %v4468 = vadd.f32 %v4455, %v4467
    %v4469 = vpop.f32.mrf.mxu0
    %4470 = vdwg.mxu0
    %4471 = vmatpush.bf16.msra.mxu0 %v4366
    %4472 = vmatpush.bf16.msra.mxu0 %v4364
    %4473 = vmatpush.bf16.msra.mxu0 %v4362
    %4474 = vmatpush.bf16.msra.mxu0 %v4360
    %4475 = vmatpush.bf16.msra.mxu0 %v4358
    %4476 = vmatpush.bf16.msra.mxu0 %v4356
    %4477 = vmatpush.bf16.msra.mxu0 %v4354
    %4478 = vmatpush.bf16.msra.mxu0 %v4352
    %4479 = vmatmul.bf16.gmra.mxu0 %v4041
    %v4480 = vpop.f32.mrf.mxu0
    %v4481 = vadd.f32 %v4468, %v4480
    %v4482 = vpop.f32.mrf.mxu0
    %4483 = vdwg.mxu0
    %4484 = vmatpush.bf16.msra.mxu0 %v4319
    %4485 = vmatpush.bf16.msra.mxu0 %v4317
    %4486 = vmatpush.bf16.msra.mxu0 %v4315
    %4487 = vmatpush.bf16.msra.mxu0 %v4313
    %4488 = vmatpush.bf16.msra.mxu0 %v4311
    %4489 = vmatpush.bf16.msra.mxu0 %v4309
    %4490 = vmatpush.bf16.msra.mxu0 %v4307
    %4491 = vmatpush.bf16.msra.mxu0 %v4305
    %4492 = vmatmul.bf16.gmra.mxu0 %v4038
    %v4493 = vpop.f32.mrf.mxu0
    %v4494 = vadd.f32 %v4109, %v4493
    %v4495 = vpop.f32.mrf.mxu0
    %4496 = vdwg.mxu0
    %4497 = vmatpush.bf16.msra.mxu0 %v4335
    %4498 = vmatpush.bf16.msra.mxu0 %v4333
    %4499 = vmatpush.bf16.msra.mxu0 %v4331
    %4500 = vmatpush.bf16.msra.mxu0 %v4329
    %4501 = vmatpush.bf16.msra.mxu0 %v4327
    %4502 = vmatpush.bf16.msra.mxu0 %v4325
    %4503 = vmatpush.bf16.msra.mxu0 %v4323
    %4504 = vmatpush.bf16.msra.mxu0 %v4321
    %4505 = vmatmul.bf16.gmra.mxu0 %v4039
    %v4506 = vpop.f32.mrf.mxu0
    %v4507 = vadd.f32 %v4494, %v4506
    %v4508 = vpop.f32.mrf.mxu0
    %4509 = vdwg.mxu0
    %4510 = vmatpush.bf16.msra.mxu0 %v4351
    %4511 = vmatpush.bf16.msra.mxu0 %v4349
    %4512 = vmatpush.bf16.msra.mxu0 %v4347
    %4513 = vmatpush.bf16.msra.mxu0 %v4345
    %4514 = vmatpush.bf16.msra.mxu0 %v4343
    %4515 = vmatpush.bf16.msra.mxu0 %v4341
    %4516 = vmatpush.bf16.msra.mxu0 %v4339
    %4517 = vmatpush.bf16.msra.mxu0 %v4337
    %4518 = vmatmul.bf16.gmra.mxu0 %v4040
    %v4519 = vpop.f32.mrf.mxu0
    %v4520 = vadd.f32 %v4507, %v4519
    %v4521 = vpop.f32.mrf.mxu0
    %4522 = vdwg.mxu0
    %4523 = vmatpush.bf16.msra.mxu0 %v4367
    %4524 = vmatpush.bf16.msra.mxu0 %v4365
    %4525 = vmatpush.bf16.msra.mxu0 %v4363
    %4526 = vmatpush.bf16.msra.mxu0 %v4361
    %4527 = vmatpush.bf16.msra.mxu0 %v4359
    %4528 = vmatpush.bf16.msra.mxu0 %v4357
    %4529 = vmatpush.bf16.msra.mxu0 %v4355
    %4530 = vmatpush.bf16.msra.mxu0 %v4353
    %4531 = vmatmul.bf16.gmra.mxu0 %v4041
    %v4532 = vpop.f32.mrf.mxu0
    %v4533 = vadd.f32 %v4520, %v4532
    %v4534 = vpop.f32.mrf.mxu0
    %4535 = vdwg.mxu0
    %vm4536 = vcmp.gt.f32.partialorder %v4481, 0.0
    %vm4537 = vcmp.gt.f32.partialorder %v4533, 0.0
    %v4538 = vmul.f32 %v4481, 0.01
    %v4539 = vmul.f32 %v4533, 0.01
    %v4540 = vsel %vm4536, %v4481, %v4538
    %v4541 = vsel %vm4537, %v4533, %v4539
    %v4542 = vpack.c.bf16 %v4540, %v4540
    %v4543 = vpack.c.bf16 %v4541, %v4541
    %v4544 = vld [vmem:[#allocation9] sm:$0xf]
    %v4545 = vld [vmem:[#allocation9 + $0x4] sm:$0xf]
    %v4546 = vld [vmem:[#allocation9 + $0x8] sm:$0xf]
    %v4547 = vld [vmem:[#allocation9 + $0xc] sm:$0xf]
    %v4548 = vld [vmem:[#allocation9 + $0x10] sm:$0xf]
    %v4549 = vld [vmem:[#allocation9 + $0x14] sm:$0xf]
    %v4550 = vld [vmem:[#allocation9 + $0x18] sm:$0xf]
    %v4551 = vld [vmem:[#allocation9 + $0x1c] sm:$0xf]
    %v4552 = vld [vmem:[#allocation9 + $0x20] sm:$0xf]
    %v4553 = vld [vmem:[#allocation9 + $0x24] sm:$0xf]
    %v4554 = vld [vmem:[#allocation9 + $0x28] sm:$0xf]
    %v4555 = vld [vmem:[#allocation9 + $0x2c] sm:$0xf]
    %v4556 = vld [vmem:[#allocation9 + $0x30] sm:$0xf]
    %v4557 = vld [vmem:[#allocation9 + $0x34] sm:$0xf]
    %v4558 = vld [vmem:[#allocation9 + $0x38] sm:$0xf]
    %v4559 = vld [vmem:[#allocation9 + $0x3c] sm:$0xf]
    %v4560 = vld [vmem:[#allocation9 + $0x40] sm:$0xf]
    %v4561 = vld [vmem:[#allocation9 + $0x44] sm:$0xf]
    %v4562 = vld [vmem:[#allocation9 + $0x48] sm:$0xf]
    %v4563 = vld [vmem:[#allocation9 + $0x4c] sm:$0xf]
    %v4564 = vld [vmem:[#allocation9 + $0x50] sm:$0xf]
    %v4565 = vld [vmem:[#allocation9 + $0x54] sm:$0xf]
    %v4566 = vld [vmem:[#allocation9 + $0x58] sm:$0xf]
    %v4567 = vld [vmem:[#allocation9 + $0x5c] sm:$0xf]
    %v4568 = vld [vmem:[#allocation9 + $0x60] sm:$0xf]
    %v4569 = vld [vmem:[#allocation9 + $0x64] sm:$0xf]
    %v4570 = vld [vmem:[#allocation9 + $0x68] sm:$0xf]
    %v4571 = vld [vmem:[#allocation9 + $0x6c] sm:$0xf]
    %v4572 = vld [vmem:[#allocation9 + $0x70] sm:$0xf]
    %v4573 = vld [vmem:[#allocation9 + $0x74] sm:$0xf]
    %v4574 = vld [vmem:[#allocation9 + $0x78] sm:$0xf]
    %v4575 = vld [vmem:[#allocation9 + $0x7c] sm:$0xf]
    %v4576 = vld [vmem:[%s10] sm:$0x1]
    %v4578 = vperm.slane %v4576, 0
    %v4612 = vunpack.c.l.b16 %v4544
    %v4613 = vunpack.c.l.b16 %v4545
    %v4614 = vunpack.c.l.b16 %v4546
    %v4615 = vunpack.c.l.b16 %v4547
    %v4616 = vunpack.c.l.b16 %v4548
    %v4617 = vunpack.c.l.b16 %v4549
    %v4618 = vunpack.c.l.b16 %v4550
    %v4619 = vunpack.c.l.b16 %v4551
    %v4620 = vunpack.c.l.b16 %v4552
    %v4621 = vunpack.c.l.b16 %v4553
    %v4622 = vunpack.c.l.b16 %v4554
    %v4623 = vunpack.c.l.b16 %v4555
    %v4624 = vunpack.c.l.b16 %v4556
    %v4625 = vunpack.c.l.b16 %v4557
    %v4626 = vunpack.c.l.b16 %v4558
    %v4627 = vunpack.c.l.b16 %v4559
    %v4628 = vunpack.c.l.b16 %v4560
    %v4629 = vunpack.c.l.b16 %v4561
    %v4630 = vunpack.c.l.b16 %v4562
    %v4631 = vunpack.c.l.b16 %v4563
    %v4632 = vunpack.c.l.b16 %v4564
    %v4633 = vunpack.c.l.b16 %v4565
    %v4634 = vunpack.c.l.b16 %v4566
    %v4635 = vunpack.c.l.b16 %v4567
    %v4636 = vunpack.c.l.b16 %v4568
    %v4637 = vunpack.c.l.b16 %v4569
    %v4638 = vunpack.c.l.b16 %v4570
    %v4639 = vunpack.c.l.b16 %v4571
    %v4640 = vunpack.c.l.b16 %v4572
    %v4641 = vunpack.c.l.b16 %v4573
    %v4642 = vunpack.c.l.b16 %v4574
    %v4643 = vunpack.c.l.b16 %v4575
    %v4644 = vpack.c.b16 %v4613, %v4612
    %v4645 = vpack.c.b16 %v4615, %v4614
    %v4646 = vpack.c.b16 %v4617, %v4616
    %v4647 = vpack.c.b16 %v4619, %v4618
    %v4648 = vpack.c.b16 %v4621, %v4620
    %v4649 = vpack.c.b16 %v4623, %v4622
    %v4650 = vpack.c.b16 %v4625, %v4624
    %v4651 = vpack.c.b16 %v4627, %v4626
    %v4652 = vpack.c.b16 %v4629, %v4628
    %v4653 = vpack.c.b16 %v4631, %v4630
    %v4654 = vpack.c.b16 %v4633, %v4632
    %v4655 = vpack.c.b16 %v4635, %v4634
    %v4656 = vpack.c.b16 %v4637, %v4636
    %v4657 = vpack.c.b16 %v4639, %v4638
    %v4658 = vpack.c.b16 %v4641, %v4640
    %v4659 = vpack.c.b16 %v4643, %v4642
    %4676 = vmatpush.bf16.msra.mxu0 %v4651
    %4677 = vmatpush.bf16.msra.mxu0 %v4650
    %4678 = vmatpush.bf16.msra.mxu0 %v4649
    %4679 = vmatpush.bf16.msra.mxu0 %v4648
    %4680 = vmatpush.bf16.msra.mxu0 %v4647
    %4681 = vmatpush.bf16.msra.mxu0 %v4646
    %4682 = vmatpush.bf16.msra.mxu0 %v4645
    %4683 = vmatpush.bf16.msra.mxu0 %v4644
    %4684 = vmatmul.bf16.gmra.mxu0 %v4542
    %v4685 = vpop.f32.mrf.mxu0
    %v4686 = vadd.f32 %v4578, %v4685
    %v4687 = vpop.f32.mrf.mxu0
    %4688 = vdwg.mxu0
    %4689 = vmatpush.bf16.msra.mxu0 %v4659
    %4690 = vmatpush.bf16.msra.mxu0 %v4658
    %4691 = vmatpush.bf16.msra.mxu0 %v4657
    %4692 = vmatpush.bf16.msra.mxu0 %v4656
    %4693 = vmatpush.bf16.msra.mxu0 %v4655
    %4694 = vmatpush.bf16.msra.mxu0 %v4654
    %4695 = vmatpush.bf16.msra.mxu0 %v4653
    %4696 = vmatpush.bf16.msra.mxu0 %v4652
    %4697 = vmatmul.bf16.gmra.mxu0 %v4543
    %v4698 = vpop.f32.mrf.mxu0
    %v4699 = vadd.f32 %v4686, %v4698
    %v4700 = vpop.f32.mrf.mxu0
    %4701 = vdwg.mxu0
    %4702 = vst [vmem:[#allocation11] sm:$0xff] %v4699
    // Predicated region
    $region62: #{tpu_custom_call.1} parent=1 // pred_check
      _
    $region63: #{tpu_custom_call.1} parent=1 // pred_check_branch
      %4704 = sbr.rel (0) target = $region65
    $region64: #{tpu_custom_call.1} parent=1 // pred_region
      %4706 = vsyncadd [#allocation5], 0
      %s4708 = sshll.u32 [#allocation11], 4
      %s4709 = int_to_ptr.vmem [resolvable:$true] %s4708
      %s4710 = sshll.u32 %s11, 4
      %s4711 = int_to_ptr.hbm [resolvable:$true] %s4710
      %4713 = dma.vmem_to_hbm [thread:$0]  %s4709, 128, %s4711, [#allocation5]
    $region65: #{tpu_custom_call.1} parent=1 // pred_fallthru
      _
    // Predicated region
    $region66: #{tpu_custom_call.1} parent=1 // pred_check
      _
    $region67: #{tpu_custom_call.1} parent=1 // pred_check_branch
      %4715 = sbr.rel (0) target = $region69
    $region68: #{tpu_custom_call.1} parent=1 // pred_region
      %4717 = dma.done [#allocation5], 128
    $region69: #{tpu_custom_call.1} parent=1 // pred_fallthru
      _
    %4718 = vsyncpa [#allocation4], 1
    %4719 = vsyncpa [#allocation7], 1
    %4720 = vsyncpa [#allocation10], 1
    %4721 = vsyncpa [#allocation5], 1

</llo_original>
